<compile_context>
chip_gen: v7x
topology: tpu7x:2x2x1
jax: 0.10.0
libtpu: 0.0.40
codegen_flags: <defaults>
</compile_context>

<pallas_src>
import functools

import jax
import jax.numpy as jnp
from jax import lax
from jax.experimental import pallas as pl
from jax.experimental.pallas import tpu as pltpu

LANE = 128
SUBLANE = 8


def _round_up(x, m):
    return ((x + m - 1) // m) * m


def apa_kernel(adj_hbm, out0_ref, ga_ref, goma_ref, c_ref, out_ref, adj_vmem,
               *, num_iter, mean_row, unroll):
    # Single resident copy of the augmented adjacency (no pipeline double-buffer).
    pltpu.sync_copy(adj_hbm, adj_vmem)
    adj = adj_vmem[...]                      # (Ra, Ra), f32 or bf16

    ga = ga_ref[...]                         # (Ra, TF)  g*alpha
    goma = goma_ref[...]                     # (Ra, TF)  g*(1-alpha)
    c = c_ref[...]                           # (Ra, TF)  (1-beta)*ok_init (exactly 0 off known rows)
    rows = ga.shape[0]
    n_groups = rows // SUBLANE

    def body(_, out):
        # One MXU dot yields both adj@out (rows < N) and the column mean of out:
        # adj rows [mean_row, mean_row+8) are all 1/N, so that (8, TF) slice of the
        # result already holds the mean replicated across a full sublane group ->
        # expanding it to (rows, TF) is plain vreg copies (no per-iteration XLU
        # sublane broadcast).
        res = jnp.dot(adj, out.astype(adj.dtype),
                      preferred_element_type=jnp.float32)
        cm = jnp.concatenate(
            [res[mean_row:mean_row + SUBLANE, :]] * n_groups, axis=0)
        # Fused per-iteration blend (all loop invariants hoisted to ga/goma/c):
        #   known rows:   out <- beta*(alpha*prop + (1-alpha)*cm) + (1-beta)*ok_init
        #   unknown rows: out <- alpha*prop + (1-alpha)*cm
        return ga * res + (goma * cm + c)

    out_ref[...] = lax.fori_loop(0, num_iter, body, out0_ref[...], unroll=unroll)


def apa_forward(adj, out0, know_mask, ok_init, alpha, beta, num_iter=30,
                matmul_dtype=jnp.float32):
    """adj: (N,N) dense sym-normalized adjacency; out0/ok_init: (N,F);
    know_mask: (N,1) float {0,1}; alpha/beta: (1,F). Returns (N,F) float32."""
    N, F = out0.shape

    # Lane-dense attribute axis: one 128-lane tile if F<=128, else 256-lane tiles
    # (fills both halves of the 256-wide v6e/v7x MXU; >=2 tiles can split across
    # v7x TensorCores via the "parallel" grid axis).
    tile_f = LANE if F <= LANE else 2 * LANE
    Fp = _round_up(F, tile_f)
    num_tiles = Fp // tile_f

    mean_row = _round_up(N, SUBLANE)              # mean rows start on a sublane boundary
    Ra = _round_up(mean_row + SUBLANE, 32)        # padded rows; 32 covers f32/bf16 packing

    # Augmented adjacency: rows [:N] = adjacency, rows [mean_row:mean_row+8] = 1/N.
    # Columns >= N are zero BY CONSTRUCTION, so although the mean/padded output rows
    # become nonzero after the first iteration they can never contaminate rows < N.
    adj_aug = jnp.zeros((Ra, Ra), jnp.float32)
    adj_aug = adj_aug.at[:N, :N].set(adj.astype(jnp.float32))
    adj_aug = adj_aug.at[mean_row:mean_row + SUBLANE, :N].set(1.0 / N)
    adj_aug = adj_aug.astype(matmul_dtype)

    def pad2(x, r, c):
        return jnp.zeros((r, c), jnp.float32).at[:x.shape[0], :x.shape[1]].set(
            x.astype(jnp.float32))

    out0_p = pad2(out0, Ra, Fp)
    mask_p = pad2(know_mask, Ra, 1)
    alpha_p = pad2(alpha, 1, Fp)
    beta_p = pad2(beta, 1, Fp)
    # Enforce the contract that ok_init (and hence c) is exactly zero off known rows.
    ok_p = jnp.where(mask_p > 0.5, pad2(ok_init, Ra, Fp), 0.0)

    # Hoisted loop invariants, computed once in plain JAX (no in-kernel prologue,
    # no 1-lane mask DMA):  g = where(known, beta, 1).
    g = jnp.where(mask_p > 0.5, beta_p, 1.0)
    ga = g * alpha_p
    goma = g * (1.0 - alpha_p)
    c = (1.0 - beta_p) * ok_p

    # Full unroll only while one tile's per-iteration work is small; the iteration
    # chain is strictly serial so a large unroll buys no extra overlap.
    unroll = True if Ra * tile_f <= 512 * 128 else 4

    # Actual VMEM footprint: 1x adjacency scratch + double-buffered (Ra,TF) tiles
    # (4 inputs + 1 output) + a few body temporaries.
    itemsize = jnp.dtype(matmul_dtype).itemsize
    footprint = Ra * Ra * itemsize + 14 * Ra * tile_f * 4
    vmem_limit = int(min(100 << 20, max(2 * footprint, 16 << 20)))

    kernel = functools.partial(apa_kernel, num_iter=num_iter,
                               mean_row=mean_row, unroll=unroll)
    tile_spec = pl.BlockSpec((Ra, tile_f), lambda j: (0, j))
    out_p = pl.pallas_call(
        kernel,
        out_shape=jax.ShapeDtypeStruct((Ra, Fp), jnp.float32),
        grid=(num_tiles,),
        in_specs=[
            pl.BlockSpec(memory_space=pl.ANY),   # adjacency stays in HBM
            tile_spec,                           # out0
            tile_spec,                           # ga
            tile_spec,                           # goma
            tile_spec,                           # c
        ],
        out_specs=tile_spec,
        scratch_shapes=[pltpu.VMEM((Ra, Ra), matmul_dtype)],
        compiler_params=pltpu.CompilerParams(
            dimension_semantics=("parallel",),
            vmem_limit_bytes=vmem_limit),
    )(adj_aug, out0_p, ga, goma, c)
    return out_p[:N, :F]


if __name__ == "__main__":
    key = jax.random.PRNGKey(0)
    N, F = 16, 32          # n_nodes, n_attrs
    num_iter = 30
    is_binary = False

    kx, ke, kt = jax.random.split(key, 3)
    x = jax.random.normal(kx, (N, F), dtype=jnp.float32)

    # Deterministic undirected graph: ring + a few chords (no self loops).
    src, dst = [], []
    for i in range(N):
        src += [i, (i + 1) % N]
        dst += [(i + 1) % N, i]
    for i in range(0, N, 3):
        j = (i + 5) % N
        src += [i, j]
        dst += [j, i]
    src = jnp.array(src)
    dst = jnp.array(dst)
    A = jnp.zeros((N, N), jnp.float32).at[src, dst].set(1.0)
    A = jnp.maximum(A, A.T) * (1.0 - jnp.eye(N, dtype=jnp.float32))

    # get_propagation_matrix(..., mode='adj') -> D^{-1/2} A D^{-1/2} (off-diagonal)
    deg = A.sum(axis=1)
    dinv = 1.0 / jnp.sqrt(jnp.maximum(deg, 1e-12))
    adj = dinv[:, None] * A * dinv[None, :]

    # Known-node mask (indices 0,2,4,...)
    know_idx = jnp.arange(0, N, 2)
    know_mask = jnp.zeros((N, 1), jnp.float32).at[know_idx, 0].set(1.0)

    mean = (jnp.zeros((1, F), jnp.float32) if is_binary
            else jnp.mean(x[know_idx], axis=0, keepdims=True))
    std = 1.0

    # Parameters eta, theta: shape (n_attrs,). Module inits zeros; use small
    # deterministic nonzero values so alpha/beta paths are exercised.
    eta = 0.05 * jnp.abs(jax.random.normal(ke, (F,), jnp.float32))
    theta = 0.05 * jnp.abs(jax.random.normal(kt, (F,), jnp.float32))

    alpha = ((N - 1.0) / (theta * N + N - 1.0)).astype(jnp.float32)
    beta = (1.0 / alpha / (1.0 / alpha + eta)).astype(jnp.float32)
    alpha = alpha.reshape(1, F)
    beta = beta.reshape(1, F)

    # out initialized to zeros with known rows filled, then normalized.
    out_full = jnp.zeros_like(x).at[know_idx].set(x[know_idx])
    out0 = (out_full - mean) / std
    ok_init = jnp.where(know_mask > 0.5, (x - mean) / std, 0.0)

    # f32-operand path (bit-accurate vs the PyTorch formulation).
    res_f32 = apa_forward(adj, out0, know_mask, ok_init, alpha, beta,
                          num_iter=num_iter)
    result = res_f32 * std + mean
    jax.block_until_ready(result)

    # bf16-operand path (halves the resident adjacency, multi-x MXU rate); looser
    # tolerance since the 30-iteration fixed point amplifies bf16 rounding.
    res_bf16 = apa_forward(adj, out0, know_mask, ok_init, alpha, beta,
                           num_iter=num_iter, matmul_dtype=jnp.bfloat16)
    result_bf16 = res_bf16 * std + mean
    jax.block_until_ready(result_bf16)

    # Pure-JAX reference matching the original PyTorch formulation.
    def reference():
        def body(_, out):
            prop = adj @ out
            cm = out.mean(axis=0, keepdims=True)
            out = alpha * prop + (1.0 - alpha) * cm
            blended = beta * out + (1.0 - beta) * ok_init
            return jnp.where(know_mask > 0.5, blended, out)
        out = lax.fori_loop(0, num_iter, body, out0)
        return out * std + mean

    ref = jax.block_until_ready(reference())
    assert jnp.allclose(result, ref, atol=5e-4, rtol=5e-4), \
        "f32 kernel mismatch vs reference"
    assert jnp.allclose(result_bf16, ref, atol=2e-1, rtol=1e-1), \
        "bf16 kernel mismatch vs reference"
    print("KERNEL_OK")
</pallas_src>

<mosaic_0001>
module attributes {stable_mosaic.version = 11 : i64} {
  func.func @apa_kernel(%arg0: i32, %arg1: memref<32x32xf32, #tpu.memory_space<any>>, %arg2: memref<32x128xf32, #tpu.memory_space<vmem>>, %arg3: memref<32x128xf32, #tpu.memory_space<vmem>>, %arg4: memref<32x128xf32, #tpu.memory_space<vmem>>, %arg5: memref<32x128xf32, #tpu.memory_space<vmem>>, %arg6: memref<32x128xf32, #tpu.memory_space<vmem>>, %arg7: memref<32x32xf32, #tpu.memory_space<vmem>>) attributes {dimension_semantics = [#tpu.dimension_semantics<parallel>], iteration_bounds = array<i64: 1>, scalar_prefetch = 0 : i64, scratch_operands = 1 : i64, tpu.core_type = #tpu.core_type<tc>, window_params = [{}, {transform_indices = @transform_1, window_bounds = array<i64: 32, 128>}, {transform_indices = @transform_2, window_bounds = array<i64: 32, 128>}, {transform_indices = @transform_3, window_bounds = array<i64: 32, 128>}, {transform_indices = @transform_4, window_bounds = array<i64: 32, 128>}, {transform_indices = @transform_5, window_bounds = array<i64: 32, 128>}]} {
    "tpu.region"() ({
      %216 = tpu.sem_alloc : memref<!tpu.dma_semaphore, #tpu.memory_space<semaphore_mem>>
      tpu.enqueue_dma source(%arg1 : memref<32x32xf32, #tpu.memory_space<any>>) target(%arg7 : memref<32x32xf32, #tpu.memory_space<vmem>>) target_semaphore(%216 : memref<!tpu.dma_semaphore, #tpu.memory_space<semaphore_mem>>)
      tpu.wait_dma2 semaphore(%216 : memref<!tpu.dma_semaphore, #tpu.memory_space<semaphore_mem>>) src(%arg1 : memref<32x32xf32, #tpu.memory_space<any>>) dst(%arg7 : memref<32x32xf32, #tpu.memory_space<vmem>>)
      tpu.yield
    }) : () -> ()
    %c0 = arith.constant 0 : index
    %c0_0 = arith.constant 0 : index
    %0 = vector.load %arg7[%c0, %c0_0] : memref<32x32xf32, #tpu.memory_space<vmem>>, vector<32x32xf32>
    %c0_1 = arith.constant 0 : index
    %c0_2 = arith.constant 0 : index
    %1 = vector.load %arg3[%c0_1, %c0_2] : memref<32x128xf32, #tpu.memory_space<vmem>>, vector<32x128xf32>
    %c0_3 = arith.constant 0 : index
    %c0_4 = arith.constant 0 : index
    %2 = vector.load %arg4[%c0_3, %c0_4] : memref<32x128xf32, #tpu.memory_space<vmem>>, vector<32x128xf32>
    %c0_5 = arith.constant 0 : index
    %c0_6 = arith.constant 0 : index
    %3 = vector.load %arg5[%c0_5, %c0_6] : memref<32x128xf32, #tpu.memory_space<vmem>>, vector<32x128xf32>
    %c0_7 = arith.constant 0 : index
    %c0_8 = arith.constant 0 : index
    %4 = vector.load %arg2[%c0_7, %c0_8] : memref<32x128xf32, #tpu.memory_space<vmem>>, vector<32x128xf32>
    %c0_i32 = arith.constant 0 : i32
    %cst = arith.constant dense<0.000000e+00> : vector<32x128xf32>
    %5 = tpu.matmul %0, %4, %cst {dimension_numbers = #tpu.dot_dimension_numbers<[1], [0], [0], [1], [0, 0, 1, 1], [], []>} : vector<32x32xf32>, vector<32x128xf32>, vector<32x128xf32> -> vector<32x128xf32>
    %6 = vector.extract_strided_slice %5 {offsets = [16, 0], sizes = [8, 128], strides = [1, 1]} : vector<32x128xf32> to vector<8x128xf32>
    %7 = tpu.concatenate %6, %6, %6, %6 in 0 : vector<8x128xf32>, vector<8x128xf32>, vector<8x128xf32>, vector<8x128xf32> -> vector<32x128xf32>
    %8 = arith.mulf %1, %5 : vector<32x128xf32>
    %9 = arith.mulf %2, %7 : vector<32x128xf32>
    %10 = arith.addf %9, %3 : vector<32x128xf32>
    %11 = arith.addf %8, %10 : vector<32x128xf32>
    %c1_i32 = arith.constant 1 : i32
    %cst_9 = arith.constant dense<0.000000e+00> : vector<32x128xf32>
    %12 = tpu.matmul %0, %11, %cst_9 {dimension_numbers = #tpu.dot_dimension_numbers<[1], [0], [0], [1], [0, 0, 1, 1], [], []>} : vector<32x32xf32>, vector<32x128xf32>, vector<32x128xf32> -> vector<32x128xf32>
    %13 = vector.extract_strided_slice %12 {offsets = [16, 0], sizes = [8, 128], strides = [1, 1]} : vector<32x128xf32> to vector<8x128xf32>
    %14 = tpu.concatenate %13, %13, %13, %13 in 0 : vector<8x128xf32>, vector<8x128xf32>, vector<8x128xf32>, vector<8x128xf32> -> vector<32x128xf32>
    %15 = arith.mulf %1, %12 : vector<32x128xf32>
    %16 = arith.mulf %2, %14 : vector<32x128xf32>
    %17 = arith.addf %16, %3 : vector<32x128xf32>
    %18 = arith.addf %15, %17 : vector<32x128xf32>
    %c2_i32 = arith.constant 2 : i32
    %cst_10 = arith.constant dense<0.000000e+00> : vector<32x128xf32>
    %19 = tpu.matmul %0, %18, %cst_10 {dimension_numbers = #tpu.dot_dimension_numbers<[1], [0], [0], [1], [0, 0, 1, 1], [], []>} : vector<32x32xf32>, vector<32x128xf32>, vector<32x128xf32> -> vector<32x128xf32>
    %20 = vector.extract_strided_slice %19 {offsets = [16, 0], sizes = [8, 128], strides = [1, 1]} : vector<32x128xf32> to vector<8x128xf32>
    %21 = tpu.concatenate %20, %20, %20, %20 in 0 : vector<8x128xf32>, vector<8x128xf32>, vector<8x128xf32>, vector<8x128xf32> -> vector<32x128xf32>
    %22 = arith.mulf %1, %19 : vector<32x128xf32>
    %23 = arith.mulf %2, %21 : vector<32x128xf32>
    %24 = arith.addf %23, %3 : vector<32x128xf32>
    %25 = arith.addf %22, %24 : vector<32x128xf32>
    %c3_i32 = arith.constant 3 : i32
    %cst_11 = arith.constant dense<0.000000e+00> : vector<32x128xf32>
    %26 = tpu.matmul %0, %25, %cst_11 {dimension_numbers = #tpu.dot_dimension_numbers<[1], [0], [0], [1], [0, 0, 1, 1], [], []>} : vector<32x32xf32>, vector<32x128xf32>, vector<32x128xf32> -> vector<32x128xf32>
    %27 = vector.extract_strided_slice %26 {offsets = [16, 0], sizes = [8, 128], strides = [1, 1]} : vector<32x128xf32> to vector<8x128xf32>
    %28 = tpu.concatenate %27, %27, %27, %27 in 0 : vector<8x128xf32>, vector<8x128xf32>, vector<8x128xf32>, vector<8x128xf32> -> vector<32x128xf32>
    %29 = arith.mulf %1, %26 : vector<32x128xf32>
    %30 = arith.mulf %2, %28 : vector<32x128xf32>
    %31 = arith.addf %30, %3 : vector<32x128xf32>
    %32 = arith.addf %29, %31 : vector<32x128xf32>
    %c4_i32 = arith.constant 4 : i32
    %cst_12 = arith.constant dense<0.000000e+00> : vector<32x128xf32>
    %33 = tpu.matmul %0, %32, %cst_12 {dimension_numbers = #tpu.dot_dimension_numbers<[1], [0], [0], [1], [0, 0, 1, 1], [], []>} : vector<32x32xf32>, vector<32x128xf32>, vector<32x128xf32> -> vector<32x128xf32>
    %34 = vector.extract_strided_slice %33 {offsets = [16, 0], sizes = [8, 128], strides = [1, 1]} : vector<32x128xf32> to vector<8x128xf32>
    %35 = tpu.concatenate %34, %34, %34, %34 in 0 : vector<8x128xf32>, vector<8x128xf32>, vector<8x128xf32>, vector<8x128xf32> -> vector<32x128xf32>
    %36 = arith.mulf %1, %33 : vector<32x128xf32>
    %37 = arith.mulf %2, %35 : vector<32x128xf32>
    %38 = arith.addf %37, %3 : vector<32x128xf32>
    %39 = arith.addf %36, %38 : vector<32x128xf32>
    %c5_i32 = arith.constant 5 : i32
    %cst_13 = arith.constant dense<0.000000e+00> : vector<32x128xf32>
    %40 = tpu.matmul %0, %39, %cst_13 {dimension_numbers = #tpu.dot_dimension_numbers<[1], [0], [0], [1], [0, 0, 1, 1], [], []>} : vector<32x32xf32>, vector<32x128xf32>, vector<32x128xf32> -> vector<32x128xf32>
    %41 = vector.extract_strided_slice %40 {offsets = [16, 0], sizes = [8, 128], strides = [1, 1]} : vector<32x128xf32> to vector<8x128xf32>
    %42 = tpu.concatenate %41, %41, %41, %41 in 0 : vector<8x128xf32>, vector<8x128xf32>, vector<8x128xf32>, vector<8x128xf32> -> vector<32x128xf32>
    %43 = arith.mulf %1, %40 : vector<32x128xf32>
    %44 = arith.mulf %2, %42 : vector<32x128xf32>
    %45 = arith.addf %44, %3 : vector<32x128xf32>
    %46 = arith.addf %43, %45 : vector<32x128xf32>
    %c6_i32 = arith.constant 6 : i32
    %cst_14 = arith.constant dense<0.000000e+00> : vector<32x128xf32>
    %47 = tpu.matmul %0, %46, %cst_14 {dimension_numbers = #tpu.dot_dimension_numbers<[1], [0], [0], [1], [0, 0, 1, 1], [], []>} : vector<32x32xf32>, vector<32x128xf32>, vector<32x128xf32> -> vector<32x128xf32>
    %48 = vector.extract_strided_slice %47 {offsets = [16, 0], sizes = [8, 128], strides = [1, 1]} : vector<32x128xf32> to vector<8x128xf32>
    %49 = tpu.concatenate %48, %48, %48, %48 in 0 : vector<8x128xf32>, vector<8x128xf32>, vector<8x128xf32>, vector<8x128xf32> -> vector<32x128xf32>
    %50 = arith.mulf %1, %47 : vector<32x128xf32>
    %51 = arith.mulf %2, %49 : vector<32x128xf32>
    %52 = arith.addf %51, %3 : vector<32x128xf32>
    %53 = arith.addf %50, %52 : vector<32x128xf32>
    %c7_i32 = arith.constant 7 : i32
    %cst_15 = arith.constant dense<0.000000e+00> : vector<32x128xf32>
    %54 = tpu.matmul %0, %53, %cst_15 {dimension_numbers = #tpu.dot_dimension_numbers<[1], [0], [0], [1], [0, 0, 1, 1], [], []>} : vector<32x32xf32>, vector<32x128xf32>, vector<32x128xf32> -> vector<32x128xf32>
    %55 = vector.extract_strided_slice %54 {offsets = [16, 0], sizes = [8, 128], strides = [1, 1]} : vector<32x128xf32> to vector<8x128xf32>
    %56 = tpu.concatenate %55, %55, %55, %55 in 0 : vector<8x128xf32>, vector<8x128xf32>, vector<8x128xf32>, vector<8x128xf32> -> vector<32x128xf32>
    %57 = arith.mulf %1, %54 : vector<32x128xf32>
    %58 = arith.mulf %2, %56 : vector<32x128xf32>
    %59 = arith.addf %58, %3 : vector<32x128xf32>
    %60 = arith.addf %57, %59 : vector<32x128xf32>
    %c8_i32 = arith.constant 8 : i32
    %cst_16 = arith.constant dense<0.000000e+00> : vector<32x128xf32>
    %61 = tpu.matmul %0, %60, %cst_16 {dimension_numbers = #tpu.dot_dimension_numbers<[1], [0], [0], [1], [0, 0, 1, 1], [], []>} : vector<32x32xf32>, vector<32x128xf32>, vector<32x128xf32> -> vector<32x128xf32>
    %62 = vector.extract_strided_slice %61 {offsets = [16, 0], sizes = [8, 128], strides = [1, 1]} : vector<32x128xf32> to vector<8x128xf32>
    %63 = tpu.concatenate %62, %62, %62, %62 in 0 : vector<8x128xf32>, vector<8x128xf32>, vector<8x128xf32>, vector<8x128xf32> -> vector<32x128xf32>
    %64 = arith.mulf %1, %61 : vector<32x128xf32>
    %65 = arith.mulf %2, %63 : vector<32x128xf32>
    %66 = arith.addf %65, %3 : vector<32x128xf32>
    %67 = arith.addf %64, %66 : vector<32x128xf32>
    %c9_i32 = arith.constant 9 : i32
    %cst_17 = arith.constant dense<0.000000e+00> : vector<32x128xf32>
    %68 = tpu.matmul %0, %67, %cst_17 {dimension_numbers = #tpu.dot_dimension_numbers<[1], [0], [0], [1], [0, 0, 1, 1], [], []>} : vector<32x32xf32>, vector<32x128xf32>, vector<32x128xf32> -> vector<32x128xf32>
    %69 = vector.extract_strided_slice %68 {offsets = [16, 0], sizes = [8, 128], strides = [1, 1]} : vector<32x128xf32> to vector<8x128xf32>
    %70 = tpu.concatenate %69, %69, %69, %69 in 0 : vector<8x128xf32>, vector<8x128xf32>, vector<8x128xf32>, vector<8x128xf32> -> vector<32x128xf32>
    %71 = arith.mulf %1, %68 : vector<32x128xf32>
    %72 = arith.mulf %2, %70 : vector<32x128xf32>
    %73 = arith.addf %72, %3 : vector<32x128xf32>
    %74 = arith.addf %71, %73 : vector<32x128xf32>
    %c10_i32 = arith.constant 10 : i32
    %cst_18 = arith.constant dense<0.000000e+00> : vector<32x128xf32>
    %75 = tpu.matmul %0, %74, %cst_18 {dimension_numbers = #tpu.dot_dimension_numbers<[1], [0], [0], [1], [0, 0, 1, 1], [], []>} : vector<32x32xf32>, vector<32x128xf32>, vector<32x128xf32> -> vector<32x128xf32>
    %76 = vector.extract_strided_slice %75 {offsets = [16, 0], sizes = [8, 128], strides = [1, 1]} : vector<32x128xf32> to vector<8x128xf32>
    %77 = tpu.concatenate %76, %76, %76, %76 in 0 : vector<8x128xf32>, vector<8x128xf32>, vector<8x128xf32>, vector<8x128xf32> -> vector<32x128xf32>
    %78 = arith.mulf %1, %75 : vector<32x128xf32>
    %79 = arith.mulf %2, %77 : vector<32x128xf32>
    %80 = arith.addf %79, %3 : vector<32x128xf32>
    %81 = arith.addf %78, %80 : vector<32x128xf32>
    %c11_i32 = arith.constant 11 : i32
    %cst_19 = arith.constant dense<0.000000e+00> : vector<32x128xf32>
    %82 = tpu.matmul %0, %81, %cst_19 {dimension_numbers = #tpu.dot_dimension_numbers<[1], [0], [0], [1], [0, 0, 1, 1], [], []>} : vector<32x32xf32>, vector<32x128xf32>, vector<32x128xf32> -> vector<32x128xf32>
    %83 = vector.extract_strided_slice %82 {offsets = [16, 0], sizes = [8, 128], strides = [1, 1]} : vector<32x128xf32> to vector<8x128xf32>
    %84 = tpu.concatenate %83, %83, %83, %83 in 0 : vector<8x128xf32>, vector<8x128xf32>, vector<8x128xf32>, vector<8x128xf32> -> vector<32x128xf32>
    %85 = arith.mulf %1, %82 : vector<32x128xf32>
    %86 = arith.mulf %2, %84 : vector<32x128xf32>
    %87 = arith.addf %86, %3 : vector<32x128xf32>
    %88 = arith.addf %85, %87 : vector<32x128xf32>
    %c12_i32 = arith.constant 12 : i32
    %cst_20 = arith.constant dense<0.000000e+00> : vector<32x128xf32>
    %89 = tpu.matmul %0, %88, %cst_20 {dimension_numbers = #tpu.dot_dimension_numbers<[1], [0], [0], [1], [0, 0, 1, 1], [], []>} : vector<32x32xf32>, vector<32x128xf32>, vector<32x128xf32> -> vector<32x128xf32>
    %90 = vector.extract_strided_slice %89 {offsets = [16, 0], sizes = [8, 128], strides = [1, 1]} : vector<32x128xf32> to vector<8x128xf32>
    %91 = tpu.concatenate %90, %90, %90, %90 in 0 : vector<8x128xf32>, vector<8x128xf32>, vector<8x128xf32>, vector<8x128xf32> -> vector<32x128xf32>
    %92 = arith.mulf %1, %89 : vector<32x128xf32>
    %93 = arith.mulf %2, %91 : vector<32x128xf32>
    %94 = arith.addf %93, %3 : vector<32x128xf32>
    %95 = arith.addf %92, %94 : vector<32x128xf32>
    %c13_i32 = arith.constant 13 : i32
    %cst_21 = arith.constant dense<0.000000e+00> : vector<32x128xf32>
    %96 = tpu.matmul %0, %95, %cst_21 {dimension_numbers = #tpu.dot_dimension_numbers<[1], [0], [0], [1], [0, 0, 1, 1], [], []>} : vector<32x32xf32>, vector<32x128xf32>, vector<32x128xf32> -> vector<32x128xf32>
    %97 = vector.extract_strided_slice %96 {offsets = [16, 0], sizes = [8, 128], strides = [1, 1]} : vector<32x128xf32> to vector<8x128xf32>
    %98 = tpu.concatenate %97, %97, %97, %97 in 0 : vector<8x128xf32>, vector<8x128xf32>, vector<8x128xf32>, vector<8x128xf32> -> vector<32x128xf32>
    %99 = arith.mulf %1, %96 : vector<32x128xf32>
    %100 = arith.mulf %2, %98 : vector<32x128xf32>
    %101 = arith.addf %100, %3 : vector<32x128xf32>
    %102 = arith.addf %99, %101 : vector<32x128xf32>
    %c14_i32 = arith.constant 14 : i32
    %cst_22 = arith.constant dense<0.000000e+00> : vector<32x128xf32>
    %103 = tpu.matmul %0, %102, %cst_22 {dimension_numbers = #tpu.dot_dimension_numbers<[1], [0], [0], [1], [0, 0, 1, 1], [], []>} : vector<32x32xf32>, vector<32x128xf32>, vector<32x128xf32> -> vector<32x128xf32>
    %104 = vector.extract_strided_slice %103 {offsets = [16, 0], sizes = [8, 128], strides = [1, 1]} : vector<32x128xf32> to vector<8x128xf32>
    %105 = tpu.concatenate %104, %104, %104, %104 in 0 : vector<8x128xf32>, vector<8x128xf32>, vector<8x128xf32>, vector<8x128xf32> -> vector<32x128xf32>
    %106 = arith.mulf %1, %103 : vector<32x128xf32>
    %107 = arith.mulf %2, %105 : vector<32x128xf32>
    %108 = arith.addf %107, %3 : vector<32x128xf32>
    %109 = arith.addf %106, %108 : vector<32x128xf32>
    %c15_i32 = arith.constant 15 : i32
    %cst_23 = arith.constant dense<0.000000e+00> : vector<32x128xf32>
    %110 = tpu.matmul %0, %109, %cst_23 {dimension_numbers = #tpu.dot_dimension_numbers<[1], [0], [0], [1], [0, 0, 1, 1], [], []>} : vector<32x32xf32>, vector<32x128xf32>, vector<32x128xf32> -> vector<32x128xf32>
    %111 = vector.extract_strided_slice %110 {offsets = [16, 0], sizes = [8, 128], strides = [1, 1]} : vector<32x128xf32> to vector<8x128xf32>
    %112 = tpu.concatenate %111, %111, %111, %111 in 0 : vector<8x128xf32>, vector<8x128xf32>, vector<8x128xf32>, vector<8x128xf32> -> vector<32x128xf32>
    %113 = arith.mulf %1, %110 : vector<32x128xf32>
    %114 = arith.mulf %2, %112 : vector<32x128xf32>
    %115 = arith.addf %114, %3 : vector<32x128xf32>
    %116 = arith.addf %113, %115 : vector<32x128xf32>
    %c16_i32 = arith.constant 16 : i32
    %cst_24 = arith.constant dense<0.000000e+00> : vector<32x128xf32>
    %117 = tpu.matmul %0, %116, %cst_24 {dimension_numbers = #tpu.dot_dimension_numbers<[1], [0], [0], [1], [0, 0, 1, 1], [], []>} : vector<32x32xf32>, vector<32x128xf32>, vector<32x128xf32> -> vector<32x128xf32>
    %118 = vector.extract_strided_slice %117 {offsets = [16, 0], sizes = [8, 128], strides = [1, 1]} : vector<32x128xf32> to vector<8x128xf32>
    %119 = tpu.concatenate %118, %118, %118, %118 in 0 : vector<8x128xf32>, vector<8x128xf32>, vector<8x128xf32>, vector<8x128xf32> -> vector<32x128xf32>
    %120 = arith.mulf %1, %117 : vector<32x128xf32>
    %121 = arith.mulf %2, %119 : vector<32x128xf32>
    %122 = arith.addf %121, %3 : vector<32x128xf32>
    %123 = arith.addf %120, %122 : vector<32x128xf32>
    %c17_i32 = arith.constant 17 : i32
    %cst_25 = arith.constant dense<0.000000e+00> : vector<32x128xf32>
    %124 = tpu.matmul %0, %123, %cst_25 {dimension_numbers = #tpu.dot_dimension_numbers<[1], [0], [0], [1], [0, 0, 1, 1], [], []>} : vector<32x32xf32>, vector<32x128xf32>, vector<32x128xf32> -> vector<32x128xf32>
    %125 = vector.extract_strided_slice %124 {offsets = [16, 0], sizes = [8, 128], strides = [1, 1]} : vector<32x128xf32> to vector<8x128xf32>
    %126 = tpu.concatenate %125, %125, %125, %125 in 0 : vector<8x128xf32>, vector<8x128xf32>, vector<8x128xf32>, vector<8x128xf32> -> vector<32x128xf32>
    %127 = arith.mulf %1, %124 : vector<32x128xf32>
    %128 = arith.mulf %2, %126 : vector<32x128xf32>
    %129 = arith.addf %128, %3 : vector<32x128xf32>
    %130 = arith.addf %127, %129 : vector<32x128xf32>
    %c18_i32 = arith.constant 18 : i32
    %cst_26 = arith.constant dense<0.000000e+00> : vector<32x128xf32>
    %131 = tpu.matmul %0, %130, %cst_26 {dimension_numbers = #tpu.dot_dimension_numbers<[1], [0], [0], [1], [0, 0, 1, 1], [], []>} : vector<32x32xf32>, vector<32x128xf32>, vector<32x128xf32> -> vector<32x128xf32>
    %132 = vector.extract_strided_slice %131 {offsets = [16, 0], sizes = [8, 128], strides = [1, 1]} : vector<32x128xf32> to vector<8x128xf32>
    %133 = tpu.concatenate %132, %132, %132, %132 in 0 : vector<8x128xf32>, vector<8x128xf32>, vector<8x128xf32>, vector<8x128xf32> -> vector<32x128xf32>
    %134 = arith.mulf %1, %131 : vector<32x128xf32>
    %135 = arith.mulf %2, %133 : vector<32x128xf32>
    %136 = arith.addf %135, %3 : vector<32x128xf32>
    %137 = arith.addf %134, %136 : vector<32x128xf32>
    %c19_i32 = arith.constant 19 : i32
    %cst_27 = arith.constant dense<0.000000e+00> : vector<32x128xf32>
    %138 = tpu.matmul %0, %137, %cst_27 {dimension_numbers = #tpu.dot_dimension_numbers<[1], [0], [0], [1], [0, 0, 1, 1], [], []>} : vector<32x32xf32>, vector<32x128xf32>, vector<32x128xf32> -> vector<32x128xf32>
    %139 = vector.extract_strided_slice %138 {offsets = [16, 0], sizes = [8, 128], strides = [1, 1]} : vector<32x128xf32> to vector<8x128xf32>
    %140 = tpu.concatenate %139, %139, %139, %139 in 0 : vector<8x128xf32>, vector<8x128xf32>, vector<8x128xf32>, vector<8x128xf32> -> vector<32x128xf32>
    %141 = arith.mulf %1, %138 : vector<32x128xf32>
    %142 = arith.mulf %2, %140 : vector<32x128xf32>
    %143 = arith.addf %142, %3 : vector<32x128xf32>
    %144 = arith.addf %141, %143 : vector<32x128xf32>
    %c20_i32 = arith.constant 20 : i32
    %cst_28 = arith.constant dense<0.000000e+00> : vector<32x128xf32>
    %145 = tpu.matmul %0, %144, %cst_28 {dimension_numbers = #tpu.dot_dimension_numbers<[1], [0], [0], [1], [0, 0, 1, 1], [], []>} : vector<32x32xf32>, vector<32x128xf32>, vector<32x128xf32> -> vector<32x128xf32>
    %146 = vector.extract_strided_slice %145 {offsets = [16, 0], sizes = [8, 128], strides = [1, 1]} : vector<32x128xf32> to vector<8x128xf32>
    %147 = tpu.concatenate %146, %146, %146, %146 in 0 : vector<8x128xf32>, vector<8x128xf32>, vector<8x128xf32>, vector<8x128xf32> -> vector<32x128xf32>
    %148 = arith.mulf %1, %145 : vector<32x128xf32>
    %149 = arith.mulf %2, %147 : vector<32x128xf32>
    %150 = arith.addf %149, %3 : vector<32x128xf32>
    %151 = arith.addf %148, %150 : vector<32x128xf32>
    %c21_i32 = arith.constant 21 : i32
    %cst_29 = arith.constant dense<0.000000e+00> : vector<32x128xf32>
    %152 = tpu.matmul %0, %151, %cst_29 {dimension_numbers = #tpu.dot_dimension_numbers<[1], [0], [0], [1], [0, 0, 1, 1], [], []>} : vector<32x32xf32>, vector<32x128xf32>, vector<32x128xf32> -> vector<32x128xf32>
    %153 = vector.extract_strided_slice %152 {offsets = [16, 0], sizes = [8, 128], strides = [1, 1]} : vector<32x128xf32> to vector<8x128xf32>
    %154 = tpu.concatenate %153, %153, %153, %153 in 0 : vector<8x128xf32>, vector<8x128xf32>, vector<8x128xf32>, vector<8x128xf32> -> vector<32x128xf32>
    %155 = arith.mulf %1, %152 : vector<32x128xf32>
    %156 = arith.mulf %2, %154 : vector<32x128xf32>
    %157 = arith.addf %156, %3 : vector<32x128xf32>
    %158 = arith.addf %155, %157 : vector<32x128xf32>
    %c22_i32 = arith.constant 22 : i32
    %cst_30 = arith.constant dense<0.000000e+00> : vector<32x128xf32>
    %159 = tpu.matmul %0, %158, %cst_30 {dimension_numbers = #tpu.dot_dimension_numbers<[1], [0], [0], [1], [0, 0, 1, 1], [], []>} : vector<32x32xf32>, vector<32x128xf32>, vector<32x128xf32> -> vector<32x128xf32>
    %160 = vector.extract_strided_slice %159 {offsets = [16, 0], sizes = [8, 128], strides = [1, 1]} : vector<32x128xf32> to vector<8x128xf32>
    %161 = tpu.concatenate %160, %160, %160, %160 in 0 : vector<8x128xf32>, vector<8x128xf32>, vector<8x128xf32>, vector<8x128xf32> -> vector<32x128xf32>
    %162 = arith.mulf %1, %159 : vector<32x128xf32>
    %163 = arith.mulf %2, %161 : vector<32x128xf32>
    %164 = arith.addf %163, %3 : vector<32x128xf32>
    %165 = arith.addf %162, %164 : vector<32x128xf32>
    %c23_i32 = arith.constant 23 : i32
    %cst_31 = arith.constant dense<0.000000e+00> : vector<32x128xf32>
    %166 = tpu.matmul %0, %165, %cst_31 {dimension_numbers = #tpu.dot_dimension_numbers<[1], [0], [0], [1], [0, 0, 1, 1], [], []>} : vector<32x32xf32>, vector<32x128xf32>, vector<32x128xf32> -> vector<32x128xf32>
    %167 = vector.extract_strided_slice %166 {offsets = [16, 0], sizes = [8, 128], strides = [1, 1]} : vector<32x128xf32> to vector<8x128xf32>
    %168 = tpu.concatenate %167, %167, %167, %167 in 0 : vector<8x128xf32>, vector<8x128xf32>, vector<8x128xf32>, vector<8x128xf32> -> vector<32x128xf32>
    %169 = arith.mulf %1, %166 : vector<32x128xf32>
    %170 = arith.mulf %2, %168 : vector<32x128xf32>
    %171 = arith.addf %170, %3 : vector<32x128xf32>
    %172 = arith.addf %169, %171 : vector<32x128xf32>
    %c24_i32 = arith.constant 24 : i32
    %cst_32 = arith.constant dense<0.000000e+00> : vector<32x128xf32>
    %173 = tpu.matmul %0, %172, %cst_32 {dimension_numbers = #tpu.dot_dimension_numbers<[1], [0], [0], [1], [0, 0, 1, 1], [], []>} : vector<32x32xf32>, vector<32x128xf32>, vector<32x128xf32> -> vector<32x128xf32>
    %174 = vector.extract_strided_slice %173 {offsets = [16, 0], sizes = [8, 128], strides = [1, 1]} : vector<32x128xf32> to vector<8x128xf32>
    %175 = tpu.concatenate %174, %174, %174, %174 in 0 : vector<8x128xf32>, vector<8x128xf32>, vector<8x128xf32>, vector<8x128xf32> -> vector<32x128xf32>
    %176 = arith.mulf %1, %173 : vector<32x128xf32>
    %177 = arith.mulf %2, %175 : vector<32x128xf32>
    %178 = arith.addf %177, %3 : vector<32x128xf32>
    %179 = arith.addf %176, %178 : vector<32x128xf32>
    %c25_i32 = arith.constant 25 : i32
    %cst_33 = arith.constant dense<0.000000e+00> : vector<32x128xf32>
    %180 = tpu.matmul %0, %179, %cst_33 {dimension_numbers = #tpu.dot_dimension_numbers<[1], [0], [0], [1], [0, 0, 1, 1], [], []>} : vector<32x32xf32>, vector<32x128xf32>, vector<32x128xf32> -> vector<32x128xf32>
    %181 = vector.extract_strided_slice %180 {offsets = [16, 0], sizes = [8, 128], strides = [1, 1]} : vector<32x128xf32> to vector<8x128xf32>
    %182 = tpu.concatenate %181, %181, %181, %181 in 0 : vector<8x128xf32>, vector<8x128xf32>, vector<8x128xf32>, vector<8x128xf32> -> vector<32x128xf32>
    %183 = arith.mulf %1, %180 : vector<32x128xf32>
    %184 = arith.mulf %2, %182 : vector<32x128xf32>
    %185 = arith.addf %184, %3 : vector<32x128xf32>
    %186 = arith.addf %183, %185 : vector<32x128xf32>
    %c26_i32 = arith.constant 26 : i32
    %cst_34 = arith.constant dense<0.000000e+00> : vector<32x128xf32>
    %187 = tpu.matmul %0, %186, %cst_34 {dimension_numbers = #tpu.dot_dimension_numbers<[1], [0], [0], [1], [0, 0, 1, 1], [], []>} : vector<32x32xf32>, vector<32x128xf32>, vector<32x128xf32> -> vector<32x128xf32>
    %188 = vector.extract_strided_slice %187 {offsets = [16, 0], sizes = [8, 128], strides = [1, 1]} : vector<32x128xf32> to vector<8x128xf32>
    %189 = tpu.concatenate %188, %188, %188, %188 in 0 : vector<8x128xf32>, vector<8x128xf32>, vector<8x128xf32>, vector<8x128xf32> -> vector<32x128xf32>
    %190 = arith.mulf %1, %187 : vector<32x128xf32>
    %191 = arith.mulf %2, %189 : vector<32x128xf32>
    %192 = arith.addf %191, %3 : vector<32x128xf32>
    %193 = arith.addf %190, %192 : vector<32x128xf32>
    %c27_i32 = arith.constant 27 : i32
    %cst_35 = arith.constant dense<0.000000e+00> : vector<32x128xf32>
    %194 = tpu.matmul %0, %193, %cst_35 {dimension_numbers = #tpu.dot_dimension_numbers<[1], [0], [0], [1], [0, 0, 1, 1], [], []>} : vector<32x32xf32>, vector<32x128xf32>, vector<32x128xf32> -> vector<32x128xf32>
    %195 = vector.extract_strided_slice %194 {offsets = [16, 0], sizes = [8, 128], strides = [1, 1]} : vector<32x128xf32> to vector<8x128xf32>
    %196 = tpu.concatenate %195, %195, %195, %195 in 0 : vector<8x128xf32>, vector<8x128xf32>, vector<8x128xf32>, vector<8x128xf32> -> vector<32x128xf32>
    %197 = arith.mulf %1, %194 : vector<32x128xf32>
    %198 = arith.mulf %2, %196 : vector<32x128xf32>
    %199 = arith.addf %198, %3 : vector<32x128xf32>
    %200 = arith.addf %197, %199 : vector<32x128xf32>
    %c28_i32 = arith.constant 28 : i32
    %cst_36 = arith.constant dense<0.000000e+00> : vector<32x128xf32>
    %201 = tpu.matmul %0, %200, %cst_36 {dimension_numbers = #tpu.dot_dimension_numbers<[1], [0], [0], [1], [0, 0, 1, 1], [], []>} : vector<32x32xf32>, vector<32x128xf32>, vector<32x128xf32> -> vector<32x128xf32>
    %202 = vector.extract_strided_slice %201 {offsets = [16, 0], sizes = [8, 128], strides = [1, 1]} : vector<32x128xf32> to vector<8x128xf32>
    %203 = tpu.concatenate %202, %202, %202, %202 in 0 : vector<8x128xf32>, vector<8x128xf32>, vector<8x128xf32>, vector<8x128xf32> -> vector<32x128xf32>
    %204 = arith.mulf %1, %201 : vector<32x128xf32>
    %205 = arith.mulf %2, %203 : vector<32x128xf32>
    %206 = arith.addf %205, %3 : vector<32x128xf32>
    %207 = arith.addf %204, %206 : vector<32x128xf32>
    %c29_i32 = arith.constant 29 : i32
    %cst_37 = arith.constant dense<0.000000e+00> : vector<32x128xf32>
    %208 = tpu.matmul %0, %207, %cst_37 {dimension_numbers = #tpu.dot_dimension_numbers<[1], [0], [0], [1], [0, 0, 1, 1], [], []>} : vector<32x32xf32>, vector<32x128xf32>, vector<32x128xf32> -> vector<32x128xf32>
    %209 = vector.extract_strided_slice %208 {offsets = [16, 0], sizes = [8, 128], strides = [1, 1]} : vector<32x128xf32> to vector<8x128xf32>
    %210 = tpu.concatenate %209, %209, %209, %209 in 0 : vector<8x128xf32>, vector<8x128xf32>, vector<8x128xf32>, vector<8x128xf32> -> vector<32x128xf32>
    %211 = arith.mulf %1, %208 : vector<32x128xf32>
    %212 = arith.mulf %2, %210 : vector<32x128xf32>
    %213 = arith.addf %212, %3 : vector<32x128xf32>
    %214 = arith.addf %211, %213 : vector<32x128xf32>
    %c0_38 = arith.constant 0 : index
    %c0_39 = arith.constant 0 : index
    %215 = vector.load %arg6[%c0_38, %c0_39] : memref<32x128xf32, #tpu.memory_space<vmem>>, vector<32x128xf32>
    tpu.vector_store %arg6[%c0_38, %c0_39], %214 {strides = array<i32>} : memref<32x128xf32, #tpu.memory_space<vmem>>, vector<32x128xf32>,
    return
  }
  func.func @transform_1(%arg0: i32) -> (i32, i32) {
    %c0_i32 = arith.constant 0 : i32
    %c0_i32_0 = arith.constant 0 : i32
    return %c0_i32, %arg0 : i32, i32
  }
  func.func @transform_2(%arg0: i32) -> (i32, i32) {
    %c0_i32 = arith.constant 0 : i32
    %c0_i32_0 = arith.constant 0 : i32
    return %c0_i32, %arg0 : i32, i32
  }
  func.func @transform_3(%arg0: i32) -> (i32, i32) {
    %c0_i32 = arith.constant 0 : i32
    %c0_i32_0 = arith.constant 0 : i32
    return %c0_i32, %arg0 : i32, i32
  }
  func.func @transform_4(%arg0: i32) -> (i32, i32) {
    %c0_i32 = arith.constant 0 : i32
    %c0_i32_0 = arith.constant 0 : i32
    return %c0_i32, %arg0 : i32, i32
  }
  func.func @transform_5(%arg0: i32) -> (i32, i32) {
    %c0_i32 = arith.constant 0 : i32
    %c0_i32_0 = arith.constant 0 : i32
    return %c0_i32, %arg0 : i32, i32
  }
}

</mosaic_0001>

<llo_original>
// kernel: tpu_custom_call.1
$region0: #{tpu_custom_call.1}
  #allocation0 [shape = 'u32[]', space=smem, size = 0x4, offset = 0x4, fixed_abs, tag = 'smem constant byte address 0x4 - core index']
  #allocation1 [shape = 'u32[144,128]{1,0:T(1,128)}', space=vmem, size = 0x12000, scoped, tag = 'internal scratch']
  #allocation2 [shape = 'f32[32,32]{1,0:T(8,128)}', space=vmem, size = 0x4000, scoped, tag = 'scratch operand']
  #allocation13 [shape = 's32[]', space=sflag, size = 0x4, offset = 0, fixed_abs, tag = 'sflag constant byte address 0x0 - dummy sync flag']
  #allocation14 [shape = 's32[]', space=sflag, size = 0x4, offset = 0, fixed_abs, tag = 'sflag constant byte address 0x0 - dummy sync flag']
  #allocation15 [shape = 'u32[]', space=smem, size = 0x4, offset = 0x44, fixed_abs, tag = 'smem constant byte address 0x44 - assertion arg 0']
  #allocation16 [shape = 'u32[]', space=smem, size = 0x4, offset = 0x48, fixed_abs, tag = 'smem constant byte address 0x48 - assertion arg 1']
  %s0 = inlined_call_operand.hbm [shape: f32[32,32], index: 0, kind: input, shape index: {}]
  %s1 = inlined_call_operand.hbm [shape: f32[32,128], index: 1, kind: input, shape index: {}]
  %s2 = inlined_call_operand.hbm [shape: f32[32,128], index: 2, kind: input, shape index: {}]
  %s3 = inlined_call_operand.hbm [shape: f32[32,128], index: 3, kind: input, shape index: {}]
  %s4 = inlined_call_operand.hbm [shape: f32[32,128], index: 4, kind: input, shape index: {}]
  %s5 = inlined_call_operand.hbm [shape: f32[32,128], index: 5, kind: output, shape index: {}]
  %s6 = sld [smem:[#allocation0]]
  $region47: #{tpu_custom_call.1} parent=0
    _
  %s8 = ssub.s32 1, %s6
  %s9 = scalar_select 0, %s8, %s6
  $region1: #{tpu_custom_call.1} parent=0
    #allocation3 [shape = 'u8[16384]{0}', space=vmem, size = 0x4000, scoped, tag = 'input window, operand 1, single buffered']
    #allocation4 [shape = 's32[1]{0}', space=sflag, size = 0x4, scoped, tag = 'scoped memory for tpu_custom_call.1']
    #allocation5 [shape = 's32[1]{0}', space=sflag, size = 0x4, scoped, tag = 'scoped memory for tpu_custom_call.1']
    #allocation6 [shape = 'u8[16384]{0}', space=vmem, size = 0x4000, scoped, tag = 'input window, operand 2, single buffered']
    #allocation7 [shape = 's32[1]{0}', space=sflag, size = 0x4, scoped, tag = 'scoped memory for tpu_custom_call.1']
    #allocation8 [shape = 'u8[16384]{0}', space=vmem, size = 0x4000, scoped, tag = 'input window, operand 3, single buffered']
    #allocation9 [shape = 'u8[16384]{0}', space=vmem, size = 0x4000, scoped, tag = 'input window, operand 4, single buffered']
    #allocation10 [shape = 's32[1]{0}', space=sflag, size = 0x4, scoped, tag = 'scoped memory for tpu_custom_call.1']
    #allocation11 [shape = 'u8[16384]{0}', space=vmem, size = 0x4000, scoped, tag = 'output window, operand 0, single buffered']
    %10 = vsyncpa [#allocation4], 0
    %11 = vsyncpa [#allocation7], 0
    %12 = vsyncpa [#allocation10], 0
    %13 = vsyncpa [#allocation5], 0
    // Predicated region
    $region2: #{tpu_custom_call.1} parent=1 // pred_check
      _
    $region3: #{tpu_custom_call.1} parent=1 // pred_check_branch
      %15 = sbr.rel (0) target = $region5
    $region4: #{tpu_custom_call.1} parent=1 // pred_region
      %s17 = ssub.s32 512, 512
      %18 = vsyncadd [#allocation4], %s17
      %s19 = sshll.u32 [#allocation3], 4
      %s20 = int_to_ptr.vmem [resolvable:$true] %s19
      %25 = dma.hbm_to_vmem [thread:$0]  %s1, 512, %s20, [#allocation4], 128, 128, 8
    $region5: #{tpu_custom_call.1} parent=1 // pred_fallthru
      _
    // Predicated region
    $region6: #{tpu_custom_call.1} parent=1 // pred_check
      _
    $region7: #{tpu_custom_call.1} parent=1 // pred_check_branch
      %27 = sbr.rel (0) target = $region9
    $region8: #{tpu_custom_call.1} parent=1 // pred_region
      %s29 = ssub.s32 512, 512
      %30 = vsyncadd [#allocation7], %s29
      %s31 = sshll.u32 [#allocation6], 4
      %s32 = int_to_ptr.vmem [resolvable:$true] %s31
      %37 = dma.hbm_to_vmem [thread:$0]  %s2, 512, %s32, [#allocation7], 128, 128, 8
    $region9: #{tpu_custom_call.1} parent=1 // pred_fallthru
      _
    // Predicated region
    $region10: #{tpu_custom_call.1} parent=1 // pred_check
      _
    $region11: #{tpu_custom_call.1} parent=1 // pred_check_branch
      %39 = sbr.rel (0) target = $region13
    $region12: #{tpu_custom_call.1} parent=1 // pred_region
      %s41 = ssub.s32 512, 512
      %42 = vsyncadd [#allocation7], %s41
      %s43 = sshll.u32 [#allocation8], 4
      %s44 = int_to_ptr.vmem [resolvable:$true] %s43
      %49 = dma.hbm_to_vmem [thread:$0]  %s3, 512, %s44, [#allocation7], 128, 128, 8
    $region13: #{tpu_custom_call.1} parent=1 // pred_fallthru
      _
    // Predicated region
    $region14: #{tpu_custom_call.1} parent=1 // pred_check
      _
    $region15: #{tpu_custom_call.1} parent=1 // pred_check_branch
      %51 = sbr.rel (0) target = $region17
    $region16: #{tpu_custom_call.1} parent=1 // pred_region
      %s53 = ssub.s32 512, 512
      %54 = vsyncadd [#allocation10], %s53
      %s55 = sshll.u32 [#allocation9], 4
      %s56 = int_to_ptr.vmem [resolvable:$true] %s55
      %61 = dma.hbm_to_vmem [thread:$0]  %s4, 512, %s56, [#allocation10], 128, 128, 8
    $region17: #{tpu_custom_call.1} parent=1 // pred_fallthru
      _
    // Predicated region
    $region18: #{tpu_custom_call.1} parent=1 // pred_check
      _
    $region19: #{tpu_custom_call.1} parent=1 // pred_check_branch
      %63 = sbr.rel (0) target = $region21
    $region20: #{tpu_custom_call.1} parent=1 // pred_region
      %64 = dma.done [#allocation4], 512
    $region21: #{tpu_custom_call.1} parent=1 // pred_fallthru
      _
    // Predicated region
    $region22: #{tpu_custom_call.1} parent=1 // pred_check
      _
    $region23: #{tpu_custom_call.1} parent=1 // pred_check_branch
      %66 = sbr.rel (0) target = $region25
    $region24: #{tpu_custom_call.1} parent=1 // pred_region
      %67 = dma.done [#allocation7], 512
    $region25: #{tpu_custom_call.1} parent=1 // pred_fallthru
      _
    // Predicated region
    $region26: #{tpu_custom_call.1} parent=1 // pred_check
      _
    $region27: #{tpu_custom_call.1} parent=1 // pred_check_branch
      %69 = sbr.rel (0) target = $region29
    $region28: #{tpu_custom_call.1} parent=1 // pred_region
      %70 = dma.done [#allocation7], 512
    $region29: #{tpu_custom_call.1} parent=1 // pred_fallthru
      _
    // Predicated region
    $region30: #{tpu_custom_call.1} parent=1 // pred_check
      _
    $region31: #{tpu_custom_call.1} parent=1 // pred_check_branch
      %72 = sbr.rel (0) target = $region33
    $region32: #{tpu_custom_call.1} parent=1 // pred_region
      %73 = dma.done [#allocation10], 512
    $region33: #{tpu_custom_call.1} parent=1 // pred_fallthru
      _
    $region34: #{tpu_custom_call.1} parent=1
      #allocation12 [shape = 's32[1]{0}', space=sflag, size = 0x4, scoped, tag = 'scoped memory for tpu_custom_call.1']
      // Predicated region
      $region35: #{tpu_custom_call.1} parent=34 // pred_check
        _
      $region36: #{tpu_custom_call.1} parent=34 // pred_check_branch
        %75 = sbr.rel target = $region38
      $region37: #{tpu_custom_call.1} parent=34 // pred_region
        %76 = sst [smem:[#allocation15]] [#allocation14]
        %77 = sst [smem:[#allocation16]] [#allocation13]
      $region38: #{tpu_custom_call.1} parent=34 // pred_fallthru
        _
      %79 = shalt.err (0)
      %s81 = sshll.u32 [#allocation2], 4
      %s82 = int_to_ptr.vmem [resolvable:$true] %s81
      %84 = dma.hbm_to_vmem [thread:$0]  %s0, 512, %s82, [#allocation12]
      %s85 = smul.u32 32, 1
      %s86 = sshll.u32 %s85, 4
      %87 = dma.done [#allocation12], %s86
    %v88 = vld [vmem:[#allocation2] sm:$0xff]
    %v89 = vld [vmem:[#allocation2 + $0x8] sm:$0xff]
    %v90 = vld [vmem:[#allocation2 + $0x10] sm:$0xff]
    %v91 = vld [vmem:[#allocation2 + $0x18] sm:$0xff]
    %v92 = vld [vmem:[#allocation6] sm:$0xff]
    %v93 = vld [vmem:[#allocation6 + $0x8] sm:$0xff]
    %v94 = vld [vmem:[#allocation6 + $0x10] sm:$0xff]
    %v95 = vld [vmem:[#allocation6 + $0x18] sm:$0xff]
    %v96 = vld [vmem:[#allocation8] sm:$0xff]
    %v97 = vld [vmem:[#allocation8 + $0x8] sm:$0xff]
    %v98 = vld [vmem:[#allocation8 + $0x10] sm:$0xff]
    %v99 = vld [vmem:[#allocation8 + $0x18] sm:$0xff]
    %v100 = vld [vmem:[#allocation9] sm:$0xff]
    %v101 = vld [vmem:[#allocation9 + $0x8] sm:$0xff]
    %v102 = vld [vmem:[#allocation9 + $0x10] sm:$0xff]
    %v103 = vld [vmem:[#allocation9 + $0x18] sm:$0xff]
    %v104 = vld [vmem:[#allocation3] sm:$0xff]
    %v105 = vld [vmem:[#allocation3 + $0x8] sm:$0xff]
    %v106 = vld [vmem:[#allocation3 + $0x10] sm:$0xff]
    %v107 = vld [vmem:[#allocation3 + $0x18] sm:$0xff]
    %vm108 = vcmask 261120
    %v110 = vsel %vm108, %v88, 0
    %v113 = vsel %vm108, %v89, 0
    %v116 = vsel %vm108, %v90, 0
    %v119 = vsel %vm108, %v91, 0
    %121 = vmatprep.subr.mxu0 0.0
    %122 = vmatpush1.msra.mxu0 %v104
    %123 = vmatprep.subr.mxu0 0.0
    %124 = vmatpush1.msra.mxu0 %v105
    %125 = vmatprep.subr.mxu0 0.0
    %126 = vmatpush1.msra.mxu0 %v106
    %127 = vmatprep.subr.mxu0 0.0
    %128 = vmatpush1.msra.mxu0 %v107
    %129 = vmatprep.subr.mxu0 0.0
    %130 = vmatpush1.msra.mxu0 0.0
    %131 = vmatprep.subr.mxu0 0.0
    %132 = vmatpush1.msra.mxu0 0.0
    %133 = vmatprep.subr.mxu0 0.0
    %134 = vmatpush1.msra.mxu0 0.0
    %135 = vmatprep.subr.mxu0 0.0
    %136 = vmatpush1.msra.mxu0 0.0
    %137 = vmatprep.subr.mxu0 0.0
    %138 = vmatpush1.msra.mxu0 0.0
    %139 = vmatprep.subr.mxu0 0.0
    %140 = vmatpush1.msra.mxu0 0.0
    %141 = vmatprep.subr.mxu0 0.0
    %142 = vmatpush1.msra.mxu0 0.0
    %143 = vmatprep.subr.mxu0 0.0
    %144 = vmatpush1.msra.mxu0 0.0
    %145 = vmatprep.subr.mxu0 0.0
    %146 = vmatpush1.msra.mxu0 0.0
    %147 = vmatprep.subr.mxu0 0.0
    %148 = vmatpush1.msra.mxu0 0.0
    %149 = vmatprep.subr.mxu0 0.0
    %150 = vmatpush1.msra.mxu0 0.0
    %151 = vmatprep.subr.mxu0 0.0
    %152 = vmatpush1.msra.mxu0 0.0
    %153 = vmatprep.subr.mxu0 0.0
    %154 = vmatpush1.msra.mxu0 0.0
    %155 = vmatprep.subr.mxu0 0.0
    %156 = vmatpush1.msra.mxu0 0.0
    %157 = vmatprep.subr.mxu0 0.0
    %158 = vmatpush1.msra.mxu0 0.0
    %159 = vmatprep.subr.mxu0 0.0
    %160 = vmatpush1.msra.mxu0 0.0
    %161 = vmatprep.subr.mxu0 0.0
    %162 = vmatpush1.msra.mxu0 0.0
    %163 = vmatprep.subr.mxu0 0.0
    %164 = vmatpush1.msra.mxu0 0.0
    %165 = vmatprep.subr.mxu0 0.0
    %166 = vmatpush1.msra.mxu0 0.0
    %167 = vmatprep.subr.mxu0 0.0
    %168 = vmatpush1.msra.mxu0 0.0
    %169 = vmatprep.subr.mxu0 0.0
    %170 = vmatpush1.msra.mxu0 0.0
    %171 = vmatprep.subr.mxu0 0.0
    %172 = vmatpush1.msra.mxu0 0.0
    %173 = vmatprep.subr.mxu0 0.0
    %174 = vmatpush1.msra.mxu0 0.0
    %175 = vmatprep.subr.mxu0 0.0
    %176 = vmatpush1.msra.mxu0 0.0
    %177 = vmatprep.subr.mxu0 0.0
    %178 = vmatpush1.msra.mxu0 0.0
    %179 = vmatprep.subr.mxu0 0.0
    %180 = vmatpush1.msra.mxu0 0.0
    %181 = vmatprep.subr.mxu0 0.0
    %182 = vmatpush1.msra.mxu0 0.0
    %183 = vmatprep.subr.mxu0 0.0
    %184 = vmatpush1.msra.mxu0 0.0
    %185 = vmatprep.mubr.f32.mxu0 0.0
    %186 = vmatmul.mubr.f32.gmra.mrb[0].mxu0 %v110
    %v187 = vpop.f32.mrb[0].mxu0
    %v188 = vadd.f32 0.0, %v187
    %v189 = vpop.f32.mrb[0].mxu0
    %190 = vmatprep.mubr.f32.mxu0 0.0
    %191 = vmatmul.mubr.f32.gmra.mrb[0].mxu0 %v113
    %v192 = vpop.f32.mrb[0].mxu0
    %v193 = vadd.f32 0.0, %v192
    %v194 = vpop.f32.mrb[0].mxu0
    %195 = vmatprep.mubr.f32.mxu0 0.0
    %196 = vmatmul.mubr.f32.gmra.mrb[0].mxu0 %v116
    %v197 = vpop.f32.mrb[0].mxu0
    %v198 = vadd.f32 0.0, %v197
    %v199 = vpop.f32.mrb[0].mxu0
    %200 = vmatprep.mubr.f32.mxu0 0.0
    %201 = vmatmul.mubr.f32.gmra.mrb[0].mxu0 %v119
    %v202 = vpop.f32.mrb[0].mxu0
    %v203 = vadd.f32 0.0, %v202
    %v204 = vpop.f32.mrb[0].mxu0
    %205 = vdwg.mxu0
    %v206 = vmul.f32 %v92, %v188
    %v207 = vmul.f32 %v93, %v193
    %v208 = vmul.f32 %v94, %v198
    %v209 = vmul.f32 %v95, %v203
    %v210 = vmul.f32 %v96, %v198
    %v211 = vmul.f32 %v97, %v198
    %v212 = vmul.f32 %v98, %v198
    %v213 = vmul.f32 %v99, %v198
    %v214 = vadd.f32 %v210, %v100
    %v215 = vadd.f32 %v211, %v101
    %v216 = vadd.f32 %v212, %v102
    %v217 = vadd.f32 %v213, %v103
    %v218 = vadd.f32 %v206, %v214
    %v219 = vadd.f32 %v207, %v215
    %v220 = vadd.f32 %v208, %v216
    %v221 = vadd.f32 %v209, %v217
    %222 = vmatprep.subr.mxu0 0.0
    %223 = vmatpush1.msra.mxu0 %v218
    %224 = vmatprep.subr.mxu0 0.0
    %225 = vmatpush1.msra.mxu0 %v219
    %226 = vmatprep.subr.mxu0 0.0
    %227 = vmatpush1.msra.mxu0 %v220
    %228 = vmatprep.subr.mxu0 0.0
    %229 = vmatpush1.msra.mxu0 %v221
    %230 = vmatprep.subr.mxu0 0.0
    %231 = vmatpush1.msra.mxu0 0.0
    %232 = vmatprep.subr.mxu0 0.0
    %233 = vmatpush1.msra.mxu0 0.0
    %234 = vmatprep.subr.mxu0 0.0
    %235 = vmatpush1.msra.mxu0 0.0
    %236 = vmatprep.subr.mxu0 0.0
    %237 = vmatpush1.msra.mxu0 0.0
    %238 = vmatprep.subr.mxu0 0.0
    %239 = vmatpush1.msra.mxu0 0.0
    %240 = vmatprep.subr.mxu0 0.0
    %241 = vmatpush1.msra.mxu0 0.0
    %242 = vmatprep.subr.mxu0 0.0
    %243 = vmatpush1.msra.mxu0 0.0
    %244 = vmatprep.subr.mxu0 0.0
    %245 = vmatpush1.msra.mxu0 0.0
    %246 = vmatprep.subr.mxu0 0.0
    %247 = vmatpush1.msra.mxu0 0.0
    %248 = vmatprep.subr.mxu0 0.0
    %249 = vmatpush1.msra.mxu0 0.0
    %250 = vmatprep.subr.mxu0 0.0
    %251 = vmatpush1.msra.mxu0 0.0
    %252 = vmatprep.subr.mxu0 0.0
    %253 = vmatpush1.msra.mxu0 0.0
    %254 = vmatprep.subr.mxu0 0.0
    %255 = vmatpush1.msra.mxu0 0.0
    %256 = vmatprep.subr.mxu0 0.0
    %257 = vmatpush1.msra.mxu0 0.0
    %258 = vmatprep.subr.mxu0 0.0
    %259 = vmatpush1.msra.mxu0 0.0
    %260 = vmatprep.subr.mxu0 0.0
    %261 = vmatpush1.msra.mxu0 0.0
    %262 = vmatprep.subr.mxu0 0.0
    %263 = vmatpush1.msra.mxu0 0.0
    %264 = vmatprep.subr.mxu0 0.0
    %265 = vmatpush1.msra.mxu0 0.0
    %266 = vmatprep.subr.mxu0 0.0
    %267 = vmatpush1.msra.mxu0 0.0
    %268 = vmatprep.subr.mxu0 0.0
    %269 = vmatpush1.msra.mxu0 0.0
    %270 = vmatprep.subr.mxu0 0.0
    %271 = vmatpush1.msra.mxu0 0.0
    %272 = vmatprep.subr.mxu0 0.0
    %273 = vmatpush1.msra.mxu0 0.0
    %274 = vmatprep.subr.mxu0 0.0
    %275 = vmatpush1.msra.mxu0 0.0
    %276 = vmatprep.subr.mxu0 0.0
    %277 = vmatpush1.msra.mxu0 0.0
    %278 = vmatprep.subr.mxu0 0.0
    %279 = vmatpush1.msra.mxu0 0.0
    %280 = vmatprep.subr.mxu0 0.0
    %281 = vmatpush1.msra.mxu0 0.0
    %282 = vmatprep.subr.mxu0 0.0
    %283 = vmatpush1.msra.mxu0 0.0
    %284 = vmatprep.subr.mxu0 0.0
    %285 = vmatpush1.msra.mxu0 0.0
    %286 = vmatprep.mubr.f32.mxu0 0.0
    %287 = vmatmul.mubr.f32.gmra.mrb[0].mxu0 %v110
    %v288 = vpop.f32.mrb[0].mxu0
    %v289 = vadd.f32 0.0, %v288
    %v290 = vpop.f32.mrb[0].mxu0
    %291 = vmatprep.mubr.f32.mxu0 0.0
    %292 = vmatmul.mubr.f32.gmra.mrb[0].mxu0 %v113
    %v293 = vpop.f32.mrb[0].mxu0
    %v294 = vadd.f32 0.0, %v293
    %v295 = vpop.f32.mrb[0].mxu0
    %296 = vmatprep.mubr.f32.mxu0 0.0
    %297 = vmatmul.mubr.f32.gmra.mrb[0].mxu0 %v116
    %v298 = vpop.f32.mrb[0].mxu0
    %v299 = vadd.f32 0.0, %v298
    %v300 = vpop.f32.mrb[0].mxu0
    %301 = vmatprep.mubr.f32.mxu0 0.0
    %302 = vmatmul.mubr.f32.gmra.mrb[0].mxu0 %v119
    %v303 = vpop.f32.mrb[0].mxu0
    %v304 = vadd.f32 0.0, %v303
    %v305 = vpop.f32.mrb[0].mxu0
    %306 = vdwg.mxu0
    %v307 = vmul.f32 %v92, %v289
    %v308 = vmul.f32 %v93, %v294
    %v309 = vmul.f32 %v94, %v299
    %v310 = vmul.f32 %v95, %v304
    %v311 = vmul.f32 %v96, %v299
    %v312 = vmul.f32 %v97, %v299
    %v313 = vmul.f32 %v98, %v299
    %v314 = vmul.f32 %v99, %v299
    %v315 = vadd.f32 %v311, %v100
    %v316 = vadd.f32 %v312, %v101
    %v317 = vadd.f32 %v313, %v102
    %v318 = vadd.f32 %v314, %v103
    %v319 = vadd.f32 %v307, %v315
    %v320 = vadd.f32 %v308, %v316
    %v321 = vadd.f32 %v309, %v317
    %v322 = vadd.f32 %v310, %v318
    %323 = vmatprep.subr.mxu0 0.0
    %324 = vmatpush1.msra.mxu0 %v319
    %325 = vmatprep.subr.mxu0 0.0
    %326 = vmatpush1.msra.mxu0 %v320
    %327 = vmatprep.subr.mxu0 0.0
    %328 = vmatpush1.msra.mxu0 %v321
    %329 = vmatprep.subr.mxu0 0.0
    %330 = vmatpush1.msra.mxu0 %v322
    %331 = vmatprep.subr.mxu0 0.0
    %332 = vmatpush1.msra.mxu0 0.0
    %333 = vmatprep.subr.mxu0 0.0
    %334 = vmatpush1.msra.mxu0 0.0
    %335 = vmatprep.subr.mxu0 0.0
    %336 = vmatpush1.msra.mxu0 0.0
    %337 = vmatprep.subr.mxu0 0.0
    %338 = vmatpush1.msra.mxu0 0.0
    %339 = vmatprep.subr.mxu0 0.0
    %340 = vmatpush1.msra.mxu0 0.0
    %341 = vmatprep.subr.mxu0 0.0
    %342 = vmatpush1.msra.mxu0 0.0
    %343 = vmatprep.subr.mxu0 0.0
    %344 = vmatpush1.msra.mxu0 0.0
    %345 = vmatprep.subr.mxu0 0.0
    %346 = vmatpush1.msra.mxu0 0.0
    %347 = vmatprep.subr.mxu0 0.0
    %348 = vmatpush1.msra.mxu0 0.0
    %349 = vmatprep.subr.mxu0 0.0
    %350 = vmatpush1.msra.mxu0 0.0
    %351 = vmatprep.subr.mxu0 0.0
    %352 = vmatpush1.msra.mxu0 0.0
    %353 = vmatprep.subr.mxu0 0.0
    %354 = vmatpush1.msra.mxu0 0.0
    %355 = vmatprep.subr.mxu0 0.0
    %356 = vmatpush1.msra.mxu0 0.0
    %357 = vmatprep.subr.mxu0 0.0
    %358 = vmatpush1.msra.mxu0 0.0
    %359 = vmatprep.subr.mxu0 0.0
    %360 = vmatpush1.msra.mxu0 0.0
    %361 = vmatprep.subr.mxu0 0.0
    %362 = vmatpush1.msra.mxu0 0.0
    %363 = vmatprep.subr.mxu0 0.0
    %364 = vmatpush1.msra.mxu0 0.0
    %365 = vmatprep.subr.mxu0 0.0
    %366 = vmatpush1.msra.mxu0 0.0
    %367 = vmatprep.subr.mxu0 0.0
    %368 = vmatpush1.msra.mxu0 0.0
    %369 = vmatprep.subr.mxu0 0.0
    %370 = vmatpush1.msra.mxu0 0.0
    %371 = vmatprep.subr.mxu0 0.0
    %372 = vmatpush1.msra.mxu0 0.0
    %373 = vmatprep.subr.mxu0 0.0
    %374 = vmatpush1.msra.mxu0 0.0
    %375 = vmatprep.subr.mxu0 0.0
    %376 = vmatpush1.msra.mxu0 0.0
    %377 = vmatprep.subr.mxu0 0.0
    %378 = vmatpush1.msra.mxu0 0.0
    %379 = vmatprep.subr.mxu0 0.0
    %380 = vmatpush1.msra.mxu0 0.0
    %381 = vmatprep.subr.mxu0 0.0
    %382 = vmatpush1.msra.mxu0 0.0
    %383 = vmatprep.subr.mxu0 0.0
    %384 = vmatpush1.msra.mxu0 0.0
    %385 = vmatprep.subr.mxu0 0.0
    %386 = vmatpush1.msra.mxu0 0.0
    %387 = vmatprep.mubr.f32.mxu0 0.0
    %388 = vmatmul.mubr.f32.gmra.mrb[0].mxu0 %v110
    %v389 = vpop.f32.mrb[0].mxu0
    %v390 = vadd.f32 0.0, %v389
    %v391 = vpop.f32.mrb[0].mxu0
    %392 = vmatprep.mubr.f32.mxu0 0.0
    %393 = vmatmul.mubr.f32.gmra.mrb[0].mxu0 %v113
    %v394 = vpop.f32.mrb[0].mxu0
    %v395 = vadd.f32 0.0, %v394
    %v396 = vpop.f32.mrb[0].mxu0
    %397 = vmatprep.mubr.f32.mxu0 0.0
    %398 = vmatmul.mubr.f32.gmra.mrb[0].mxu0 %v116
    %v399 = vpop.f32.mrb[0].mxu0
    %v400 = vadd.f32 0.0, %v399
    %v401 = vpop.f32.mrb[0].mxu0
    %402 = vmatprep.mubr.f32.mxu0 0.0
    %403 = vmatmul.mubr.f32.gmra.mrb[0].mxu0 %v119
    %v404 = vpop.f32.mrb[0].mxu0
    %v405 = vadd.f32 0.0, %v404
    %v406 = vpop.f32.mrb[0].mxu0
    %407 = vdwg.mxu0
    %v408 = vmul.f32 %v92, %v390
    %v409 = vmul.f32 %v93, %v395
    %v410 = vmul.f32 %v94, %v400
    %v411 = vmul.f32 %v95, %v405
    %v412 = vmul.f32 %v96, %v400
    %v413 = vmul.f32 %v97, %v400
    %v414 = vmul.f32 %v98, %v400
    %v415 = vmul.f32 %v99, %v400
    %v416 = vadd.f32 %v412, %v100
    %v417 = vadd.f32 %v413, %v101
    %v418 = vadd.f32 %v414, %v102
    %v419 = vadd.f32 %v415, %v103
    %v420 = vadd.f32 %v408, %v416
    %v421 = vadd.f32 %v409, %v417
    %v422 = vadd.f32 %v410, %v418
    %v423 = vadd.f32 %v411, %v419
    %424 = vmatprep.subr.mxu0 0.0
    %425 = vmatpush1.msra.mxu0 %v420
    %426 = vmatprep.subr.mxu0 0.0
    %427 = vmatpush1.msra.mxu0 %v421
    %428 = vmatprep.subr.mxu0 0.0
    %429 = vmatpush1.msra.mxu0 %v422
    %430 = vmatprep.subr.mxu0 0.0
    %431 = vmatpush1.msra.mxu0 %v423
    %432 = vmatprep.subr.mxu0 0.0
    %433 = vmatpush1.msra.mxu0 0.0
    %434 = vmatprep.subr.mxu0 0.0
    %435 = vmatpush1.msra.mxu0 0.0
    %436 = vmatprep.subr.mxu0 0.0
    %437 = vmatpush1.msra.mxu0 0.0
    %438 = vmatprep.subr.mxu0 0.0
    %439 = vmatpush1.msra.mxu0 0.0
    %440 = vmatprep.subr.mxu0 0.0
    %441 = vmatpush1.msra.mxu0 0.0
    %442 = vmatprep.subr.mxu0 0.0
    %443 = vmatpush1.msra.mxu0 0.0
    %444 = vmatprep.subr.mxu0 0.0
    %445 = vmatpush1.msra.mxu0 0.0
    %446 = vmatprep.subr.mxu0 0.0
    %447 = vmatpush1.msra.mxu0 0.0
    %448 = vmatprep.subr.mxu0 0.0
    %449 = vmatpush1.msra.mxu0 0.0
    %450 = vmatprep.subr.mxu0 0.0
    %451 = vmatpush1.msra.mxu0 0.0
    %452 = vmatprep.subr.mxu0 0.0
    %453 = vmatpush1.msra.mxu0 0.0
    %454 = vmatprep.subr.mxu0 0.0
    %455 = vmatpush1.msra.mxu0 0.0
    %456 = vmatprep.subr.mxu0 0.0
    %457 = vmatpush1.msra.mxu0 0.0
    %458 = vmatprep.subr.mxu0 0.0
    %459 = vmatpush1.msra.mxu0 0.0
    %460 = vmatprep.subr.mxu0 0.0
    %461 = vmatpush1.msra.mxu0 0.0
    %462 = vmatprep.subr.mxu0 0.0
    %463 = vmatpush1.msra.mxu0 0.0
    %464 = vmatprep.subr.mxu0 0.0
    %465 = vmatpush1.msra.mxu0 0.0
    %466 = vmatprep.subr.mxu0 0.0
    %467 = vmatpush1.msra.mxu0 0.0
    %468 = vmatprep.subr.mxu0 0.0
    %469 = vmatpush1.msra.mxu0 0.0
    %470 = vmatprep.subr.mxu0 0.0
    %471 = vmatpush1.msra.mxu0 0.0
    %472 = vmatprep.subr.mxu0 0.0
    %473 = vmatpush1.msra.mxu0 0.0
    %474 = vmatprep.subr.mxu0 0.0
    %475 = vmatpush1.msra.mxu0 0.0
    %476 = vmatprep.subr.mxu0 0.0
    %477 = vmatpush1.msra.mxu0 0.0
    %478 = vmatprep.subr.mxu0 0.0
    %479 = vmatpush1.msra.mxu0 0.0
    %480 = vmatprep.subr.mxu0 0.0
    %481 = vmatpush1.msra.mxu0 0.0
    %482 = vmatprep.subr.mxu0 0.0
    %483 = vmatpush1.msra.mxu0 0.0
    %484 = vmatprep.subr.mxu0 0.0
    %485 = vmatpush1.msra.mxu0 0.0
    %486 = vmatprep.subr.mxu0 0.0
    %487 = vmatpush1.msra.mxu0 0.0
    %488 = vmatprep.mubr.f32.mxu0 0.0
    %489 = vmatmul.mubr.f32.gmra.mrb[0].mxu0 %v110
    %v490 = vpop.f32.mrb[0].mxu0
    %v491 = vadd.f32 0.0, %v490
    %v492 = vpop.f32.mrb[0].mxu0
    %493 = vmatprep.mubr.f32.mxu0 0.0
    %494 = vmatmul.mubr.f32.gmra.mrb[0].mxu0 %v113
    %v495 = vpop.f32.mrb[0].mxu0
    %v496 = vadd.f32 0.0, %v495
    %v497 = vpop.f32.mrb[0].mxu0
    %498 = vmatprep.mubr.f32.mxu0 0.0
    %499 = vmatmul.mubr.f32.gmra.mrb[0].mxu0 %v116
    %v500 = vpop.f32.mrb[0].mxu0
    %v501 = vadd.f32 0.0, %v500
    %v502 = vpop.f32.mrb[0].mxu0
    %503 = vmatprep.mubr.f32.mxu0 0.0
    %504 = vmatmul.mubr.f32.gmra.mrb[0].mxu0 %v119
    %v505 = vpop.f32.mrb[0].mxu0
    %v506 = vadd.f32 0.0, %v505
    %v507 = vpop.f32.mrb[0].mxu0
    %508 = vdwg.mxu0
    %v509 = vmul.f32 %v92, %v491
    %v510 = vmul.f32 %v93, %v496
    %v511 = vmul.f32 %v94, %v501
    %v512 = vmul.f32 %v95, %v506
    %v513 = vmul.f32 %v96, %v501
    %v514 = vmul.f32 %v97, %v501
    %v515 = vmul.f32 %v98, %v501
    %v516 = vmul.f32 %v99, %v501
    %v517 = vadd.f32 %v513, %v100
    %v518 = vadd.f32 %v514, %v101
    %v519 = vadd.f32 %v515, %v102
    %v520 = vadd.f32 %v516, %v103
    %v521 = vadd.f32 %v509, %v517
    %v522 = vadd.f32 %v510, %v518
    %v523 = vadd.f32 %v511, %v519
    %v524 = vadd.f32 %v512, %v520
    %525 = vmatprep.subr.mxu0 0.0
    %526 = vmatpush1.msra.mxu0 %v521
    %527 = vmatprep.subr.mxu0 0.0
    %528 = vmatpush1.msra.mxu0 %v522
    %529 = vmatprep.subr.mxu0 0.0
    %530 = vmatpush1.msra.mxu0 %v523
    %531 = vmatprep.subr.mxu0 0.0
    %532 = vmatpush1.msra.mxu0 %v524
    %533 = vmatprep.subr.mxu0 0.0
    %534 = vmatpush1.msra.mxu0 0.0
    %535 = vmatprep.subr.mxu0 0.0
    %536 = vmatpush1.msra.mxu0 0.0
    %537 = vmatprep.subr.mxu0 0.0
    %538 = vmatpush1.msra.mxu0 0.0
    %539 = vmatprep.subr.mxu0 0.0
    %540 = vmatpush1.msra.mxu0 0.0
    %541 = vmatprep.subr.mxu0 0.0
    %542 = vmatpush1.msra.mxu0 0.0
    %543 = vmatprep.subr.mxu0 0.0
    %544 = vmatpush1.msra.mxu0 0.0
    %545 = vmatprep.subr.mxu0 0.0
    %546 = vmatpush1.msra.mxu0 0.0
    %547 = vmatprep.subr.mxu0 0.0
    %548 = vmatpush1.msra.mxu0 0.0
    %549 = vmatprep.subr.mxu0 0.0
    %550 = vmatpush1.msra.mxu0 0.0
    %551 = vmatprep.subr.mxu0 0.0
    %552 = vmatpush1.msra.mxu0 0.0
    %553 = vmatprep.subr.mxu0 0.0
    %554 = vmatpush1.msra.mxu0 0.0
    %555 = vmatprep.subr.mxu0 0.0
    %556 = vmatpush1.msra.mxu0 0.0
    %557 = vmatprep.subr.mxu0 0.0
    %558 = vmatpush1.msra.mxu0 0.0
    %559 = vmatprep.subr.mxu0 0.0
    %560 = vmatpush1.msra.mxu0 0.0
    %561 = vmatprep.subr.mxu0 0.0
    %562 = vmatpush1.msra.mxu0 0.0
    %563 = vmatprep.subr.mxu0 0.0
    %564 = vmatpush1.msra.mxu0 0.0
    %565 = vmatprep.subr.mxu0 0.0
    %566 = vmatpush1.msra.mxu0 0.0
    %567 = vmatprep.subr.mxu0 0.0
    %568 = vmatpush1.msra.mxu0 0.0
    %569 = vmatprep.subr.mxu0 0.0
    %570 = vmatpush1.msra.mxu0 0.0
    %571 = vmatprep.subr.mxu0 0.0
    %572 = vmatpush1.msra.mxu0 0.0
    %573 = vmatprep.subr.mxu0 0.0
    %574 = vmatpush1.msra.mxu0 0.0
    %575 = vmatprep.subr.mxu0 0.0
    %576 = vmatpush1.msra.mxu0 0.0
    %577 = vmatprep.subr.mxu0 0.0
    %578 = vmatpush1.msra.mxu0 0.0
    %579 = vmatprep.subr.mxu0 0.0
    %580 = vmatpush1.msra.mxu0 0.0
    %581 = vmatprep.subr.mxu0 0.0
    %582 = vmatpush1.msra.mxu0 0.0
    %583 = vmatprep.subr.mxu0 0.0
    %584 = vmatpush1.msra.mxu0 0.0
    %585 = vmatprep.subr.mxu0 0.0
    %586 = vmatpush1.msra.mxu0 0.0
    %587 = vmatprep.subr.mxu0 0.0
    %588 = vmatpush1.msra.mxu0 0.0
    %589 = vmatprep.mubr.f32.mxu0 0.0
    %590 = vmatmul.mubr.f32.gmra.mrb[0].mxu0 %v110
    %v591 = vpop.f32.mrb[0].mxu0
    %v592 = vadd.f32 0.0, %v591
    %v593 = vpop.f32.mrb[0].mxu0
    %594 = vmatprep.mubr.f32.mxu0 0.0
    %595 = vmatmul.mubr.f32.gmra.mrb[0].mxu0 %v113
    %v596 = vpop.f32.mrb[0].mxu0
    %v597 = vadd.f32 0.0, %v596
    %v598 = vpop.f32.mrb[0].mxu0
    %599 = vmatprep.mubr.f32.mxu0 0.0
    %600 = vmatmul.mubr.f32.gmra.mrb[0].mxu0 %v116
    %v601 = vpop.f32.mrb[0].mxu0
    %v602 = vadd.f32 0.0, %v601
    %v603 = vpop.f32.mrb[0].mxu0
    %604 = vmatprep.mubr.f32.mxu0 0.0
    %605 = vmatmul.mubr.f32.gmra.mrb[0].mxu0 %v119
    %v606 = vpop.f32.mrb[0].mxu0
    %v607 = vadd.f32 0.0, %v606
    %v608 = vpop.f32.mrb[0].mxu0
    %609 = vdwg.mxu0
    %v610 = vmul.f32 %v92, %v592
    %v611 = vmul.f32 %v93, %v597
    %v612 = vmul.f32 %v94, %v602
    %v613 = vmul.f32 %v95, %v607
    %v614 = vmul.f32 %v96, %v602
    %v615 = vmul.f32 %v97, %v602
    %v616 = vmul.f32 %v98, %v602
    %v617 = vmul.f32 %v99, %v602
    %v618 = vadd.f32 %v614, %v100
    %v619 = vadd.f32 %v615, %v101
    %v620 = vadd.f32 %v616, %v102
    %v621 = vadd.f32 %v617, %v103
    %v622 = vadd.f32 %v610, %v618
    %v623 = vadd.f32 %v611, %v619
    %v624 = vadd.f32 %v612, %v620
    %v625 = vadd.f32 %v613, %v621
    %626 = vmatprep.subr.mxu0 0.0
    %627 = vmatpush1.msra.mxu0 %v622
    %628 = vmatprep.subr.mxu0 0.0
    %629 = vmatpush1.msra.mxu0 %v623
    %630 = vmatprep.subr.mxu0 0.0
    %631 = vmatpush1.msra.mxu0 %v624
    %632 = vmatprep.subr.mxu0 0.0
    %633 = vmatpush1.msra.mxu0 %v625
    %634 = vmatprep.subr.mxu0 0.0
    %635 = vmatpush1.msra.mxu0 0.0
    %636 = vmatprep.subr.mxu0 0.0
    %637 = vmatpush1.msra.mxu0 0.0
    %638 = vmatprep.subr.mxu0 0.0
    %639 = vmatpush1.msra.mxu0 0.0
    %640 = vmatprep.subr.mxu0 0.0
    %641 = vmatpush1.msra.mxu0 0.0
    %642 = vmatprep.subr.mxu0 0.0
    %643 = vmatpush1.msra.mxu0 0.0
    %644 = vmatprep.subr.mxu0 0.0
    %645 = vmatpush1.msra.mxu0 0.0
    %646 = vmatprep.subr.mxu0 0.0
    %647 = vmatpush1.msra.mxu0 0.0
    %648 = vmatprep.subr.mxu0 0.0
    %649 = vmatpush1.msra.mxu0 0.0
    %650 = vmatprep.subr.mxu0 0.0
    %651 = vmatpush1.msra.mxu0 0.0
    %652 = vmatprep.subr.mxu0 0.0
    %653 = vmatpush1.msra.mxu0 0.0
    %654 = vmatprep.subr.mxu0 0.0
    %655 = vmatpush1.msra.mxu0 0.0
    %656 = vmatprep.subr.mxu0 0.0
    %657 = vmatpush1.msra.mxu0 0.0
    %658 = vmatprep.subr.mxu0 0.0
    %659 = vmatpush1.msra.mxu0 0.0
    %660 = vmatprep.subr.mxu0 0.0
    %661 = vmatpush1.msra.mxu0 0.0
    %662 = vmatprep.subr.mxu0 0.0
    %663 = vmatpush1.msra.mxu0 0.0
    %664 = vmatprep.subr.mxu0 0.0
    %665 = vmatpush1.msra.mxu0 0.0
    %666 = vmatprep.subr.mxu0 0.0
    %667 = vmatpush1.msra.mxu0 0.0
    %668 = vmatprep.subr.mxu0 0.0
    %669 = vmatpush1.msra.mxu0 0.0
    %670 = vmatprep.subr.mxu0 0.0
    %671 = vmatpush1.msra.mxu0 0.0
    %672 = vmatprep.subr.mxu0 0.0
    %673 = vmatpush1.msra.mxu0 0.0
    %674 = vmatprep.subr.mxu0 0.0
    %675 = vmatpush1.msra.mxu0 0.0
    %676 = vmatprep.subr.mxu0 0.0
    %677 = vmatpush1.msra.mxu0 0.0
    %678 = vmatprep.subr.mxu0 0.0
    %679 = vmatpush1.msra.mxu0 0.0
    %680 = vmatprep.subr.mxu0 0.0
    %681 = vmatpush1.msra.mxu0 0.0
    %682 = vmatprep.subr.mxu0 0.0
    %683 = vmatpush1.msra.mxu0 0.0
    %684 = vmatprep.subr.mxu0 0.0
    %685 = vmatpush1.msra.mxu0 0.0
    %686 = vmatprep.subr.mxu0 0.0
    %687 = vmatpush1.msra.mxu0 0.0
    %688 = vmatprep.subr.mxu0 0.0
    %689 = vmatpush1.msra.mxu0 0.0
    %690 = vmatprep.mubr.f32.mxu0 0.0
    %691 = vmatmul.mubr.f32.gmra.mrb[0].mxu0 %v110
    %v692 = vpop.f32.mrb[0].mxu0
    %v693 = vadd.f32 0.0, %v692
    %v694 = vpop.f32.mrb[0].mxu0
    %695 = vmatprep.mubr.f32.mxu0 0.0
    %696 = vmatmul.mubr.f32.gmra.mrb[0].mxu0 %v113
    %v697 = vpop.f32.mrb[0].mxu0
    %v698 = vadd.f32 0.0, %v697
    %v699 = vpop.f32.mrb[0].mxu0
    %700 = vmatprep.mubr.f32.mxu0 0.0
    %701 = vmatmul.mubr.f32.gmra.mrb[0].mxu0 %v116
    %v702 = vpop.f32.mrb[0].mxu0
    %v703 = vadd.f32 0.0, %v702
    %v704 = vpop.f32.mrb[0].mxu0
    %705 = vmatprep.mubr.f32.mxu0 0.0
    %706 = vmatmul.mubr.f32.gmra.mrb[0].mxu0 %v119
    %v707 = vpop.f32.mrb[0].mxu0
    %v708 = vadd.f32 0.0, %v707
    %v709 = vpop.f32.mrb[0].mxu0
    %710 = vdwg.mxu0
    %v711 = vmul.f32 %v92, %v693
    %v712 = vmul.f32 %v93, %v698
    %v713 = vmul.f32 %v94, %v703
    %v714 = vmul.f32 %v95, %v708
    %v715 = vmul.f32 %v96, %v703
    %v716 = vmul.f32 %v97, %v703
    %v717 = vmul.f32 %v98, %v703
    %v718 = vmul.f32 %v99, %v703
    %v719 = vadd.f32 %v715, %v100
    %v720 = vadd.f32 %v716, %v101
    %v721 = vadd.f32 %v717, %v102
    %v722 = vadd.f32 %v718, %v103
    %v723 = vadd.f32 %v711, %v719
    %v724 = vadd.f32 %v712, %v720
    %v725 = vadd.f32 %v713, %v721
    %v726 = vadd.f32 %v714, %v722
    %727 = vmatprep.subr.mxu0 0.0
    %728 = vmatpush1.msra.mxu0 %v723
    %729 = vmatprep.subr.mxu0 0.0
    %730 = vmatpush1.msra.mxu0 %v724
    %731 = vmatprep.subr.mxu0 0.0
    %732 = vmatpush1.msra.mxu0 %v725
    %733 = vmatprep.subr.mxu0 0.0
    %734 = vmatpush1.msra.mxu0 %v726
    %735 = vmatprep.subr.mxu0 0.0
    %736 = vmatpush1.msra.mxu0 0.0
    %737 = vmatprep.subr.mxu0 0.0
    %738 = vmatpush1.msra.mxu0 0.0
    %739 = vmatprep.subr.mxu0 0.0
    %740 = vmatpush1.msra.mxu0 0.0
    %741 = vmatprep.subr.mxu0 0.0
    %742 = vmatpush1.msra.mxu0 0.0
    %743 = vmatprep.subr.mxu0 0.0
    %744 = vmatpush1.msra.mxu0 0.0
    %745 = vmatprep.subr.mxu0 0.0
    %746 = vmatpush1.msra.mxu0 0.0
    %747 = vmatprep.subr.mxu0 0.0
    %748 = vmatpush1.msra.mxu0 0.0
    %749 = vmatprep.subr.mxu0 0.0
    %750 = vmatpush1.msra.mxu0 0.0
    %751 = vmatprep.subr.mxu0 0.0
    %752 = vmatpush1.msra.mxu0 0.0
    %753 = vmatprep.subr.mxu0 0.0
    %754 = vmatpush1.msra.mxu0 0.0
    %755 = vmatprep.subr.mxu0 0.0
    %756 = vmatpush1.msra.mxu0 0.0
    %757 = vmatprep.subr.mxu0 0.0
    %758 = vmatpush1.msra.mxu0 0.0
    %759 = vmatprep.subr.mxu0 0.0
    %760 = vmatpush1.msra.mxu0 0.0
    %761 = vmatprep.subr.mxu0 0.0
    %762 = vmatpush1.msra.mxu0 0.0
    %763 = vmatprep.subr.mxu0 0.0
    %764 = vmatpush1.msra.mxu0 0.0
    %765 = vmatprep.subr.mxu0 0.0
    %766 = vmatpush1.msra.mxu0 0.0
    %767 = vmatprep.subr.mxu0 0.0
    %768 = vmatpush1.msra.mxu0 0.0
    %769 = vmatprep.subr.mxu0 0.0
    %770 = vmatpush1.msra.mxu0 0.0
    %771 = vmatprep.subr.mxu0 0.0
    %772 = vmatpush1.msra.mxu0 0.0
    %773 = vmatprep.subr.mxu0 0.0
    %774 = vmatpush1.msra.mxu0 0.0
    %775 = vmatprep.subr.mxu0 0.0
    %776 = vmatpush1.msra.mxu0 0.0
    %777 = vmatprep.subr.mxu0 0.0
    %778 = vmatpush1.msra.mxu0 0.0
    %779 = vmatprep.subr.mxu0 0.0
    %780 = vmatpush1.msra.mxu0 0.0
    %781 = vmatprep.subr.mxu0 0.0
    %782 = vmatpush1.msra.mxu0 0.0
    %783 = vmatprep.subr.mxu0 0.0
    %784 = vmatpush1.msra.mxu0 0.0
    %785 = vmatprep.subr.mxu0 0.0
    %786 = vmatpush1.msra.mxu0 0.0
    %787 = vmatprep.subr.mxu0 0.0
    %788 = vmatpush1.msra.mxu0 0.0
    %789 = vmatprep.subr.mxu0 0.0
    %790 = vmatpush1.msra.mxu0 0.0
    %791 = vmatprep.mubr.f32.mxu0 0.0
    %792 = vmatmul.mubr.f32.gmra.mrb[0].mxu0 %v110
    %v793 = vpop.f32.mrb[0].mxu0
    %v794 = vadd.f32 0.0, %v793
    %v795 = vpop.f32.mrb[0].mxu0
    %796 = vmatprep.mubr.f32.mxu0 0.0
    %797 = vmatmul.mubr.f32.gmra.mrb[0].mxu0 %v113
    %v798 = vpop.f32.mrb[0].mxu0
    %v799 = vadd.f32 0.0, %v798
    %v800 = vpop.f32.mrb[0].mxu0
    %801 = vmatprep.mubr.f32.mxu0 0.0
    %802 = vmatmul.mubr.f32.gmra.mrb[0].mxu0 %v116
    %v803 = vpop.f32.mrb[0].mxu0
    %v804 = vadd.f32 0.0, %v803
    %v805 = vpop.f32.mrb[0].mxu0
    %806 = vmatprep.mubr.f32.mxu0 0.0
    %807 = vmatmul.mubr.f32.gmra.mrb[0].mxu0 %v119
    %v808 = vpop.f32.mrb[0].mxu0
    %v809 = vadd.f32 0.0, %v808
    %v810 = vpop.f32.mrb[0].mxu0
    %811 = vdwg.mxu0
    %v812 = vmul.f32 %v92, %v794
    %v813 = vmul.f32 %v93, %v799
    %v814 = vmul.f32 %v94, %v804
    %v815 = vmul.f32 %v95, %v809
    %v816 = vmul.f32 %v96, %v804
    %v817 = vmul.f32 %v97, %v804
    %v818 = vmul.f32 %v98, %v804
    %v819 = vmul.f32 %v99, %v804
    %v820 = vadd.f32 %v816, %v100
    %v821 = vadd.f32 %v817, %v101
    %v822 = vadd.f32 %v818, %v102
    %v823 = vadd.f32 %v819, %v103
    %v824 = vadd.f32 %v812, %v820
    %v825 = vadd.f32 %v813, %v821
    %v826 = vadd.f32 %v814, %v822
    %v827 = vadd.f32 %v815, %v823
    %828 = vmatprep.subr.mxu0 0.0
    %829 = vmatpush1.msra.mxu0 %v824
    %830 = vmatprep.subr.mxu0 0.0
    %831 = vmatpush1.msra.mxu0 %v825
    %832 = vmatprep.subr.mxu0 0.0
    %833 = vmatpush1.msra.mxu0 %v826
    %834 = vmatprep.subr.mxu0 0.0
    %835 = vmatpush1.msra.mxu0 %v827
    %836 = vmatprep.subr.mxu0 0.0
    %837 = vmatpush1.msra.mxu0 0.0
    %838 = vmatprep.subr.mxu0 0.0
    %839 = vmatpush1.msra.mxu0 0.0
    %840 = vmatprep.subr.mxu0 0.0
    %841 = vmatpush1.msra.mxu0 0.0
    %842 = vmatprep.subr.mxu0 0.0
    %843 = vmatpush1.msra.mxu0 0.0
    %844 = vmatprep.subr.mxu0 0.0
    %845 = vmatpush1.msra.mxu0 0.0
    %846 = vmatprep.subr.mxu0 0.0
    %847 = vmatpush1.msra.mxu0 0.0
    %848 = vmatprep.subr.mxu0 0.0
    %849 = vmatpush1.msra.mxu0 0.0
    %850 = vmatprep.subr.mxu0 0.0
    %851 = vmatpush1.msra.mxu0 0.0
    %852 = vmatprep.subr.mxu0 0.0
    %853 = vmatpush1.msra.mxu0 0.0
    %854 = vmatprep.subr.mxu0 0.0
    %855 = vmatpush1.msra.mxu0 0.0
    %856 = vmatprep.subr.mxu0 0.0
    %857 = vmatpush1.msra.mxu0 0.0
    %858 = vmatprep.subr.mxu0 0.0
    %859 = vmatpush1.msra.mxu0 0.0
    %860 = vmatprep.subr.mxu0 0.0
    %861 = vmatpush1.msra.mxu0 0.0
    %862 = vmatprep.subr.mxu0 0.0
    %863 = vmatpush1.msra.mxu0 0.0
    %864 = vmatprep.subr.mxu0 0.0
    %865 = vmatpush1.msra.mxu0 0.0
    %866 = vmatprep.subr.mxu0 0.0
    %867 = vmatpush1.msra.mxu0 0.0
    %868 = vmatprep.subr.mxu0 0.0
    %869 = vmatpush1.msra.mxu0 0.0
    %870 = vmatprep.subr.mxu0 0.0
    %871 = vmatpush1.msra.mxu0 0.0
    %872 = vmatprep.subr.mxu0 0.0
    %873 = vmatpush1.msra.mxu0 0.0
    %874 = vmatprep.subr.mxu0 0.0
    %875 = vmatpush1.msra.mxu0 0.0
    %876 = vmatprep.subr.mxu0 0.0
    %877 = vmatpush1.msra.mxu0 0.0
    %878 = vmatprep.subr.mxu0 0.0
    %879 = vmatpush1.msra.mxu0 0.0
    %880 = vmatprep.subr.mxu0 0.0
    %881 = vmatpush1.msra.mxu0 0.0
    %882 = vmatprep.subr.mxu0 0.0
    %883 = vmatpush1.msra.mxu0 0.0
    %884 = vmatprep.subr.mxu0 0.0
    %885 = vmatpush1.msra.mxu0 0.0
    %886 = vmatprep.subr.mxu0 0.0
    %887 = vmatpush1.msra.mxu0 0.0
    %888 = vmatprep.subr.mxu0 0.0
    %889 = vmatpush1.msra.mxu0 0.0
    %890 = vmatprep.subr.mxu0 0.0
    %891 = vmatpush1.msra.mxu0 0.0
    %892 = vmatprep.mubr.f32.mxu0 0.0
    %893 = vmatmul.mubr.f32.gmra.mrb[0].mxu0 %v110
    %v894 = vpop.f32.mrb[0].mxu0
    %v895 = vadd.f32 0.0, %v894
    %v896 = vpop.f32.mrb[0].mxu0
    %897 = vmatprep.mubr.f32.mxu0 0.0
    %898 = vmatmul.mubr.f32.gmra.mrb[0].mxu0 %v113
    %v899 = vpop.f32.mrb[0].mxu0
    %v900 = vadd.f32 0.0, %v899
    %v901 = vpop.f32.mrb[0].mxu0
    %902 = vmatprep.mubr.f32.mxu0 0.0
    %903 = vmatmul.mubr.f32.gmra.mrb[0].mxu0 %v116
    %v904 = vpop.f32.mrb[0].mxu0
    %v905 = vadd.f32 0.0, %v904
    %v906 = vpop.f32.mrb[0].mxu0
    %907 = vmatprep.mubr.f32.mxu0 0.0
    %908 = vmatmul.mubr.f32.gmra.mrb[0].mxu0 %v119
    %v909 = vpop.f32.mrb[0].mxu0
    %v910 = vadd.f32 0.0, %v909
    %v911 = vpop.f32.mrb[0].mxu0
    %912 = vdwg.mxu0
    %v913 = vmul.f32 %v92, %v895
    %v914 = vmul.f32 %v93, %v900
    %v915 = vmul.f32 %v94, %v905
    %v916 = vmul.f32 %v95, %v910
    %v917 = vmul.f32 %v96, %v905
    %v918 = vmul.f32 %v97, %v905
    %v919 = vmul.f32 %v98, %v905
    %v920 = vmul.f32 %v99, %v905
    %v921 = vadd.f32 %v917, %v100
    %v922 = vadd.f32 %v918, %v101
    %v923 = vadd.f32 %v919, %v102
    %v924 = vadd.f32 %v920, %v103
    %v925 = vadd.f32 %v913, %v921
    %v926 = vadd.f32 %v914, %v922
    %v927 = vadd.f32 %v915, %v923
    %v928 = vadd.f32 %v916, %v924
    %929 = vmatprep.subr.mxu0 0.0
    %930 = vmatpush1.msra.mxu0 %v925
    %931 = vmatprep.subr.mxu0 0.0
    %932 = vmatpush1.msra.mxu0 %v926
    %933 = vmatprep.subr.mxu0 0.0
    %934 = vmatpush1.msra.mxu0 %v927
    %935 = vmatprep.subr.mxu0 0.0
    %936 = vmatpush1.msra.mxu0 %v928
    %937 = vmatprep.subr.mxu0 0.0
    %938 = vmatpush1.msra.mxu0 0.0
    %939 = vmatprep.subr.mxu0 0.0
    %940 = vmatpush1.msra.mxu0 0.0
    %941 = vmatprep.subr.mxu0 0.0
    %942 = vmatpush1.msra.mxu0 0.0
    %943 = vmatprep.subr.mxu0 0.0
    %944 = vmatpush1.msra.mxu0 0.0
    %945 = vmatprep.subr.mxu0 0.0
    %946 = vmatpush1.msra.mxu0 0.0
    %947 = vmatprep.subr.mxu0 0.0
    %948 = vmatpush1.msra.mxu0 0.0
    %949 = vmatprep.subr.mxu0 0.0
    %950 = vmatpush1.msra.mxu0 0.0
    %951 = vmatprep.subr.mxu0 0.0
    %952 = vmatpush1.msra.mxu0 0.0
    %953 = vmatprep.subr.mxu0 0.0
    %954 = vmatpush1.msra.mxu0 0.0
    %955 = vmatprep.subr.mxu0 0.0
    %956 = vmatpush1.msra.mxu0 0.0
    %957 = vmatprep.subr.mxu0 0.0
    %958 = vmatpush1.msra.mxu0 0.0
    %959 = vmatprep.subr.mxu0 0.0
    %960 = vmatpush1.msra.mxu0 0.0
    %961 = vmatprep.subr.mxu0 0.0
    %962 = vmatpush1.msra.mxu0 0.0
    %963 = vmatprep.subr.mxu0 0.0
    %964 = vmatpush1.msra.mxu0 0.0
    %965 = vmatprep.subr.mxu0 0.0
    %966 = vmatpush1.msra.mxu0 0.0
    %967 = vmatprep.subr.mxu0 0.0
    %968 = vmatpush1.msra.mxu0 0.0
    %969 = vmatprep.subr.mxu0 0.0
    %970 = vmatpush1.msra.mxu0 0.0
    %971 = vmatprep.subr.mxu0 0.0
    %972 = vmatpush1.msra.mxu0 0.0
    %973 = vmatprep.subr.mxu0 0.0
    %974 = vmatpush1.msra.mxu0 0.0
    %975 = vmatprep.subr.mxu0 0.0
    %976 = vmatpush1.msra.mxu0 0.0
    %977 = vmatprep.subr.mxu0 0.0
    %978 = vmatpush1.msra.mxu0 0.0
    %979 = vmatprep.subr.mxu0 0.0
    %980 = vmatpush1.msra.mxu0 0.0
    %981 = vmatprep.subr.mxu0 0.0
    %982 = vmatpush1.msra.mxu0 0.0
    %983 = vmatprep.subr.mxu0 0.0
    %984 = vmatpush1.msra.mxu0 0.0
    %985 = vmatprep.subr.mxu0 0.0
    %986 = vmatpush1.msra.mxu0 0.0
    %987 = vmatprep.subr.mxu0 0.0
    %988 = vmatpush1.msra.mxu0 0.0
    %989 = vmatprep.subr.mxu0 0.0
    %990 = vmatpush1.msra.mxu0 0.0
    %991 = vmatprep.subr.mxu0 0.0
    %992 = vmatpush1.msra.mxu0 0.0
    %993 = vmatprep.mubr.f32.mxu0 0.0
    %994 = vmatmul.mubr.f32.gmra.mrb[0].mxu0 %v110
    %v995 = vpop.f32.mrb[0].mxu0
    %v996 = vadd.f32 0.0, %v995
    %v997 = vpop.f32.mrb[0].mxu0
    %998 = vmatprep.mubr.f32.mxu0 0.0
    %999 = vmatmul.mubr.f32.gmra.mrb[0].mxu0 %v113
    %v1000 = vpop.f32.mrb[0].mxu0
    %v1001 = vadd.f32 0.0, %v1000
    %v1002 = vpop.f32.mrb[0].mxu0
    %1003 = vmatprep.mubr.f32.mxu0 0.0
    %1004 = vmatmul.mubr.f32.gmra.mrb[0].mxu0 %v116
    %v1005 = vpop.f32.mrb[0].mxu0
    %v1006 = vadd.f32 0.0, %v1005
    %v1007 = vpop.f32.mrb[0].mxu0
    %1008 = vmatprep.mubr.f32.mxu0 0.0
    %1009 = vmatmul.mubr.f32.gmra.mrb[0].mxu0 %v119
    %v1010 = vpop.f32.mrb[0].mxu0
    %v1011 = vadd.f32 0.0, %v1010
    %v1012 = vpop.f32.mrb[0].mxu0
    %1013 = vdwg.mxu0
    %v1014 = vmul.f32 %v92, %v996
    %v1015 = vmul.f32 %v93, %v1001
    %v1016 = vmul.f32 %v94, %v1006
    %v1017 = vmul.f32 %v95, %v1011
    %v1018 = vmul.f32 %v96, %v1006
    %v1019 = vmul.f32 %v97, %v1006
    %v1020 = vmul.f32 %v98, %v1006
    %v1021 = vmul.f32 %v99, %v1006
    %v1022 = vadd.f32 %v1018, %v100
    %v1023 = vadd.f32 %v1019, %v101
    %v1024 = vadd.f32 %v1020, %v102
    %v1025 = vadd.f32 %v1021, %v103
    %v1026 = vadd.f32 %v1014, %v1022
    %v1027 = vadd.f32 %v1015, %v1023
    %v1028 = vadd.f32 %v1016, %v1024
    %v1029 = vadd.f32 %v1017, %v1025
    %1030 = vmatprep.subr.mxu0 0.0
    %1031 = vmatpush1.msra.mxu0 %v1026
    %1032 = vmatprep.subr.mxu0 0.0
    %1033 = vmatpush1.msra.mxu0 %v1027
    %1034 = vmatprep.subr.mxu0 0.0
    %1035 = vmatpush1.msra.mxu0 %v1028
    %1036 = vmatprep.subr.mxu0 0.0
    %1037 = vmatpush1.msra.mxu0 %v1029
    %1038 = vmatprep.subr.mxu0 0.0
    %1039 = vmatpush1.msra.mxu0 0.0
    %1040 = vmatprep.subr.mxu0 0.0
    %1041 = vmatpush1.msra.mxu0 0.0
    %1042 = vmatprep.subr.mxu0 0.0
    %1043 = vmatpush1.msra.mxu0 0.0
    %1044 = vmatprep.subr.mxu0 0.0
    %1045 = vmatpush1.msra.mxu0 0.0
    %1046 = vmatprep.subr.mxu0 0.0
    %1047 = vmatpush1.msra.mxu0 0.0
    %1048 = vmatprep.subr.mxu0 0.0
    %1049 = vmatpush1.msra.mxu0 0.0
    %1050 = vmatprep.subr.mxu0 0.0
    %1051 = vmatpush1.msra.mxu0 0.0
    %1052 = vmatprep.subr.mxu0 0.0
    %1053 = vmatpush1.msra.mxu0 0.0
    %1054 = vmatprep.subr.mxu0 0.0
    %1055 = vmatpush1.msra.mxu0 0.0
    %1056 = vmatprep.subr.mxu0 0.0
    %1057 = vmatpush1.msra.mxu0 0.0
    %1058 = vmatprep.subr.mxu0 0.0
    %1059 = vmatpush1.msra.mxu0 0.0
    %1060 = vmatprep.subr.mxu0 0.0
    %1061 = vmatpush1.msra.mxu0 0.0
    %1062 = vmatprep.subr.mxu0 0.0
    %1063 = vmatpush1.msra.mxu0 0.0
    %1064 = vmatprep.subr.mxu0 0.0
    %1065 = vmatpush1.msra.mxu0 0.0
    %1066 = vmatprep.subr.mxu0 0.0
    %1067 = vmatpush1.msra.mxu0 0.0
    %1068 = vmatprep.subr.mxu0 0.0
    %1069 = vmatpush1.msra.mxu0 0.0
    %1070 = vmatprep.subr.mxu0 0.0
    %1071 = vmatpush1.msra.mxu0 0.0
    %1072 = vmatprep.subr.mxu0 0.0
    %1073 = vmatpush1.msra.mxu0 0.0
    %1074 = vmatprep.subr.mxu0 0.0
    %1075 = vmatpush1.msra.mxu0 0.0
    %1076 = vmatprep.subr.mxu0 0.0
    %1077 = vmatpush1.msra.mxu0 0.0
    %1078 = vmatprep.subr.mxu0 0.0
    %1079 = vmatpush1.msra.mxu0 0.0
    %1080 = vmatprep.subr.mxu0 0.0
    %1081 = vmatpush1.msra.mxu0 0.0
    %1082 = vmatprep.subr.mxu0 0.0
    %1083 = vmatpush1.msra.mxu0 0.0
    %1084 = vmatprep.subr.mxu0 0.0
    %1085 = vmatpush1.msra.mxu0 0.0
    %1086 = vmatprep.subr.mxu0 0.0
    %1087 = vmatpush1.msra.mxu0 0.0
    %1088 = vmatprep.subr.mxu0 0.0
    %1089 = vmatpush1.msra.mxu0 0.0
    %1090 = vmatprep.subr.mxu0 0.0
    %1091 = vmatpush1.msra.mxu0 0.0
    %1092 = vmatprep.subr.mxu0 0.0
    %1093 = vmatpush1.msra.mxu0 0.0
    %1094 = vmatprep.mubr.f32.mxu0 0.0
    %1095 = vmatmul.mubr.f32.gmra.mrb[0].mxu0 %v110
    %v1096 = vpop.f32.mrb[0].mxu0
    %v1097 = vadd.f32 0.0, %v1096
    %v1098 = vpop.f32.mrb[0].mxu0
    %1099 = vmatprep.mubr.f32.mxu0 0.0
    %1100 = vmatmul.mubr.f32.gmra.mrb[0].mxu0 %v113
    %v1101 = vpop.f32.mrb[0].mxu0
    %v1102 = vadd.f32 0.0, %v1101
    %v1103 = vpop.f32.mrb[0].mxu0
    %1104 = vmatprep.mubr.f32.mxu0 0.0
    %1105 = vmatmul.mubr.f32.gmra.mrb[0].mxu0 %v116
    %v1106 = vpop.f32.mrb[0].mxu0
    %v1107 = vadd.f32 0.0, %v1106
    %v1108 = vpop.f32.mrb[0].mxu0
    %1109 = vmatprep.mubr.f32.mxu0 0.0
    %1110 = vmatmul.mubr.f32.gmra.mrb[0].mxu0 %v119
    %v1111 = vpop.f32.mrb[0].mxu0
    %v1112 = vadd.f32 0.0, %v1111
    %v1113 = vpop.f32.mrb[0].mxu0
    %1114 = vdwg.mxu0
    %v1115 = vmul.f32 %v92, %v1097
    %v1116 = vmul.f32 %v93, %v1102
    %v1117 = vmul.f32 %v94, %v1107
    %v1118 = vmul.f32 %v95, %v1112
    %v1119 = vmul.f32 %v96, %v1107
    %v1120 = vmul.f32 %v97, %v1107
    %v1121 = vmul.f32 %v98, %v1107
    %v1122 = vmul.f32 %v99, %v1107
    %v1123 = vadd.f32 %v1119, %v100
    %v1124 = vadd.f32 %v1120, %v101
    %v1125 = vadd.f32 %v1121, %v102
    %v1126 = vadd.f32 %v1122, %v103
    %v1127 = vadd.f32 %v1115, %v1123
    %v1128 = vadd.f32 %v1116, %v1124
    %v1129 = vadd.f32 %v1117, %v1125
    %v1130 = vadd.f32 %v1118, %v1126
    %1131 = vmatprep.subr.mxu0 0.0
    %1132 = vmatpush1.msra.mxu0 %v1127
    %1133 = vmatprep.subr.mxu0 0.0
    %1134 = vmatpush1.msra.mxu0 %v1128
    %1135 = vmatprep.subr.mxu0 0.0
    %1136 = vmatpush1.msra.mxu0 %v1129
    %1137 = vmatprep.subr.mxu0 0.0
    %1138 = vmatpush1.msra.mxu0 %v1130
    %1139 = vmatprep.subr.mxu0 0.0
    %1140 = vmatpush1.msra.mxu0 0.0
    %1141 = vmatprep.subr.mxu0 0.0
    %1142 = vmatpush1.msra.mxu0 0.0
    %1143 = vmatprep.subr.mxu0 0.0
    %1144 = vmatpush1.msra.mxu0 0.0
    %1145 = vmatprep.subr.mxu0 0.0
    %1146 = vmatpush1.msra.mxu0 0.0
    %1147 = vmatprep.subr.mxu0 0.0
    %1148 = vmatpush1.msra.mxu0 0.0
    %1149 = vmatprep.subr.mxu0 0.0
    %1150 = vmatpush1.msra.mxu0 0.0
    %1151 = vmatprep.subr.mxu0 0.0
    %1152 = vmatpush1.msra.mxu0 0.0
    %1153 = vmatprep.subr.mxu0 0.0
    %1154 = vmatpush1.msra.mxu0 0.0
    %1155 = vmatprep.subr.mxu0 0.0
    %1156 = vmatpush1.msra.mxu0 0.0
    %1157 = vmatprep.subr.mxu0 0.0
    %1158 = vmatpush1.msra.mxu0 0.0
    %1159 = vmatprep.subr.mxu0 0.0
    %1160 = vmatpush1.msra.mxu0 0.0
    %1161 = vmatprep.subr.mxu0 0.0
    %1162 = vmatpush1.msra.mxu0 0.0
    %1163 = vmatprep.subr.mxu0 0.0
    %1164 = vmatpush1.msra.mxu0 0.0
    %1165 = vmatprep.subr.mxu0 0.0
    %1166 = vmatpush1.msra.mxu0 0.0
    %1167 = vmatprep.subr.mxu0 0.0
    %1168 = vmatpush1.msra.mxu0 0.0
    %1169 = vmatprep.subr.mxu0 0.0
    %1170 = vmatpush1.msra.mxu0 0.0
    %1171 = vmatprep.subr.mxu0 0.0
    %1172 = vmatpush1.msra.mxu0 0.0
    %1173 = vmatprep.subr.mxu0 0.0
    %1174 = vmatpush1.msra.mxu0 0.0
    %1175 = vmatprep.subr.mxu0 0.0
    %1176 = vmatpush1.msra.mxu0 0.0
    %1177 = vmatprep.subr.mxu0 0.0
    %1178 = vmatpush1.msra.mxu0 0.0
    %1179 = vmatprep.subr.mxu0 0.0
    %1180 = vmatpush1.msra.mxu0 0.0
    %1181 = vmatprep.subr.mxu0 0.0
    %1182 = vmatpush1.msra.mxu0 0.0
    %1183 = vmatprep.subr.mxu0 0.0
    %1184 = vmatpush1.msra.mxu0 0.0
    %1185 = vmatprep.subr.mxu0 0.0
    %1186 = vmatpush1.msra.mxu0 0.0
    %1187 = vmatprep.subr.mxu0 0.0
    %1188 = vmatpush1.msra.mxu0 0.0
    %1189 = vmatprep.subr.mxu0 0.0
    %1190 = vmatpush1.msra.mxu0 0.0
    %1191 = vmatprep.subr.mxu0 0.0
    %1192 = vmatpush1.msra.mxu0 0.0
    %1193 = vmatprep.subr.mxu0 0.0
    %1194 = vmatpush1.msra.mxu0 0.0
    %1195 = vmatprep.mubr.f32.mxu0 0.0
    %1196 = vmatmul.mubr.f32.gmra.mrb[0].mxu0 %v110
    %v1197 = vpop.f32.mrb[0].mxu0
    %v1198 = vadd.f32 0.0, %v1197
    %v1199 = vpop.f32.mrb[0].mxu0
    %1200 = vmatprep.mubr.f32.mxu0 0.0
    %1201 = vmatmul.mubr.f32.gmra.mrb[0].mxu0 %v113
    %v1202 = vpop.f32.mrb[0].mxu0
    %v1203 = vadd.f32 0.0, %v1202
    %v1204 = vpop.f32.mrb[0].mxu0
    %1205 = vmatprep.mubr.f32.mxu0 0.0
    %1206 = vmatmul.mubr.f32.gmra.mrb[0].mxu0 %v116
    %v1207 = vpop.f32.mrb[0].mxu0
    %v1208 = vadd.f32 0.0, %v1207
    %v1209 = vpop.f32.mrb[0].mxu0
    %1210 = vmatprep.mubr.f32.mxu0 0.0
    %1211 = vmatmul.mubr.f32.gmra.mrb[0].mxu0 %v119
    %v1212 = vpop.f32.mrb[0].mxu0
    %v1213 = vadd.f32 0.0, %v1212
    %v1214 = vpop.f32.mrb[0].mxu0
    %1215 = vdwg.mxu0
    %v1216 = vmul.f32 %v92, %v1198
    %v1217 = vmul.f32 %v93, %v1203
    %v1218 = vmul.f32 %v94, %v1208
    %v1219 = vmul.f32 %v95, %v1213
    %v1220 = vmul.f32 %v96, %v1208
    %v1221 = vmul.f32 %v97, %v1208
    %v1222 = vmul.f32 %v98, %v1208
    %v1223 = vmul.f32 %v99, %v1208
    %v1224 = vadd.f32 %v1220, %v100
    %v1225 = vadd.f32 %v1221, %v101
    %v1226 = vadd.f32 %v1222, %v102
    %v1227 = vadd.f32 %v1223, %v103
    %v1228 = vadd.f32 %v1216, %v1224
    %v1229 = vadd.f32 %v1217, %v1225
    %v1230 = vadd.f32 %v1218, %v1226
    %v1231 = vadd.f32 %v1219, %v1227
    %1232 = vmatprep.subr.mxu0 0.0
    %1233 = vmatpush1.msra.mxu0 %v1228
    %1234 = vmatprep.subr.mxu0 0.0
    %1235 = vmatpush1.msra.mxu0 %v1229
    %1236 = vmatprep.subr.mxu0 0.0
    %1237 = vmatpush1.msra.mxu0 %v1230
    %1238 = vmatprep.subr.mxu0 0.0
    %1239 = vmatpush1.msra.mxu0 %v1231
    %1240 = vmatprep.subr.mxu0 0.0
    %1241 = vmatpush1.msra.mxu0 0.0
    %1242 = vmatprep.subr.mxu0 0.0
    %1243 = vmatpush1.msra.mxu0 0.0
    %1244 = vmatprep.subr.mxu0 0.0
    %1245 = vmatpush1.msra.mxu0 0.0
    %1246 = vmatprep.subr.mxu0 0.0
    %1247 = vmatpush1.msra.mxu0 0.0
    %1248 = vmatprep.subr.mxu0 0.0
    %1249 = vmatpush1.msra.mxu0 0.0
    %1250 = vmatprep.subr.mxu0 0.0
    %1251 = vmatpush1.msra.mxu0 0.0
    %1252 = vmatprep.subr.mxu0 0.0
    %1253 = vmatpush1.msra.mxu0 0.0
    %1254 = vmatprep.subr.mxu0 0.0
    %1255 = vmatpush1.msra.mxu0 0.0
    %1256 = vmatprep.subr.mxu0 0.0
    %1257 = vmatpush1.msra.mxu0 0.0
    %1258 = vmatprep.subr.mxu0 0.0
    %1259 = vmatpush1.msra.mxu0 0.0
    %1260 = vmatprep.subr.mxu0 0.0
    %1261 = vmatpush1.msra.mxu0 0.0
    %1262 = vmatprep.subr.mxu0 0.0
    %1263 = vmatpush1.msra.mxu0 0.0
    %1264 = vmatprep.subr.mxu0 0.0
    %1265 = vmatpush1.msra.mxu0 0.0
    %1266 = vmatprep.subr.mxu0 0.0
    %1267 = vmatpush1.msra.mxu0 0.0
    %1268 = vmatprep.subr.mxu0 0.0
    %1269 = vmatpush1.msra.mxu0 0.0
    %1270 = vmatprep.subr.mxu0 0.0
    %1271 = vmatpush1.msra.mxu0 0.0
    %1272 = vmatprep.subr.mxu0 0.0
    %1273 = vmatpush1.msra.mxu0 0.0
    %1274 = vmatprep.subr.mxu0 0.0
    %1275 = vmatpush1.msra.mxu0 0.0
    %1276 = vmatprep.subr.mxu0 0.0
    %1277 = vmatpush1.msra.mxu0 0.0
    %1278 = vmatprep.subr.mxu0 0.0
    %1279 = vmatpush1.msra.mxu0 0.0
    %1280 = vmatprep.subr.mxu0 0.0
    %1281 = vmatpush1.msra.mxu0 0.0
    %1282 = vmatprep.subr.mxu0 0.0
    %1283 = vmatpush1.msra.mxu0 0.0
    %1284 = vmatprep.subr.mxu0 0.0
    %1285 = vmatpush1.msra.mxu0 0.0
    %1286 = vmatprep.subr.mxu0 0.0
    %1287 = vmatpush1.msra.mxu0 0.0
    %1288 = vmatprep.subr.mxu0 0.0
    %1289 = vmatpush1.msra.mxu0 0.0
    %1290 = vmatprep.subr.mxu0 0.0
    %1291 = vmatpush1.msra.mxu0 0.0
    %1292 = vmatprep.subr.mxu0 0.0
    %1293 = vmatpush1.msra.mxu0 0.0
    %1294 = vmatprep.subr.mxu0 0.0
    %1295 = vmatpush1.msra.mxu0 0.0
    %1296 = vmatprep.mubr.f32.mxu0 0.0
    %1297 = vmatmul.mubr.f32.gmra.mrb[0].mxu0 %v110
    %v1298 = vpop.f32.mrb[0].mxu0
    %v1299 = vadd.f32 0.0, %v1298
    %v1300 = vpop.f32.mrb[0].mxu0
    %1301 = vmatprep.mubr.f32.mxu0 0.0
    %1302 = vmatmul.mubr.f32.gmra.mrb[0].mxu0 %v113
    %v1303 = vpop.f32.mrb[0].mxu0
    %v1304 = vadd.f32 0.0, %v1303
    %v1305 = vpop.f32.mrb[0].mxu0
    %1306 = vmatprep.mubr.f32.mxu0 0.0
    %1307 = vmatmul.mubr.f32.gmra.mrb[0].mxu0 %v116
    %v1308 = vpop.f32.mrb[0].mxu0
    %v1309 = vadd.f32 0.0, %v1308
    %v1310 = vpop.f32.mrb[0].mxu0
    %1311 = vmatprep.mubr.f32.mxu0 0.0
    %1312 = vmatmul.mubr.f32.gmra.mrb[0].mxu0 %v119
    %v1313 = vpop.f32.mrb[0].mxu0
    %v1314 = vadd.f32 0.0, %v1313
    %v1315 = vpop.f32.mrb[0].mxu0
    %1316 = vdwg.mxu0
    %v1317 = vmul.f32 %v92, %v1299
    %v1318 = vmul.f32 %v93, %v1304
    %v1319 = vmul.f32 %v94, %v1309
    %v1320 = vmul.f32 %v95, %v1314
    %v1321 = vmul.f32 %v96, %v1309
    %v1322 = vmul.f32 %v97, %v1309
    %v1323 = vmul.f32 %v98, %v1309
    %v1324 = vmul.f32 %v99, %v1309
    %v1325 = vadd.f32 %v1321, %v100
    %v1326 = vadd.f32 %v1322, %v101
    %v1327 = vadd.f32 %v1323, %v102
    %v1328 = vadd.f32 %v1324, %v103
    %v1329 = vadd.f32 %v1317, %v1325
    %v1330 = vadd.f32 %v1318, %v1326
    %v1331 = vadd.f32 %v1319, %v1327
    %v1332 = vadd.f32 %v1320, %v1328
    %1333 = vmatprep.subr.mxu0 0.0
    %1334 = vmatpush1.msra.mxu0 %v1329
    %1335 = vmatprep.subr.mxu0 0.0
    %1336 = vmatpush1.msra.mxu0 %v1330
    %1337 = vmatprep.subr.mxu0 0.0
    %1338 = vmatpush1.msra.mxu0 %v1331
    %1339 = vmatprep.subr.mxu0 0.0
    %1340 = vmatpush1.msra.mxu0 %v1332
    %1341 = vmatprep.subr.mxu0 0.0
    %1342 = vmatpush1.msra.mxu0 0.0
    %1343 = vmatprep.subr.mxu0 0.0
    %1344 = vmatpush1.msra.mxu0 0.0
    %1345 = vmatprep.subr.mxu0 0.0
    %1346 = vmatpush1.msra.mxu0 0.0
    %1347 = vmatprep.subr.mxu0 0.0
    %1348 = vmatpush1.msra.mxu0 0.0
    %1349 = vmatprep.subr.mxu0 0.0
    %1350 = vmatpush1.msra.mxu0 0.0
    %1351 = vmatprep.subr.mxu0 0.0
    %1352 = vmatpush1.msra.mxu0 0.0
    %1353 = vmatprep.subr.mxu0 0.0
    %1354 = vmatpush1.msra.mxu0 0.0
    %1355 = vmatprep.subr.mxu0 0.0
    %1356 = vmatpush1.msra.mxu0 0.0
    %1357 = vmatprep.subr.mxu0 0.0
    %1358 = vmatpush1.msra.mxu0 0.0
    %1359 = vmatprep.subr.mxu0 0.0
    %1360 = vmatpush1.msra.mxu0 0.0
    %1361 = vmatprep.subr.mxu0 0.0
    %1362 = vmatpush1.msra.mxu0 0.0
    %1363 = vmatprep.subr.mxu0 0.0
    %1364 = vmatpush1.msra.mxu0 0.0
    %1365 = vmatprep.subr.mxu0 0.0
    %1366 = vmatpush1.msra.mxu0 0.0
    %1367 = vmatprep.subr.mxu0 0.0
    %1368 = vmatpush1.msra.mxu0 0.0
    %1369 = vmatprep.subr.mxu0 0.0
    %1370 = vmatpush1.msra.mxu0 0.0
    %1371 = vmatprep.subr.mxu0 0.0
    %1372 = vmatpush1.msra.mxu0 0.0
    %1373 = vmatprep.subr.mxu0 0.0
    %1374 = vmatpush1.msra.mxu0 0.0
    %1375 = vmatprep.subr.mxu0 0.0
    %1376 = vmatpush1.msra.mxu0 0.0
    %1377 = vmatprep.subr.mxu0 0.0
    %1378 = vmatpush1.msra.mxu0 0.0
    %1379 = vmatprep.subr.mxu0 0.0
    %1380 = vmatpush1.msra.mxu0 0.0
    %1381 = vmatprep.subr.mxu0 0.0
    %1382 = vmatpush1.msra.mxu0 0.0
    %1383 = vmatprep.subr.mxu0 0.0
    %1384 = vmatpush1.msra.mxu0 0.0
    %1385 = vmatprep.subr.mxu0 0.0
    %1386 = vmatpush1.msra.mxu0 0.0
    %1387 = vmatprep.subr.mxu0 0.0
    %1388 = vmatpush1.msra.mxu0 0.0
    %1389 = vmatprep.subr.mxu0 0.0
    %1390 = vmatpush1.msra.mxu0 0.0
    %1391 = vmatprep.subr.mxu0 0.0
    %1392 = vmatpush1.msra.mxu0 0.0
    %1393 = vmatprep.subr.mxu0 0.0
    %1394 = vmatpush1.msra.mxu0 0.0
    %1395 = vmatprep.subr.mxu0 0.0
    %1396 = vmatpush1.msra.mxu0 0.0
    %1397 = vmatprep.mubr.f32.mxu0 0.0
    %1398 = vmatmul.mubr.f32.gmra.mrb[0].mxu0 %v110
    %v1399 = vpop.f32.mrb[0].mxu0
    %v1400 = vadd.f32 0.0, %v1399
    %v1401 = vpop.f32.mrb[0].mxu0
    %1402 = vmatprep.mubr.f32.mxu0 0.0
    %1403 = vmatmul.mubr.f32.gmra.mrb[0].mxu0 %v113
    %v1404 = vpop.f32.mrb[0].mxu0
    %v1405 = vadd.f32 0.0, %v1404
    %v1406 = vpop.f32.mrb[0].mxu0
    %1407 = vmatprep.mubr.f32.mxu0 0.0
    %1408 = vmatmul.mubr.f32.gmra.mrb[0].mxu0 %v116
    %v1409 = vpop.f32.mrb[0].mxu0
    %v1410 = vadd.f32 0.0, %v1409
    %v1411 = vpop.f32.mrb[0].mxu0
    %1412 = vmatprep.mubr.f32.mxu0 0.0
    %1413 = vmatmul.mubr.f32.gmra.mrb[0].mxu0 %v119
    %v1414 = vpop.f32.mrb[0].mxu0
    %v1415 = vadd.f32 0.0, %v1414
    %v1416 = vpop.f32.mrb[0].mxu0
    %1417 = vdwg.mxu0
    %v1418 = vmul.f32 %v92, %v1400
    %v1419 = vmul.f32 %v93, %v1405
    %v1420 = vmul.f32 %v94, %v1410
    %v1421 = vmul.f32 %v95, %v1415
    %v1422 = vmul.f32 %v96, %v1410
    %v1423 = vmul.f32 %v97, %v1410
    %v1424 = vmul.f32 %v98, %v1410
    %v1425 = vmul.f32 %v99, %v1410
    %v1426 = vadd.f32 %v1422, %v100
    %v1427 = vadd.f32 %v1423, %v101
    %v1428 = vadd.f32 %v1424, %v102
    %v1429 = vadd.f32 %v1425, %v103
    %v1430 = vadd.f32 %v1418, %v1426
    %v1431 = vadd.f32 %v1419, %v1427
    %v1432 = vadd.f32 %v1420, %v1428
    %v1433 = vadd.f32 %v1421, %v1429
    %1434 = vmatprep.subr.mxu0 0.0
    %1435 = vmatpush1.msra.mxu0 %v1430
    %1436 = vmatprep.subr.mxu0 0.0
    %1437 = vmatpush1.msra.mxu0 %v1431
    %1438 = vmatprep.subr.mxu0 0.0
    %1439 = vmatpush1.msra.mxu0 %v1432
    %1440 = vmatprep.subr.mxu0 0.0
    %1441 = vmatpush1.msra.mxu0 %v1433
    %1442 = vmatprep.subr.mxu0 0.0
    %1443 = vmatpush1.msra.mxu0 0.0
    %1444 = vmatprep.subr.mxu0 0.0
    %1445 = vmatpush1.msra.mxu0 0.0
    %1446 = vmatprep.subr.mxu0 0.0
    %1447 = vmatpush1.msra.mxu0 0.0
    %1448 = vmatprep.subr.mxu0 0.0
    %1449 = vmatpush1.msra.mxu0 0.0
    %1450 = vmatprep.subr.mxu0 0.0
    %1451 = vmatpush1.msra.mxu0 0.0
    %1452 = vmatprep.subr.mxu0 0.0
    %1453 = vmatpush1.msra.mxu0 0.0
    %1454 = vmatprep.subr.mxu0 0.0
    %1455 = vmatpush1.msra.mxu0 0.0
    %1456 = vmatprep.subr.mxu0 0.0
    %1457 = vmatpush1.msra.mxu0 0.0
    %1458 = vmatprep.subr.mxu0 0.0
    %1459 = vmatpush1.msra.mxu0 0.0
    %1460 = vmatprep.subr.mxu0 0.0
    %1461 = vmatpush1.msra.mxu0 0.0
    %1462 = vmatprep.subr.mxu0 0.0
    %1463 = vmatpush1.msra.mxu0 0.0
    %1464 = vmatprep.subr.mxu0 0.0
    %1465 = vmatpush1.msra.mxu0 0.0
    %1466 = vmatprep.subr.mxu0 0.0
    %1467 = vmatpush1.msra.mxu0 0.0
    %1468 = vmatprep.subr.mxu0 0.0
    %1469 = vmatpush1.msra.mxu0 0.0
    %1470 = vmatprep.subr.mxu0 0.0
    %1471 = vmatpush1.msra.mxu0 0.0
    %1472 = vmatprep.subr.mxu0 0.0
    %1473 = vmatpush1.msra.mxu0 0.0
    %1474 = vmatprep.subr.mxu0 0.0
    %1475 = vmatpush1.msra.mxu0 0.0
    %1476 = vmatprep.subr.mxu0 0.0
    %1477 = vmatpush1.msra.mxu0 0.0
    %1478 = vmatprep.subr.mxu0 0.0
    %1479 = vmatpush1.msra.mxu0 0.0
    %1480 = vmatprep.subr.mxu0 0.0
    %1481 = vmatpush1.msra.mxu0 0.0
    %1482 = vmatprep.subr.mxu0 0.0
    %1483 = vmatpush1.msra.mxu0 0.0
    %1484 = vmatprep.subr.mxu0 0.0
    %1485 = vmatpush1.msra.mxu0 0.0
    %1486 = vmatprep.subr.mxu0 0.0
    %1487 = vmatpush1.msra.mxu0 0.0
    %1488 = vmatprep.subr.mxu0 0.0
    %1489 = vmatpush1.msra.mxu0 0.0
    %1490 = vmatprep.subr.mxu0 0.0
    %1491 = vmatpush1.msra.mxu0 0.0
    %1492 = vmatprep.subr.mxu0 0.0
    %1493 = vmatpush1.msra.mxu0 0.0
    %1494 = vmatprep.subr.mxu0 0.0
    %1495 = vmatpush1.msra.mxu0 0.0
    %1496 = vmatprep.subr.mxu0 0.0
    %1497 = vmatpush1.msra.mxu0 0.0
    %1498 = vmatprep.mubr.f32.mxu0 0.0
    %1499 = vmatmul.mubr.f32.gmra.mrb[0].mxu0 %v110
    %v1500 = vpop.f32.mrb[0].mxu0
    %v1501 = vadd.f32 0.0, %v1500
    %v1502 = vpop.f32.mrb[0].mxu0
    %1503 = vmatprep.mubr.f32.mxu0 0.0
    %1504 = vmatmul.mubr.f32.gmra.mrb[0].mxu0 %v113
    %v1505 = vpop.f32.mrb[0].mxu0
    %v1506 = vadd.f32 0.0, %v1505
    %v1507 = vpop.f32.mrb[0].mxu0
    %1508 = vmatprep.mubr.f32.mxu0 0.0
    %1509 = vmatmul.mubr.f32.gmra.mrb[0].mxu0 %v116
    %v1510 = vpop.f32.mrb[0].mxu0
    %v1511 = vadd.f32 0.0, %v1510
    %v1512 = vpop.f32.mrb[0].mxu0
    %1513 = vmatprep.mubr.f32.mxu0 0.0
    %1514 = vmatmul.mubr.f32.gmra.mrb[0].mxu0 %v119
    %v1515 = vpop.f32.mrb[0].mxu0
    %v1516 = vadd.f32 0.0, %v1515
    %v1517 = vpop.f32.mrb[0].mxu0
    %1518 = vdwg.mxu0
    %v1519 = vmul.f32 %v92, %v1501
    %v1520 = vmul.f32 %v93, %v1506
    %v1521 = vmul.f32 %v94, %v1511
    %v1522 = vmul.f32 %v95, %v1516
    %v1523 = vmul.f32 %v96, %v1511
    %v1524 = vmul.f32 %v97, %v1511
    %v1525 = vmul.f32 %v98, %v1511
    %v1526 = vmul.f32 %v99, %v1511
    %v1527 = vadd.f32 %v1523, %v100
    %v1528 = vadd.f32 %v1524, %v101
    %v1529 = vadd.f32 %v1525, %v102
    %v1530 = vadd.f32 %v1526, %v103
    %v1531 = vadd.f32 %v1519, %v1527
    %v1532 = vadd.f32 %v1520, %v1528
    %v1533 = vadd.f32 %v1521, %v1529
    %v1534 = vadd.f32 %v1522, %v1530
    %1535 = vmatprep.subr.mxu0 0.0
    %1536 = vmatpush1.msra.mxu0 %v1531
    %1537 = vmatprep.subr.mxu0 0.0
    %1538 = vmatpush1.msra.mxu0 %v1532
    %1539 = vmatprep.subr.mxu0 0.0
    %1540 = vmatpush1.msra.mxu0 %v1533
    %1541 = vmatprep.subr.mxu0 0.0
    %1542 = vmatpush1.msra.mxu0 %v1534
    %1543 = vmatprep.subr.mxu0 0.0
    %1544 = vmatpush1.msra.mxu0 0.0
    %1545 = vmatprep.subr.mxu0 0.0
    %1546 = vmatpush1.msra.mxu0 0.0
    %1547 = vmatprep.subr.mxu0 0.0
    %1548 = vmatpush1.msra.mxu0 0.0
    %1549 = vmatprep.subr.mxu0 0.0
    %1550 = vmatpush1.msra.mxu0 0.0
    %1551 = vmatprep.subr.mxu0 0.0
    %1552 = vmatpush1.msra.mxu0 0.0
    %1553 = vmatprep.subr.mxu0 0.0
    %1554 = vmatpush1.msra.mxu0 0.0
    %1555 = vmatprep.subr.mxu0 0.0
    %1556 = vmatpush1.msra.mxu0 0.0
    %1557 = vmatprep.subr.mxu0 0.0
    %1558 = vmatpush1.msra.mxu0 0.0
    %1559 = vmatprep.subr.mxu0 0.0
    %1560 = vmatpush1.msra.mxu0 0.0
    %1561 = vmatprep.subr.mxu0 0.0
    %1562 = vmatpush1.msra.mxu0 0.0
    %1563 = vmatprep.subr.mxu0 0.0
    %1564 = vmatpush1.msra.mxu0 0.0
    %1565 = vmatprep.subr.mxu0 0.0
    %1566 = vmatpush1.msra.mxu0 0.0
    %1567 = vmatprep.subr.mxu0 0.0
    %1568 = vmatpush1.msra.mxu0 0.0
    %1569 = vmatprep.subr.mxu0 0.0
    %1570 = vmatpush1.msra.mxu0 0.0
    %1571 = vmatprep.subr.mxu0 0.0
    %1572 = vmatpush1.msra.mxu0 0.0
    %1573 = vmatprep.subr.mxu0 0.0
    %1574 = vmatpush1.msra.mxu0 0.0
    %1575 = vmatprep.subr.mxu0 0.0
    %1576 = vmatpush1.msra.mxu0 0.0
    %1577 = vmatprep.subr.mxu0 0.0
    %1578 = vmatpush1.msra.mxu0 0.0
    %1579 = vmatprep.subr.mxu0 0.0
    %1580 = vmatpush1.msra.mxu0 0.0
    %1581 = vmatprep.subr.mxu0 0.0
    %1582 = vmatpush1.msra.mxu0 0.0
    %1583 = vmatprep.subr.mxu0 0.0
    %1584 = vmatpush1.msra.mxu0 0.0
    %1585 = vmatprep.subr.mxu0 0.0
    %1586 = vmatpush1.msra.mxu0 0.0
    %1587 = vmatprep.subr.mxu0 0.0
    %1588 = vmatpush1.msra.mxu0 0.0
    %1589 = vmatprep.subr.mxu0 0.0
    %1590 = vmatpush1.msra.mxu0 0.0
    %1591 = vmatprep.subr.mxu0 0.0
    %1592 = vmatpush1.msra.mxu0 0.0
    %1593 = vmatprep.subr.mxu0 0.0
    %1594 = vmatpush1.msra.mxu0 0.0
    %1595 = vmatprep.subr.mxu0 0.0
    %1596 = vmatpush1.msra.mxu0 0.0
    %1597 = vmatprep.subr.mxu0 0.0
    %1598 = vmatpush1.msra.mxu0 0.0
    %1599 = vmatprep.mubr.f32.mxu0 0.0
    %1600 = vmatmul.mubr.f32.gmra.mrb[0].mxu0 %v110
    %v1601 = vpop.f32.mrb[0].mxu0
    %v1602 = vadd.f32 0.0, %v1601
    %v1603 = vpop.f32.mrb[0].mxu0
    %1604 = vmatprep.mubr.f32.mxu0 0.0
    %1605 = vmatmul.mubr.f32.gmra.mrb[0].mxu0 %v113
    %v1606 = vpop.f32.mrb[0].mxu0
    %v1607 = vadd.f32 0.0, %v1606
    %v1608 = vpop.f32.mrb[0].mxu0
    %1609 = vmatprep.mubr.f32.mxu0 0.0
    %1610 = vmatmul.mubr.f32.gmra.mrb[0].mxu0 %v116
    %v1611 = vpop.f32.mrb[0].mxu0
    %v1612 = vadd.f32 0.0, %v1611
    %v1613 = vpop.f32.mrb[0].mxu0
    %1614 = vmatprep.mubr.f32.mxu0 0.0
    %1615 = vmatmul.mubr.f32.gmra.mrb[0].mxu0 %v119
    %v1616 = vpop.f32.mrb[0].mxu0
    %v1617 = vadd.f32 0.0, %v1616
    %v1618 = vpop.f32.mrb[0].mxu0
    %1619 = vdwg.mxu0
    %v1620 = vmul.f32 %v92, %v1602
    %v1621 = vmul.f32 %v93, %v1607
    %v1622 = vmul.f32 %v94, %v1612
    %v1623 = vmul.f32 %v95, %v1617
    %v1624 = vmul.f32 %v96, %v1612
    %v1625 = vmul.f32 %v97, %v1612
    %v1626 = vmul.f32 %v98, %v1612
    %v1627 = vmul.f32 %v99, %v1612
    %v1628 = vadd.f32 %v1624, %v100
    %v1629 = vadd.f32 %v1625, %v101
    %v1630 = vadd.f32 %v1626, %v102
    %v1631 = vadd.f32 %v1627, %v103
    %v1632 = vadd.f32 %v1620, %v1628
    %v1633 = vadd.f32 %v1621, %v1629
    %v1634 = vadd.f32 %v1622, %v1630
    %v1635 = vadd.f32 %v1623, %v1631
    %1636 = vmatprep.subr.mxu0 0.0
    %1637 = vmatpush1.msra.mxu0 %v1632
    %1638 = vmatprep.subr.mxu0 0.0
    %1639 = vmatpush1.msra.mxu0 %v1633
    %1640 = vmatprep.subr.mxu0 0.0
    %1641 = vmatpush1.msra.mxu0 %v1634
    %1642 = vmatprep.subr.mxu0 0.0
    %1643 = vmatpush1.msra.mxu0 %v1635
    %1644 = vmatprep.subr.mxu0 0.0
    %1645 = vmatpush1.msra.mxu0 0.0
    %1646 = vmatprep.subr.mxu0 0.0
    %1647 = vmatpush1.msra.mxu0 0.0
    %1648 = vmatprep.subr.mxu0 0.0
    %1649 = vmatpush1.msra.mxu0 0.0
    %1650 = vmatprep.subr.mxu0 0.0
    %1651 = vmatpush1.msra.mxu0 0.0
    %1652 = vmatprep.subr.mxu0 0.0
    %1653 = vmatpush1.msra.mxu0 0.0
    %1654 = vmatprep.subr.mxu0 0.0
    %1655 = vmatpush1.msra.mxu0 0.0
    %1656 = vmatprep.subr.mxu0 0.0
    %1657 = vmatpush1.msra.mxu0 0.0
    %1658 = vmatprep.subr.mxu0 0.0
    %1659 = vmatpush1.msra.mxu0 0.0
    %1660 = vmatprep.subr.mxu0 0.0
    %1661 = vmatpush1.msra.mxu0 0.0
    %1662 = vmatprep.subr.mxu0 0.0
    %1663 = vmatpush1.msra.mxu0 0.0
    %1664 = vmatprep.subr.mxu0 0.0
    %1665 = vmatpush1.msra.mxu0 0.0
    %1666 = vmatprep.subr.mxu0 0.0
    %1667 = vmatpush1.msra.mxu0 0.0
    %1668 = vmatprep.subr.mxu0 0.0
    %1669 = vmatpush1.msra.mxu0 0.0
    %1670 = vmatprep.subr.mxu0 0.0
    %1671 = vmatpush1.msra.mxu0 0.0
    %1672 = vmatprep.subr.mxu0 0.0
    %1673 = vmatpush1.msra.mxu0 0.0
    %1674 = vmatprep.subr.mxu0 0.0
    %1675 = vmatpush1.msra.mxu0 0.0
    %1676 = vmatprep.subr.mxu0 0.0
    %1677 = vmatpush1.msra.mxu0 0.0
    %1678 = vmatprep.subr.mxu0 0.0
    %1679 = vmatpush1.msra.mxu0 0.0
    %1680 = vmatprep.subr.mxu0 0.0
    %1681 = vmatpush1.msra.mxu0 0.0
    %1682 = vmatprep.subr.mxu0 0.0
    %1683 = vmatpush1.msra.mxu0 0.0
    %1684 = vmatprep.subr.mxu0 0.0
    %1685 = vmatpush1.msra.mxu0 0.0
    %1686 = vmatprep.subr.mxu0 0.0
    %1687 = vmatpush1.msra.mxu0 0.0
    %1688 = vmatprep.subr.mxu0 0.0
    %1689 = vmatpush1.msra.mxu0 0.0
    %1690 = vmatprep.subr.mxu0 0.0
    %1691 = vmatpush1.msra.mxu0 0.0
    %1692 = vmatprep.subr.mxu0 0.0
    %1693 = vmatpush1.msra.mxu0 0.0
    %1694 = vmatprep.subr.mxu0 0.0
    %1695 = vmatpush1.msra.mxu0 0.0
    %1696 = vmatprep.subr.mxu0 0.0
    %1697 = vmatpush1.msra.mxu0 0.0
    %1698 = vmatprep.subr.mxu0 0.0
    %1699 = vmatpush1.msra.mxu0 0.0
    %1700 = vmatprep.mubr.f32.mxu0 0.0
    %1701 = vmatmul.mubr.f32.gmra.mrb[0].mxu0 %v110
    %v1702 = vpop.f32.mrb[0].mxu0
    %v1703 = vadd.f32 0.0, %v1702
    %v1704 = vpop.f32.mrb[0].mxu0
    %1705 = vmatprep.mubr.f32.mxu0 0.0
    %1706 = vmatmul.mubr.f32.gmra.mrb[0].mxu0 %v113
    %v1707 = vpop.f32.mrb[0].mxu0
    %v1708 = vadd.f32 0.0, %v1707
    %v1709 = vpop.f32.mrb[0].mxu0
    %1710 = vmatprep.mubr.f32.mxu0 0.0
    %1711 = vmatmul.mubr.f32.gmra.mrb[0].mxu0 %v116
    %v1712 = vpop.f32.mrb[0].mxu0
    %v1713 = vadd.f32 0.0, %v1712
    %v1714 = vpop.f32.mrb[0].mxu0
    %1715 = vmatprep.mubr.f32.mxu0 0.0
    %1716 = vmatmul.mubr.f32.gmra.mrb[0].mxu0 %v119
    %v1717 = vpop.f32.mrb[0].mxu0
    %v1718 = vadd.f32 0.0, %v1717
    %v1719 = vpop.f32.mrb[0].mxu0
    %1720 = vdwg.mxu0
    %v1721 = vmul.f32 %v92, %v1703
    %v1722 = vmul.f32 %v93, %v1708
    %v1723 = vmul.f32 %v94, %v1713
    %v1724 = vmul.f32 %v95, %v1718
    %v1725 = vmul.f32 %v96, %v1713
    %v1726 = vmul.f32 %v97, %v1713
    %v1727 = vmul.f32 %v98, %v1713
    %v1728 = vmul.f32 %v99, %v1713
    %v1729 = vadd.f32 %v1725, %v100
    %v1730 = vadd.f32 %v1726, %v101
    %v1731 = vadd.f32 %v1727, %v102
    %v1732 = vadd.f32 %v1728, %v103
    %v1733 = vadd.f32 %v1721, %v1729
    %v1734 = vadd.f32 %v1722, %v1730
    %v1735 = vadd.f32 %v1723, %v1731
    %v1736 = vadd.f32 %v1724, %v1732
    %1737 = vmatprep.subr.mxu0 0.0
    %1738 = vmatpush1.msra.mxu0 %v1733
    %1739 = vmatprep.subr.mxu0 0.0
    %1740 = vmatpush1.msra.mxu0 %v1734
    %1741 = vmatprep.subr.mxu0 0.0
    %1742 = vmatpush1.msra.mxu0 %v1735
    %1743 = vmatprep.subr.mxu0 0.0
    %1744 = vmatpush1.msra.mxu0 %v1736
    %1745 = vmatprep.subr.mxu0 0.0
    %1746 = vmatpush1.msra.mxu0 0.0
    %1747 = vmatprep.subr.mxu0 0.0
    %1748 = vmatpush1.msra.mxu0 0.0
    %1749 = vmatprep.subr.mxu0 0.0
    %1750 = vmatpush1.msra.mxu0 0.0
    %1751 = vmatprep.subr.mxu0 0.0
    %1752 = vmatpush1.msra.mxu0 0.0
    %1753 = vmatprep.subr.mxu0 0.0
    %1754 = vmatpush1.msra.mxu0 0.0
    %1755 = vmatprep.subr.mxu0 0.0
    %1756 = vmatpush1.msra.mxu0 0.0
    %1757 = vmatprep.subr.mxu0 0.0
    %1758 = vmatpush1.msra.mxu0 0.0
    %1759 = vmatprep.subr.mxu0 0.0
    %1760 = vmatpush1.msra.mxu0 0.0
    %1761 = vmatprep.subr.mxu0 0.0
    %1762 = vmatpush1.msra.mxu0 0.0
    %1763 = vmatprep.subr.mxu0 0.0
    %1764 = vmatpush1.msra.mxu0 0.0
    %1765 = vmatprep.subr.mxu0 0.0
    %1766 = vmatpush1.msra.mxu0 0.0
    %1767 = vmatprep.subr.mxu0 0.0
    %1768 = vmatpush1.msra.mxu0 0.0
    %1769 = vmatprep.subr.mxu0 0.0
    %1770 = vmatpush1.msra.mxu0 0.0
    %1771 = vmatprep.subr.mxu0 0.0
    %1772 = vmatpush1.msra.mxu0 0.0
    %1773 = vmatprep.subr.mxu0 0.0
    %1774 = vmatpush1.msra.mxu0 0.0
    %1775 = vmatprep.subr.mxu0 0.0
    %1776 = vmatpush1.msra.mxu0 0.0
    %1777 = vmatprep.subr.mxu0 0.0
    %1778 = vmatpush1.msra.mxu0 0.0
    %1779 = vmatprep.subr.mxu0 0.0
    %1780 = vmatpush1.msra.mxu0 0.0
    %1781 = vmatprep.subr.mxu0 0.0
    %1782 = vmatpush1.msra.mxu0 0.0
    %1783 = vmatprep.subr.mxu0 0.0
    %1784 = vmatpush1.msra.mxu0 0.0
    %1785 = vmatprep.subr.mxu0 0.0
    %1786 = vmatpush1.msra.mxu0 0.0
    %1787 = vmatprep.subr.mxu0 0.0
    %1788 = vmatpush1.msra.mxu0 0.0
    %1789 = vmatprep.subr.mxu0 0.0
    %1790 = vmatpush1.msra.mxu0 0.0
    %1791 = vmatprep.subr.mxu0 0.0
    %1792 = vmatpush1.msra.mxu0 0.0
    %1793 = vmatprep.subr.mxu0 0.0
    %1794 = vmatpush1.msra.mxu0 0.0
    %1795 = vmatprep.subr.mxu0 0.0
    %1796 = vmatpush1.msra.mxu0 0.0
    %1797 = vmatprep.subr.mxu0 0.0
    %1798 = vmatpush1.msra.mxu0 0.0
    %1799 = vmatprep.subr.mxu0 0.0
    %1800 = vmatpush1.msra.mxu0 0.0
    %1801 = vmatprep.mubr.f32.mxu0 0.0
    %1802 = vmatmul.mubr.f32.gmra.mrb[0].mxu0 %v110
    %v1803 = vpop.f32.mrb[0].mxu0
    %v1804 = vadd.f32 0.0, %v1803
    %v1805 = vpop.f32.mrb[0].mxu0
    %1806 = vmatprep.mubr.f32.mxu0 0.0
    %1807 = vmatmul.mubr.f32.gmra.mrb[0].mxu0 %v113
    %v1808 = vpop.f32.mrb[0].mxu0
    %v1809 = vadd.f32 0.0, %v1808
    %v1810 = vpop.f32.mrb[0].mxu0
    %1811 = vmatprep.mubr.f32.mxu0 0.0
    %1812 = vmatmul.mubr.f32.gmra.mrb[0].mxu0 %v116
    %v1813 = vpop.f32.mrb[0].mxu0
    %v1814 = vadd.f32 0.0, %v1813
    %v1815 = vpop.f32.mrb[0].mxu0
    %1816 = vmatprep.mubr.f32.mxu0 0.0
    %1817 = vmatmul.mubr.f32.gmra.mrb[0].mxu0 %v119
    %v1818 = vpop.f32.mrb[0].mxu0
    %v1819 = vadd.f32 0.0, %v1818
    %v1820 = vpop.f32.mrb[0].mxu0
    %1821 = vdwg.mxu0
    %v1822 = vmul.f32 %v92, %v1804
    %v1823 = vmul.f32 %v93, %v1809
    %v1824 = vmul.f32 %v94, %v1814
    %v1825 = vmul.f32 %v95, %v1819
    %v1826 = vmul.f32 %v96, %v1814
    %v1827 = vmul.f32 %v97, %v1814
    %v1828 = vmul.f32 %v98, %v1814
    %v1829 = vmul.f32 %v99, %v1814
    %v1830 = vadd.f32 %v1826, %v100
    %v1831 = vadd.f32 %v1827, %v101
    %v1832 = vadd.f32 %v1828, %v102
    %v1833 = vadd.f32 %v1829, %v103
    %v1834 = vadd.f32 %v1822, %v1830
    %v1835 = vadd.f32 %v1823, %v1831
    %v1836 = vadd.f32 %v1824, %v1832
    %v1837 = vadd.f32 %v1825, %v1833
    %1838 = vmatprep.subr.mxu0 0.0
    %1839 = vmatpush1.msra.mxu0 %v1834
    %1840 = vmatprep.subr.mxu0 0.0
    %1841 = vmatpush1.msra.mxu0 %v1835
    %1842 = vmatprep.subr.mxu0 0.0
    %1843 = vmatpush1.msra.mxu0 %v1836
    %1844 = vmatprep.subr.mxu0 0.0
    %1845 = vmatpush1.msra.mxu0 %v1837
    %1846 = vmatprep.subr.mxu0 0.0
    %1847 = vmatpush1.msra.mxu0 0.0
    %1848 = vmatprep.subr.mxu0 0.0
    %1849 = vmatpush1.msra.mxu0 0.0
    %1850 = vmatprep.subr.mxu0 0.0
    %1851 = vmatpush1.msra.mxu0 0.0
    %1852 = vmatprep.subr.mxu0 0.0
    %1853 = vmatpush1.msra.mxu0 0.0
    %1854 = vmatprep.subr.mxu0 0.0
    %1855 = vmatpush1.msra.mxu0 0.0
    %1856 = vmatprep.subr.mxu0 0.0
    %1857 = vmatpush1.msra.mxu0 0.0
    %1858 = vmatprep.subr.mxu0 0.0
    %1859 = vmatpush1.msra.mxu0 0.0
    %1860 = vmatprep.subr.mxu0 0.0
    %1861 = vmatpush1.msra.mxu0 0.0
    %1862 = vmatprep.subr.mxu0 0.0
    %1863 = vmatpush1.msra.mxu0 0.0
    %1864 = vmatprep.subr.mxu0 0.0
    %1865 = vmatpush1.msra.mxu0 0.0
    %1866 = vmatprep.subr.mxu0 0.0
    %1867 = vmatpush1.msra.mxu0 0.0
    %1868 = vmatprep.subr.mxu0 0.0
    %1869 = vmatpush1.msra.mxu0 0.0
    %1870 = vmatprep.subr.mxu0 0.0
    %1871 = vmatpush1.msra.mxu0 0.0
    %1872 = vmatprep.subr.mxu0 0.0
    %1873 = vmatpush1.msra.mxu0 0.0
    %1874 = vmatprep.subr.mxu0 0.0
    %1875 = vmatpush1.msra.mxu0 0.0
    %1876 = vmatprep.subr.mxu0 0.0
    %1877 = vmatpush1.msra.mxu0 0.0
    %1878 = vmatprep.subr.mxu0 0.0
    %1879 = vmatpush1.msra.mxu0 0.0
    %1880 = vmatprep.subr.mxu0 0.0
    %1881 = vmatpush1.msra.mxu0 0.0
    %1882 = vmatprep.subr.mxu0 0.0
    %1883 = vmatpush1.msra.mxu0 0.0
    %1884 = vmatprep.subr.mxu0 0.0
    %1885 = vmatpush1.msra.mxu0 0.0
    %1886 = vmatprep.subr.mxu0 0.0
    %1887 = vmatpush1.msra.mxu0 0.0
    %1888 = vmatprep.subr.mxu0 0.0
    %1889 = vmatpush1.msra.mxu0 0.0
    %1890 = vmatprep.subr.mxu0 0.0
    %1891 = vmatpush1.msra.mxu0 0.0
    %1892 = vmatprep.subr.mxu0 0.0
    %1893 = vmatpush1.msra.mxu0 0.0
    %1894 = vmatprep.subr.mxu0 0.0
    %1895 = vmatpush1.msra.mxu0 0.0
    %1896 = vmatprep.subr.mxu0 0.0
    %1897 = vmatpush1.msra.mxu0 0.0
    %1898 = vmatprep.subr.mxu0 0.0
    %1899 = vmatpush1.msra.mxu0 0.0
    %1900 = vmatprep.subr.mxu0 0.0
    %1901 = vmatpush1.msra.mxu0 0.0
    %1902 = vmatprep.mubr.f32.mxu0 0.0
    %1903 = vmatmul.mubr.f32.gmra.mrb[0].mxu0 %v110
    %v1904 = vpop.f32.mrb[0].mxu0
    %v1905 = vadd.f32 0.0, %v1904
    %v1906 = vpop.f32.mrb[0].mxu0
    %1907 = vmatprep.mubr.f32.mxu0 0.0
    %1908 = vmatmul.mubr.f32.gmra.mrb[0].mxu0 %v113
    %v1909 = vpop.f32.mrb[0].mxu0
    %v1910 = vadd.f32 0.0, %v1909
    %v1911 = vpop.f32.mrb[0].mxu0
    %1912 = vmatprep.mubr.f32.mxu0 0.0
    %1913 = vmatmul.mubr.f32.gmra.mrb[0].mxu0 %v116
    %v1914 = vpop.f32.mrb[0].mxu0
    %v1915 = vadd.f32 0.0, %v1914
    %v1916 = vpop.f32.mrb[0].mxu0
    %1917 = vmatprep.mubr.f32.mxu0 0.0
    %1918 = vmatmul.mubr.f32.gmra.mrb[0].mxu0 %v119
    %v1919 = vpop.f32.mrb[0].mxu0
    %v1920 = vadd.f32 0.0, %v1919
    %v1921 = vpop.f32.mrb[0].mxu0
    %1922 = vdwg.mxu0
    %v1923 = vmul.f32 %v92, %v1905
    %v1924 = vmul.f32 %v93, %v1910
    %v1925 = vmul.f32 %v94, %v1915
    %v1926 = vmul.f32 %v95, %v1920
    %v1927 = vmul.f32 %v96, %v1915
    %v1928 = vmul.f32 %v97, %v1915
    %v1929 = vmul.f32 %v98, %v1915
    %v1930 = vmul.f32 %v99, %v1915
    %v1931 = vadd.f32 %v1927, %v100
    %v1932 = vadd.f32 %v1928, %v101
    %v1933 = vadd.f32 %v1929, %v102
    %v1934 = vadd.f32 %v1930, %v103
    %v1935 = vadd.f32 %v1923, %v1931
    %v1936 = vadd.f32 %v1924, %v1932
    %v1937 = vadd.f32 %v1925, %v1933
    %v1938 = vadd.f32 %v1926, %v1934
    %1939 = vmatprep.subr.mxu0 0.0
    %1940 = vmatpush1.msra.mxu0 %v1935
    %1941 = vmatprep.subr.mxu0 0.0
    %1942 = vmatpush1.msra.mxu0 %v1936
    %1943 = vmatprep.subr.mxu0 0.0
    %1944 = vmatpush1.msra.mxu0 %v1937
    %1945 = vmatprep.subr.mxu0 0.0
    %1946 = vmatpush1.msra.mxu0 %v1938
    %1947 = vmatprep.subr.mxu0 0.0
    %1948 = vmatpush1.msra.mxu0 0.0
    %1949 = vmatprep.subr.mxu0 0.0
    %1950 = vmatpush1.msra.mxu0 0.0
    %1951 = vmatprep.subr.mxu0 0.0
    %1952 = vmatpush1.msra.mxu0 0.0
    %1953 = vmatprep.subr.mxu0 0.0
    %1954 = vmatpush1.msra.mxu0 0.0
    %1955 = vmatprep.subr.mxu0 0.0
    %1956 = vmatpush1.msra.mxu0 0.0
    %1957 = vmatprep.subr.mxu0 0.0
    %1958 = vmatpush1.msra.mxu0 0.0
    %1959 = vmatprep.subr.mxu0 0.0
    %1960 = vmatpush1.msra.mxu0 0.0
    %1961 = vmatprep.subr.mxu0 0.0
    %1962 = vmatpush1.msra.mxu0 0.0
    %1963 = vmatprep.subr.mxu0 0.0
    %1964 = vmatpush1.msra.mxu0 0.0
    %1965 = vmatprep.subr.mxu0 0.0
    %1966 = vmatpush1.msra.mxu0 0.0
    %1967 = vmatprep.subr.mxu0 0.0
    %1968 = vmatpush1.msra.mxu0 0.0
    %1969 = vmatprep.subr.mxu0 0.0
    %1970 = vmatpush1.msra.mxu0 0.0
    %1971 = vmatprep.subr.mxu0 0.0
    %1972 = vmatpush1.msra.mxu0 0.0
    %1973 = vmatprep.subr.mxu0 0.0
    %1974 = vmatpush1.msra.mxu0 0.0
    %1975 = vmatprep.subr.mxu0 0.0
    %1976 = vmatpush1.msra.mxu0 0.0
    %1977 = vmatprep.subr.mxu0 0.0
    %1978 = vmatpush1.msra.mxu0 0.0
    %1979 = vmatprep.subr.mxu0 0.0
    %1980 = vmatpush1.msra.mxu0 0.0
    %1981 = vmatprep.subr.mxu0 0.0
    %1982 = vmatpush1.msra.mxu0 0.0
    %1983 = vmatprep.subr.mxu0 0.0
    %1984 = vmatpush1.msra.mxu0 0.0
    %1985 = vmatprep.subr.mxu0 0.0
    %1986 = vmatpush1.msra.mxu0 0.0
    %1987 = vmatprep.subr.mxu0 0.0
    %1988 = vmatpush1.msra.mxu0 0.0
    %1989 = vmatprep.subr.mxu0 0.0
    %1990 = vmatpush1.msra.mxu0 0.0
    %1991 = vmatprep.subr.mxu0 0.0
    %1992 = vmatpush1.msra.mxu0 0.0
    %1993 = vmatprep.subr.mxu0 0.0
    %1994 = vmatpush1.msra.mxu0 0.0
    %1995 = vmatprep.subr.mxu0 0.0
    %1996 = vmatpush1.msra.mxu0 0.0
    %1997 = vmatprep.subr.mxu0 0.0
    %1998 = vmatpush1.msra.mxu0 0.0
    %1999 = vmatprep.subr.mxu0 0.0
    %2000 = vmatpush1.msra.mxu0 0.0
    %2001 = vmatprep.subr.mxu0 0.0
    %2002 = vmatpush1.msra.mxu0 0.0
    %2003 = vmatprep.mubr.f32.mxu0 0.0
    %2004 = vmatmul.mubr.f32.gmra.mrb[0].mxu0 %v110
    %v2005 = vpop.f32.mrb[0].mxu0
    %v2006 = vadd.f32 0.0, %v2005
    %v2007 = vpop.f32.mrb[0].mxu0
    %2008 = vmatprep.mubr.f32.mxu0 0.0
    %2009 = vmatmul.mubr.f32.gmra.mrb[0].mxu0 %v113
    %v2010 = vpop.f32.mrb[0].mxu0
    %v2011 = vadd.f32 0.0, %v2010
    %v2012 = vpop.f32.mrb[0].mxu0
    %2013 = vmatprep.mubr.f32.mxu0 0.0
    %2014 = vmatmul.mubr.f32.gmra.mrb[0].mxu0 %v116
    %v2015 = vpop.f32.mrb[0].mxu0
    %v2016 = vadd.f32 0.0, %v2015
    %v2017 = vpop.f32.mrb[0].mxu0
    %2018 = vmatprep.mubr.f32.mxu0 0.0
    %2019 = vmatmul.mubr.f32.gmra.mrb[0].mxu0 %v119
    %v2020 = vpop.f32.mrb[0].mxu0
    %v2021 = vadd.f32 0.0, %v2020
    %v2022 = vpop.f32.mrb[0].mxu0
    %2023 = vdwg.mxu0
    %v2024 = vmul.f32 %v92, %v2006
    %v2025 = vmul.f32 %v93, %v2011
    %v2026 = vmul.f32 %v94, %v2016
    %v2027 = vmul.f32 %v95, %v2021
    %v2028 = vmul.f32 %v96, %v2016
    %v2029 = vmul.f32 %v97, %v2016
    %v2030 = vmul.f32 %v98, %v2016
    %v2031 = vmul.f32 %v99, %v2016
    %v2032 = vadd.f32 %v2028, %v100
    %v2033 = vadd.f32 %v2029, %v101
    %v2034 = vadd.f32 %v2030, %v102
    %v2035 = vadd.f32 %v2031, %v103
    %v2036 = vadd.f32 %v2024, %v2032
    %v2037 = vadd.f32 %v2025, %v2033
    %v2038 = vadd.f32 %v2026, %v2034
    %v2039 = vadd.f32 %v2027, %v2035
    %2040 = vmatprep.subr.mxu0 0.0
    %2041 = vmatpush1.msra.mxu0 %v2036
    %2042 = vmatprep.subr.mxu0 0.0
    %2043 = vmatpush1.msra.mxu0 %v2037
    %2044 = vmatprep.subr.mxu0 0.0
    %2045 = vmatpush1.msra.mxu0 %v2038
    %2046 = vmatprep.subr.mxu0 0.0
    %2047 = vmatpush1.msra.mxu0 %v2039
    %2048 = vmatprep.subr.mxu0 0.0
    %2049 = vmatpush1.msra.mxu0 0.0
    %2050 = vmatprep.subr.mxu0 0.0
    %2051 = vmatpush1.msra.mxu0 0.0
    %2052 = vmatprep.subr.mxu0 0.0
    %2053 = vmatpush1.msra.mxu0 0.0
    %2054 = vmatprep.subr.mxu0 0.0
    %2055 = vmatpush1.msra.mxu0 0.0
    %2056 = vmatprep.subr.mxu0 0.0
    %2057 = vmatpush1.msra.mxu0 0.0
    %2058 = vmatprep.subr.mxu0 0.0
    %2059 = vmatpush1.msra.mxu0 0.0
    %2060 = vmatprep.subr.mxu0 0.0
    %2061 = vmatpush1.msra.mxu0 0.0
    %2062 = vmatprep.subr.mxu0 0.0
    %2063 = vmatpush1.msra.mxu0 0.0
    %2064 = vmatprep.subr.mxu0 0.0
    %2065 = vmatpush1.msra.mxu0 0.0
    %2066 = vmatprep.subr.mxu0 0.0
    %2067 = vmatpush1.msra.mxu0 0.0
    %2068 = vmatprep.subr.mxu0 0.0
    %2069 = vmatpush1.msra.mxu0 0.0
    %2070 = vmatprep.subr.mxu0 0.0
    %2071 = vmatpush1.msra.mxu0 0.0
    %2072 = vmatprep.subr.mxu0 0.0
    %2073 = vmatpush1.msra.mxu0 0.0
    %2074 = vmatprep.subr.mxu0 0.0
    %2075 = vmatpush1.msra.mxu0 0.0
    %2076 = vmatprep.subr.mxu0 0.0
    %2077 = vmatpush1.msra.mxu0 0.0
    %2078 = vmatprep.subr.mxu0 0.0
    %2079 = vmatpush1.msra.mxu0 0.0
    %2080 = vmatprep.subr.mxu0 0.0
    %2081 = vmatpush1.msra.mxu0 0.0
    %2082 = vmatprep.subr.mxu0 0.0
    %2083 = vmatpush1.msra.mxu0 0.0
    %2084 = vmatprep.subr.mxu0 0.0
    %2085 = vmatpush1.msra.mxu0 0.0
    %2086 = vmatprep.subr.mxu0 0.0
    %2087 = vmatpush1.msra.mxu0 0.0
    %2088 = vmatprep.subr.mxu0 0.0
    %2089 = vmatpush1.msra.mxu0 0.0
    %2090 = vmatprep.subr.mxu0 0.0
    %2091 = vmatpush1.msra.mxu0 0.0
    %2092 = vmatprep.subr.mxu0 0.0
    %2093 = vmatpush1.msra.mxu0 0.0
    %2094 = vmatprep.subr.mxu0 0.0
    %2095 = vmatpush1.msra.mxu0 0.0
    %2096 = vmatprep.subr.mxu0 0.0
    %2097 = vmatpush1.msra.mxu0 0.0
    %2098 = vmatprep.subr.mxu0 0.0
    %2099 = vmatpush1.msra.mxu0 0.0
    %2100 = vmatprep.subr.mxu0 0.0
    %2101 = vmatpush1.msra.mxu0 0.0
    %2102 = vmatprep.subr.mxu0 0.0
    %2103 = vmatpush1.msra.mxu0 0.0
    %2104 = vmatprep.mubr.f32.mxu0 0.0
    %2105 = vmatmul.mubr.f32.gmra.mrb[0].mxu0 %v110
    %v2106 = vpop.f32.mrb[0].mxu0
    %v2107 = vadd.f32 0.0, %v2106
    %v2108 = vpop.f32.mrb[0].mxu0
    %2109 = vmatprep.mubr.f32.mxu0 0.0
    %2110 = vmatmul.mubr.f32.gmra.mrb[0].mxu0 %v113
    %v2111 = vpop.f32.mrb[0].mxu0
    %v2112 = vadd.f32 0.0, %v2111
    %v2113 = vpop.f32.mrb[0].mxu0
    %2114 = vmatprep.mubr.f32.mxu0 0.0
    %2115 = vmatmul.mubr.f32.gmra.mrb[0].mxu0 %v116
    %v2116 = vpop.f32.mrb[0].mxu0
    %v2117 = vadd.f32 0.0, %v2116
    %v2118 = vpop.f32.mrb[0].mxu0
    %2119 = vmatprep.mubr.f32.mxu0 0.0
    %2120 = vmatmul.mubr.f32.gmra.mrb[0].mxu0 %v119
    %v2121 = vpop.f32.mrb[0].mxu0
    %v2122 = vadd.f32 0.0, %v2121
    %v2123 = vpop.f32.mrb[0].mxu0
    %2124 = vdwg.mxu0
    %v2125 = vmul.f32 %v92, %v2107
    %v2126 = vmul.f32 %v93, %v2112
    %v2127 = vmul.f32 %v94, %v2117
    %v2128 = vmul.f32 %v95, %v2122
    %v2129 = vmul.f32 %v96, %v2117
    %v2130 = vmul.f32 %v97, %v2117
    %v2131 = vmul.f32 %v98, %v2117
    %v2132 = vmul.f32 %v99, %v2117
    %v2133 = vadd.f32 %v2129, %v100
    %v2134 = vadd.f32 %v2130, %v101
    %v2135 = vadd.f32 %v2131, %v102
    %v2136 = vadd.f32 %v2132, %v103
    %v2137 = vadd.f32 %v2125, %v2133
    %v2138 = vadd.f32 %v2126, %v2134
    %v2139 = vadd.f32 %v2127, %v2135
    %v2140 = vadd.f32 %v2128, %v2136
    %2141 = vmatprep.subr.mxu0 0.0
    %2142 = vmatpush1.msra.mxu0 %v2137
    %2143 = vmatprep.subr.mxu0 0.0
    %2144 = vmatpush1.msra.mxu0 %v2138
    %2145 = vmatprep.subr.mxu0 0.0
    %2146 = vmatpush1.msra.mxu0 %v2139
    %2147 = vmatprep.subr.mxu0 0.0
    %2148 = vmatpush1.msra.mxu0 %v2140
    %2149 = vmatprep.subr.mxu0 0.0
    %2150 = vmatpush1.msra.mxu0 0.0
    %2151 = vmatprep.subr.mxu0 0.0
    %2152 = vmatpush1.msra.mxu0 0.0
    %2153 = vmatprep.subr.mxu0 0.0
    %2154 = vmatpush1.msra.mxu0 0.0
    %2155 = vmatprep.subr.mxu0 0.0
    %2156 = vmatpush1.msra.mxu0 0.0
    %2157 = vmatprep.subr.mxu0 0.0
    %2158 = vmatpush1.msra.mxu0 0.0
    %2159 = vmatprep.subr.mxu0 0.0
    %2160 = vmatpush1.msra.mxu0 0.0
    %2161 = vmatprep.subr.mxu0 0.0
    %2162 = vmatpush1.msra.mxu0 0.0
    %2163 = vmatprep.subr.mxu0 0.0
    %2164 = vmatpush1.msra.mxu0 0.0
    %2165 = vmatprep.subr.mxu0 0.0
    %2166 = vmatpush1.msra.mxu0 0.0
    %2167 = vmatprep.subr.mxu0 0.0
    %2168 = vmatpush1.msra.mxu0 0.0
    %2169 = vmatprep.subr.mxu0 0.0
    %2170 = vmatpush1.msra.mxu0 0.0
    %2171 = vmatprep.subr.mxu0 0.0
    %2172 = vmatpush1.msra.mxu0 0.0
    %2173 = vmatprep.subr.mxu0 0.0
    %2174 = vmatpush1.msra.mxu0 0.0
    %2175 = vmatprep.subr.mxu0 0.0
    %2176 = vmatpush1.msra.mxu0 0.0
    %2177 = vmatprep.subr.mxu0 0.0
    %2178 = vmatpush1.msra.mxu0 0.0
    %2179 = vmatprep.subr.mxu0 0.0
    %2180 = vmatpush1.msra.mxu0 0.0
    %2181 = vmatprep.subr.mxu0 0.0
    %2182 = vmatpush1.msra.mxu0 0.0
    %2183 = vmatprep.subr.mxu0 0.0
    %2184 = vmatpush1.msra.mxu0 0.0
    %2185 = vmatprep.subr.mxu0 0.0
    %2186 = vmatpush1.msra.mxu0 0.0
    %2187 = vmatprep.subr.mxu0 0.0
    %2188 = vmatpush1.msra.mxu0 0.0
    %2189 = vmatprep.subr.mxu0 0.0
    %2190 = vmatpush1.msra.mxu0 0.0
    %2191 = vmatprep.subr.mxu0 0.0
    %2192 = vmatpush1.msra.mxu0 0.0
    %2193 = vmatprep.subr.mxu0 0.0
    %2194 = vmatpush1.msra.mxu0 0.0
    %2195 = vmatprep.subr.mxu0 0.0
    %2196 = vmatpush1.msra.mxu0 0.0
    %2197 = vmatprep.subr.mxu0 0.0
    %2198 = vmatpush1.msra.mxu0 0.0
    %2199 = vmatprep.subr.mxu0 0.0
    %2200 = vmatpush1.msra.mxu0 0.0
    %2201 = vmatprep.subr.mxu0 0.0
    %2202 = vmatpush1.msra.mxu0 0.0
    %2203 = vmatprep.subr.mxu0 0.0
    %2204 = vmatpush1.msra.mxu0 0.0
    %2205 = vmatprep.mubr.f32.mxu0 0.0
    %2206 = vmatmul.mubr.f32.gmra.mrb[0].mxu0 %v110
    %v2207 = vpop.f32.mrb[0].mxu0
    %v2208 = vadd.f32 0.0, %v2207
    %v2209 = vpop.f32.mrb[0].mxu0
    %2210 = vmatprep.mubr.f32.mxu0 0.0
    %2211 = vmatmul.mubr.f32.gmra.mrb[0].mxu0 %v113
    %v2212 = vpop.f32.mrb[0].mxu0
    %v2213 = vadd.f32 0.0, %v2212
    %v2214 = vpop.f32.mrb[0].mxu0
    %2215 = vmatprep.mubr.f32.mxu0 0.0
    %2216 = vmatmul.mubr.f32.gmra.mrb[0].mxu0 %v116
    %v2217 = vpop.f32.mrb[0].mxu0
    %v2218 = vadd.f32 0.0, %v2217
    %v2219 = vpop.f32.mrb[0].mxu0
    %2220 = vmatprep.mubr.f32.mxu0 0.0
    %2221 = vmatmul.mubr.f32.gmra.mrb[0].mxu0 %v119
    %v2222 = vpop.f32.mrb[0].mxu0
    %v2223 = vadd.f32 0.0, %v2222
    %v2224 = vpop.f32.mrb[0].mxu0
    %2225 = vdwg.mxu0
    %v2226 = vmul.f32 %v92, %v2208
    %v2227 = vmul.f32 %v93, %v2213
    %v2228 = vmul.f32 %v94, %v2218
    %v2229 = vmul.f32 %v95, %v2223
    %v2230 = vmul.f32 %v96, %v2218
    %v2231 = vmul.f32 %v97, %v2218
    %v2232 = vmul.f32 %v98, %v2218
    %v2233 = vmul.f32 %v99, %v2218
    %v2234 = vadd.f32 %v2230, %v100
    %v2235 = vadd.f32 %v2231, %v101
    %v2236 = vadd.f32 %v2232, %v102
    %v2237 = vadd.f32 %v2233, %v103
    %v2238 = vadd.f32 %v2226, %v2234
    %v2239 = vadd.f32 %v2227, %v2235
    %v2240 = vadd.f32 %v2228, %v2236
    %v2241 = vadd.f32 %v2229, %v2237
    %2242 = vmatprep.subr.mxu0 0.0
    %2243 = vmatpush1.msra.mxu0 %v2238
    %2244 = vmatprep.subr.mxu0 0.0
    %2245 = vmatpush1.msra.mxu0 %v2239
    %2246 = vmatprep.subr.mxu0 0.0
    %2247 = vmatpush1.msra.mxu0 %v2240
    %2248 = vmatprep.subr.mxu0 0.0
    %2249 = vmatpush1.msra.mxu0 %v2241
    %2250 = vmatprep.subr.mxu0 0.0
    %2251 = vmatpush1.msra.mxu0 0.0
    %2252 = vmatprep.subr.mxu0 0.0
    %2253 = vmatpush1.msra.mxu0 0.0
    %2254 = vmatprep.subr.mxu0 0.0
    %2255 = vmatpush1.msra.mxu0 0.0
    %2256 = vmatprep.subr.mxu0 0.0
    %2257 = vmatpush1.msra.mxu0 0.0
    %2258 = vmatprep.subr.mxu0 0.0
    %2259 = vmatpush1.msra.mxu0 0.0
    %2260 = vmatprep.subr.mxu0 0.0
    %2261 = vmatpush1.msra.mxu0 0.0
    %2262 = vmatprep.subr.mxu0 0.0
    %2263 = vmatpush1.msra.mxu0 0.0
    %2264 = vmatprep.subr.mxu0 0.0
    %2265 = vmatpush1.msra.mxu0 0.0
    %2266 = vmatprep.subr.mxu0 0.0
    %2267 = vmatpush1.msra.mxu0 0.0
    %2268 = vmatprep.subr.mxu0 0.0
    %2269 = vmatpush1.msra.mxu0 0.0
    %2270 = vmatprep.subr.mxu0 0.0
    %2271 = vmatpush1.msra.mxu0 0.0
    %2272 = vmatprep.subr.mxu0 0.0
    %2273 = vmatpush1.msra.mxu0 0.0
    %2274 = vmatprep.subr.mxu0 0.0
    %2275 = vmatpush1.msra.mxu0 0.0
    %2276 = vmatprep.subr.mxu0 0.0
    %2277 = vmatpush1.msra.mxu0 0.0
    %2278 = vmatprep.subr.mxu0 0.0
    %2279 = vmatpush1.msra.mxu0 0.0
    %2280 = vmatprep.subr.mxu0 0.0
    %2281 = vmatpush1.msra.mxu0 0.0
    %2282 = vmatprep.subr.mxu0 0.0
    %2283 = vmatpush1.msra.mxu0 0.0
    %2284 = vmatprep.subr.mxu0 0.0
    %2285 = vmatpush1.msra.mxu0 0.0
    %2286 = vmatprep.subr.mxu0 0.0
    %2287 = vmatpush1.msra.mxu0 0.0
    %2288 = vmatprep.subr.mxu0 0.0
    %2289 = vmatpush1.msra.mxu0 0.0
    %2290 = vmatprep.subr.mxu0 0.0
    %2291 = vmatpush1.msra.mxu0 0.0
    %2292 = vmatprep.subr.mxu0 0.0
    %2293 = vmatpush1.msra.mxu0 0.0
    %2294 = vmatprep.subr.mxu0 0.0
    %2295 = vmatpush1.msra.mxu0 0.0
    %2296 = vmatprep.subr.mxu0 0.0
    %2297 = vmatpush1.msra.mxu0 0.0
    %2298 = vmatprep.subr.mxu0 0.0
    %2299 = vmatpush1.msra.mxu0 0.0
    %2300 = vmatprep.subr.mxu0 0.0
    %2301 = vmatpush1.msra.mxu0 0.0
    %2302 = vmatprep.subr.mxu0 0.0
    %2303 = vmatpush1.msra.mxu0 0.0
    %2304 = vmatprep.subr.mxu0 0.0
    %2305 = vmatpush1.msra.mxu0 0.0
    %2306 = vmatprep.mubr.f32.mxu0 0.0
    %2307 = vmatmul.mubr.f32.gmra.mrb[0].mxu0 %v110
    %v2308 = vpop.f32.mrb[0].mxu0
    %v2309 = vadd.f32 0.0, %v2308
    %v2310 = vpop.f32.mrb[0].mxu0
    %2311 = vmatprep.mubr.f32.mxu0 0.0
    %2312 = vmatmul.mubr.f32.gmra.mrb[0].mxu0 %v113
    %v2313 = vpop.f32.mrb[0].mxu0
    %v2314 = vadd.f32 0.0, %v2313
    %v2315 = vpop.f32.mrb[0].mxu0
    %2316 = vmatprep.mubr.f32.mxu0 0.0
    %2317 = vmatmul.mubr.f32.gmra.mrb[0].mxu0 %v116
    %v2318 = vpop.f32.mrb[0].mxu0
    %v2319 = vadd.f32 0.0, %v2318
    %v2320 = vpop.f32.mrb[0].mxu0
    %2321 = vmatprep.mubr.f32.mxu0 0.0
    %2322 = vmatmul.mubr.f32.gmra.mrb[0].mxu0 %v119
    %v2323 = vpop.f32.mrb[0].mxu0
    %v2324 = vadd.f32 0.0, %v2323
    %v2325 = vpop.f32.mrb[0].mxu0
    %2326 = vdwg.mxu0
    %v2327 = vmul.f32 %v92, %v2309
    %v2328 = vmul.f32 %v93, %v2314
    %v2329 = vmul.f32 %v94, %v2319
    %v2330 = vmul.f32 %v95, %v2324
    %v2331 = vmul.f32 %v96, %v2319
    %v2332 = vmul.f32 %v97, %v2319
    %v2333 = vmul.f32 %v98, %v2319
    %v2334 = vmul.f32 %v99, %v2319
    %v2335 = vadd.f32 %v2331, %v100
    %v2336 = vadd.f32 %v2332, %v101
    %v2337 = vadd.f32 %v2333, %v102
    %v2338 = vadd.f32 %v2334, %v103
    %v2339 = vadd.f32 %v2327, %v2335
    %v2340 = vadd.f32 %v2328, %v2336
    %v2341 = vadd.f32 %v2329, %v2337
    %v2342 = vadd.f32 %v2330, %v2338
    %2343 = vmatprep.subr.mxu0 0.0
    %2344 = vmatpush1.msra.mxu0 %v2339
    %2345 = vmatprep.subr.mxu0 0.0
    %2346 = vmatpush1.msra.mxu0 %v2340
    %2347 = vmatprep.subr.mxu0 0.0
    %2348 = vmatpush1.msra.mxu0 %v2341
    %2349 = vmatprep.subr.mxu0 0.0
    %2350 = vmatpush1.msra.mxu0 %v2342
    %2351 = vmatprep.subr.mxu0 0.0
    %2352 = vmatpush1.msra.mxu0 0.0
    %2353 = vmatprep.subr.mxu0 0.0
    %2354 = vmatpush1.msra.mxu0 0.0
    %2355 = vmatprep.subr.mxu0 0.0
    %2356 = vmatpush1.msra.mxu0 0.0
    %2357 = vmatprep.subr.mxu0 0.0
    %2358 = vmatpush1.msra.mxu0 0.0
    %2359 = vmatprep.subr.mxu0 0.0
    %2360 = vmatpush1.msra.mxu0 0.0
    %2361 = vmatprep.subr.mxu0 0.0
    %2362 = vmatpush1.msra.mxu0 0.0
    %2363 = vmatprep.subr.mxu0 0.0
    %2364 = vmatpush1.msra.mxu0 0.0
    %2365 = vmatprep.subr.mxu0 0.0
    %2366 = vmatpush1.msra.mxu0 0.0
    %2367 = vmatprep.subr.mxu0 0.0
    %2368 = vmatpush1.msra.mxu0 0.0
    %2369 = vmatprep.subr.mxu0 0.0
    %2370 = vmatpush1.msra.mxu0 0.0
    %2371 = vmatprep.subr.mxu0 0.0
    %2372 = vmatpush1.msra.mxu0 0.0
    %2373 = vmatprep.subr.mxu0 0.0
    %2374 = vmatpush1.msra.mxu0 0.0
    %2375 = vmatprep.subr.mxu0 0.0
    %2376 = vmatpush1.msra.mxu0 0.0
    %2377 = vmatprep.subr.mxu0 0.0
    %2378 = vmatpush1.msra.mxu0 0.0
    %2379 = vmatprep.subr.mxu0 0.0
    %2380 = vmatpush1.msra.mxu0 0.0
    %2381 = vmatprep.subr.mxu0 0.0
    %2382 = vmatpush1.msra.mxu0 0.0
    %2383 = vmatprep.subr.mxu0 0.0
    %2384 = vmatpush1.msra.mxu0 0.0
    %2385 = vmatprep.subr.mxu0 0.0
    %2386 = vmatpush1.msra.mxu0 0.0
    %2387 = vmatprep.subr.mxu0 0.0
    %2388 = vmatpush1.msra.mxu0 0.0
    %2389 = vmatprep.subr.mxu0 0.0
    %2390 = vmatpush1.msra.mxu0 0.0
    %2391 = vmatprep.subr.mxu0 0.0
    %2392 = vmatpush1.msra.mxu0 0.0
    %2393 = vmatprep.subr.mxu0 0.0
    %2394 = vmatpush1.msra.mxu0 0.0
    %2395 = vmatprep.subr.mxu0 0.0
    %2396 = vmatpush1.msra.mxu0 0.0
    %2397 = vmatprep.subr.mxu0 0.0
    %2398 = vmatpush1.msra.mxu0 0.0
    %2399 = vmatprep.subr.mxu0 0.0
    %2400 = vmatpush1.msra.mxu0 0.0
    %2401 = vmatprep.subr.mxu0 0.0
    %2402 = vmatpush1.msra.mxu0 0.0
    %2403 = vmatprep.subr.mxu0 0.0
    %2404 = vmatpush1.msra.mxu0 0.0
    %2405 = vmatprep.subr.mxu0 0.0
    %2406 = vmatpush1.msra.mxu0 0.0
    %2407 = vmatprep.mubr.f32.mxu0 0.0
    %2408 = vmatmul.mubr.f32.gmra.mrb[0].mxu0 %v110
    %v2409 = vpop.f32.mrb[0].mxu0
    %v2410 = vadd.f32 0.0, %v2409
    %v2411 = vpop.f32.mrb[0].mxu0
    %2412 = vmatprep.mubr.f32.mxu0 0.0
    %2413 = vmatmul.mubr.f32.gmra.mrb[0].mxu0 %v113
    %v2414 = vpop.f32.mrb[0].mxu0
    %v2415 = vadd.f32 0.0, %v2414
    %v2416 = vpop.f32.mrb[0].mxu0
    %2417 = vmatprep.mubr.f32.mxu0 0.0
    %2418 = vmatmul.mubr.f32.gmra.mrb[0].mxu0 %v116
    %v2419 = vpop.f32.mrb[0].mxu0
    %v2420 = vadd.f32 0.0, %v2419
    %v2421 = vpop.f32.mrb[0].mxu0
    %2422 = vmatprep.mubr.f32.mxu0 0.0
    %2423 = vmatmul.mubr.f32.gmra.mrb[0].mxu0 %v119
    %v2424 = vpop.f32.mrb[0].mxu0
    %v2425 = vadd.f32 0.0, %v2424
    %v2426 = vpop.f32.mrb[0].mxu0
    %2427 = vdwg.mxu0
    %v2428 = vmul.f32 %v92, %v2410
    %v2429 = vmul.f32 %v93, %v2415
    %v2430 = vmul.f32 %v94, %v2420
    %v2431 = vmul.f32 %v95, %v2425
    %v2432 = vmul.f32 %v96, %v2420
    %v2433 = vmul.f32 %v97, %v2420
    %v2434 = vmul.f32 %v98, %v2420
    %v2435 = vmul.f32 %v99, %v2420
    %v2436 = vadd.f32 %v2432, %v100
    %v2437 = vadd.f32 %v2433, %v101
    %v2438 = vadd.f32 %v2434, %v102
    %v2439 = vadd.f32 %v2435, %v103
    %v2440 = vadd.f32 %v2428, %v2436
    %v2441 = vadd.f32 %v2429, %v2437
    %v2442 = vadd.f32 %v2430, %v2438
    %v2443 = vadd.f32 %v2431, %v2439
    %2444 = vmatprep.subr.mxu0 0.0
    %2445 = vmatpush1.msra.mxu0 %v2440
    %2446 = vmatprep.subr.mxu0 0.0
    %2447 = vmatpush1.msra.mxu0 %v2441
    %2448 = vmatprep.subr.mxu0 0.0
    %2449 = vmatpush1.msra.mxu0 %v2442
    %2450 = vmatprep.subr.mxu0 0.0
    %2451 = vmatpush1.msra.mxu0 %v2443
    %2452 = vmatprep.subr.mxu0 0.0
    %2453 = vmatpush1.msra.mxu0 0.0
    %2454 = vmatprep.subr.mxu0 0.0
    %2455 = vmatpush1.msra.mxu0 0.0
    %2456 = vmatprep.subr.mxu0 0.0
    %2457 = vmatpush1.msra.mxu0 0.0
    %2458 = vmatprep.subr.mxu0 0.0
    %2459 = vmatpush1.msra.mxu0 0.0
    %2460 = vmatprep.subr.mxu0 0.0
    %2461 = vmatpush1.msra.mxu0 0.0
    %2462 = vmatprep.subr.mxu0 0.0
    %2463 = vmatpush1.msra.mxu0 0.0
    %2464 = vmatprep.subr.mxu0 0.0
    %2465 = vmatpush1.msra.mxu0 0.0
    %2466 = vmatprep.subr.mxu0 0.0
    %2467 = vmatpush1.msra.mxu0 0.0
    %2468 = vmatprep.subr.mxu0 0.0
    %2469 = vmatpush1.msra.mxu0 0.0
    %2470 = vmatprep.subr.mxu0 0.0
    %2471 = vmatpush1.msra.mxu0 0.0
    %2472 = vmatprep.subr.mxu0 0.0
    %2473 = vmatpush1.msra.mxu0 0.0
    %2474 = vmatprep.subr.mxu0 0.0
    %2475 = vmatpush1.msra.mxu0 0.0
    %2476 = vmatprep.subr.mxu0 0.0
    %2477 = vmatpush1.msra.mxu0 0.0
    %2478 = vmatprep.subr.mxu0 0.0
    %2479 = vmatpush1.msra.mxu0 0.0
    %2480 = vmatprep.subr.mxu0 0.0
    %2481 = vmatpush1.msra.mxu0 0.0
    %2482 = vmatprep.subr.mxu0 0.0
    %2483 = vmatpush1.msra.mxu0 0.0
    %2484 = vmatprep.subr.mxu0 0.0
    %2485 = vmatpush1.msra.mxu0 0.0
    %2486 = vmatprep.subr.mxu0 0.0
    %2487 = vmatpush1.msra.mxu0 0.0
    %2488 = vmatprep.subr.mxu0 0.0
    %2489 = vmatpush1.msra.mxu0 0.0
    %2490 = vmatprep.subr.mxu0 0.0
    %2491 = vmatpush1.msra.mxu0 0.0
    %2492 = vmatprep.subr.mxu0 0.0
    %2493 = vmatpush1.msra.mxu0 0.0
    %2494 = vmatprep.subr.mxu0 0.0
    %2495 = vmatpush1.msra.mxu0 0.0
    %2496 = vmatprep.subr.mxu0 0.0
    %2497 = vmatpush1.msra.mxu0 0.0
    %2498 = vmatprep.subr.mxu0 0.0
    %2499 = vmatpush1.msra.mxu0 0.0
    %2500 = vmatprep.subr.mxu0 0.0
    %2501 = vmatpush1.msra.mxu0 0.0
    %2502 = vmatprep.subr.mxu0 0.0
    %2503 = vmatpush1.msra.mxu0 0.0
    %2504 = vmatprep.subr.mxu0 0.0
    %2505 = vmatpush1.msra.mxu0 0.0
    %2506 = vmatprep.subr.mxu0 0.0
    %2507 = vmatpush1.msra.mxu0 0.0
    %2508 = vmatprep.mubr.f32.mxu0 0.0
    %2509 = vmatmul.mubr.f32.gmra.mrb[0].mxu0 %v110
    %v2510 = vpop.f32.mrb[0].mxu0
    %v2511 = vadd.f32 0.0, %v2510
    %v2512 = vpop.f32.mrb[0].mxu0
    %2513 = vmatprep.mubr.f32.mxu0 0.0
    %2514 = vmatmul.mubr.f32.gmra.mrb[0].mxu0 %v113
    %v2515 = vpop.f32.mrb[0].mxu0
    %v2516 = vadd.f32 0.0, %v2515
    %v2517 = vpop.f32.mrb[0].mxu0
    %2518 = vmatprep.mubr.f32.mxu0 0.0
    %2519 = vmatmul.mubr.f32.gmra.mrb[0].mxu0 %v116
    %v2520 = vpop.f32.mrb[0].mxu0
    %v2521 = vadd.f32 0.0, %v2520
    %v2522 = vpop.f32.mrb[0].mxu0
    %2523 = vmatprep.mubr.f32.mxu0 0.0
    %2524 = vmatmul.mubr.f32.gmra.mrb[0].mxu0 %v119
    %v2525 = vpop.f32.mrb[0].mxu0
    %v2526 = vadd.f32 0.0, %v2525
    %v2527 = vpop.f32.mrb[0].mxu0
    %2528 = vdwg.mxu0
    %v2529 = vmul.f32 %v92, %v2511
    %v2530 = vmul.f32 %v93, %v2516
    %v2531 = vmul.f32 %v94, %v2521
    %v2532 = vmul.f32 %v95, %v2526
    %v2533 = vmul.f32 %v96, %v2521
    %v2534 = vmul.f32 %v97, %v2521
    %v2535 = vmul.f32 %v98, %v2521
    %v2536 = vmul.f32 %v99, %v2521
    %v2537 = vadd.f32 %v2533, %v100
    %v2538 = vadd.f32 %v2534, %v101
    %v2539 = vadd.f32 %v2535, %v102
    %v2540 = vadd.f32 %v2536, %v103
    %v2541 = vadd.f32 %v2529, %v2537
    %v2542 = vadd.f32 %v2530, %v2538
    %v2543 = vadd.f32 %v2531, %v2539
    %v2544 = vadd.f32 %v2532, %v2540
    %2545 = vmatprep.subr.mxu0 0.0
    %2546 = vmatpush1.msra.mxu0 %v2541
    %2547 = vmatprep.subr.mxu0 0.0
    %2548 = vmatpush1.msra.mxu0 %v2542
    %2549 = vmatprep.subr.mxu0 0.0
    %2550 = vmatpush1.msra.mxu0 %v2543
    %2551 = vmatprep.subr.mxu0 0.0
    %2552 = vmatpush1.msra.mxu0 %v2544
    %2553 = vmatprep.subr.mxu0 0.0
    %2554 = vmatpush1.msra.mxu0 0.0
    %2555 = vmatprep.subr.mxu0 0.0
    %2556 = vmatpush1.msra.mxu0 0.0
    %2557 = vmatprep.subr.mxu0 0.0
    %2558 = vmatpush1.msra.mxu0 0.0
    %2559 = vmatprep.subr.mxu0 0.0
    %2560 = vmatpush1.msra.mxu0 0.0
    %2561 = vmatprep.subr.mxu0 0.0
    %2562 = vmatpush1.msra.mxu0 0.0
    %2563 = vmatprep.subr.mxu0 0.0
    %2564 = vmatpush1.msra.mxu0 0.0
    %2565 = vmatprep.subr.mxu0 0.0
    %2566 = vmatpush1.msra.mxu0 0.0
    %2567 = vmatprep.subr.mxu0 0.0
    %2568 = vmatpush1.msra.mxu0 0.0
    %2569 = vmatprep.subr.mxu0 0.0
    %2570 = vmatpush1.msra.mxu0 0.0
    %2571 = vmatprep.subr.mxu0 0.0
    %2572 = vmatpush1.msra.mxu0 0.0
    %2573 = vmatprep.subr.mxu0 0.0
    %2574 = vmatpush1.msra.mxu0 0.0
    %2575 = vmatprep.subr.mxu0 0.0
    %2576 = vmatpush1.msra.mxu0 0.0
    %2577 = vmatprep.subr.mxu0 0.0
    %2578 = vmatpush1.msra.mxu0 0.0
    %2579 = vmatprep.subr.mxu0 0.0
    %2580 = vmatpush1.msra.mxu0 0.0
    %2581 = vmatprep.subr.mxu0 0.0
    %2582 = vmatpush1.msra.mxu0 0.0
    %2583 = vmatprep.subr.mxu0 0.0
    %2584 = vmatpush1.msra.mxu0 0.0
    %2585 = vmatprep.subr.mxu0 0.0
    %2586 = vmatpush1.msra.mxu0 0.0
    %2587 = vmatprep.subr.mxu0 0.0
    %2588 = vmatpush1.msra.mxu0 0.0
    %2589 = vmatprep.subr.mxu0 0.0
    %2590 = vmatpush1.msra.mxu0 0.0
    %2591 = vmatprep.subr.mxu0 0.0
    %2592 = vmatpush1.msra.mxu0 0.0
    %2593 = vmatprep.subr.mxu0 0.0
    %2594 = vmatpush1.msra.mxu0 0.0
    %2595 = vmatprep.subr.mxu0 0.0
    %2596 = vmatpush1.msra.mxu0 0.0
    %2597 = vmatprep.subr.mxu0 0.0
    %2598 = vmatpush1.msra.mxu0 0.0
    %2599 = vmatprep.subr.mxu0 0.0
    %2600 = vmatpush1.msra.mxu0 0.0
    %2601 = vmatprep.subr.mxu0 0.0
    %2602 = vmatpush1.msra.mxu0 0.0
    %2603 = vmatprep.subr.mxu0 0.0
    %2604 = vmatpush1.msra.mxu0 0.0
    %2605 = vmatprep.subr.mxu0 0.0
    %2606 = vmatpush1.msra.mxu0 0.0
    %2607 = vmatprep.subr.mxu0 0.0
    %2608 = vmatpush1.msra.mxu0 0.0
    %2609 = vmatprep.mubr.f32.mxu0 0.0
    %2610 = vmatmul.mubr.f32.gmra.mrb[0].mxu0 %v110
    %v2611 = vpop.f32.mrb[0].mxu0
    %v2612 = vadd.f32 0.0, %v2611
    %v2613 = vpop.f32.mrb[0].mxu0
    %2614 = vmatprep.mubr.f32.mxu0 0.0
    %2615 = vmatmul.mubr.f32.gmra.mrb[0].mxu0 %v113
    %v2616 = vpop.f32.mrb[0].mxu0
    %v2617 = vadd.f32 0.0, %v2616
    %v2618 = vpop.f32.mrb[0].mxu0
    %2619 = vmatprep.mubr.f32.mxu0 0.0
    %2620 = vmatmul.mubr.f32.gmra.mrb[0].mxu0 %v116
    %v2621 = vpop.f32.mrb[0].mxu0
    %v2622 = vadd.f32 0.0, %v2621
    %v2623 = vpop.f32.mrb[0].mxu0
    %2624 = vmatprep.mubr.f32.mxu0 0.0
    %2625 = vmatmul.mubr.f32.gmra.mrb[0].mxu0 %v119
    %v2626 = vpop.f32.mrb[0].mxu0
    %v2627 = vadd.f32 0.0, %v2626
    %v2628 = vpop.f32.mrb[0].mxu0
    %2629 = vdwg.mxu0
    %v2630 = vmul.f32 %v92, %v2612
    %v2631 = vmul.f32 %v93, %v2617
    %v2632 = vmul.f32 %v94, %v2622
    %v2633 = vmul.f32 %v95, %v2627
    %v2634 = vmul.f32 %v96, %v2622
    %v2635 = vmul.f32 %v97, %v2622
    %v2636 = vmul.f32 %v98, %v2622
    %v2637 = vmul.f32 %v99, %v2622
    %v2638 = vadd.f32 %v2634, %v100
    %v2639 = vadd.f32 %v2635, %v101
    %v2640 = vadd.f32 %v2636, %v102
    %v2641 = vadd.f32 %v2637, %v103
    %v2642 = vadd.f32 %v2630, %v2638
    %v2643 = vadd.f32 %v2631, %v2639
    %v2644 = vadd.f32 %v2632, %v2640
    %v2645 = vadd.f32 %v2633, %v2641
    %2646 = vmatprep.subr.mxu0 0.0
    %2647 = vmatpush1.msra.mxu0 %v2642
    %2648 = vmatprep.subr.mxu0 0.0
    %2649 = vmatpush1.msra.mxu0 %v2643
    %2650 = vmatprep.subr.mxu0 0.0
    %2651 = vmatpush1.msra.mxu0 %v2644
    %2652 = vmatprep.subr.mxu0 0.0
    %2653 = vmatpush1.msra.mxu0 %v2645
    %2654 = vmatprep.subr.mxu0 0.0
    %2655 = vmatpush1.msra.mxu0 0.0
    %2656 = vmatprep.subr.mxu0 0.0
    %2657 = vmatpush1.msra.mxu0 0.0
    %2658 = vmatprep.subr.mxu0 0.0
    %2659 = vmatpush1.msra.mxu0 0.0
    %2660 = vmatprep.subr.mxu0 0.0
    %2661 = vmatpush1.msra.mxu0 0.0
    %2662 = vmatprep.subr.mxu0 0.0
    %2663 = vmatpush1.msra.mxu0 0.0
    %2664 = vmatprep.subr.mxu0 0.0
    %2665 = vmatpush1.msra.mxu0 0.0
    %2666 = vmatprep.subr.mxu0 0.0
    %2667 = vmatpush1.msra.mxu0 0.0
    %2668 = vmatprep.subr.mxu0 0.0
    %2669 = vmatpush1.msra.mxu0 0.0
    %2670 = vmatprep.subr.mxu0 0.0
    %2671 = vmatpush1.msra.mxu0 0.0
    %2672 = vmatprep.subr.mxu0 0.0
    %2673 = vmatpush1.msra.mxu0 0.0
    %2674 = vmatprep.subr.mxu0 0.0
    %2675 = vmatpush1.msra.mxu0 0.0
    %2676 = vmatprep.subr.mxu0 0.0
    %2677 = vmatpush1.msra.mxu0 0.0
    %2678 = vmatprep.subr.mxu0 0.0
    %2679 = vmatpush1.msra.mxu0 0.0
    %2680 = vmatprep.subr.mxu0 0.0
    %2681 = vmatpush1.msra.mxu0 0.0
    %2682 = vmatprep.subr.mxu0 0.0
    %2683 = vmatpush1.msra.mxu0 0.0
    %2684 = vmatprep.subr.mxu0 0.0
    %2685 = vmatpush1.msra.mxu0 0.0
    %2686 = vmatprep.subr.mxu0 0.0
    %2687 = vmatpush1.msra.mxu0 0.0
    %2688 = vmatprep.subr.mxu0 0.0
    %2689 = vmatpush1.msra.mxu0 0.0
    %2690 = vmatprep.subr.mxu0 0.0
    %2691 = vmatpush1.msra.mxu0 0.0
    %2692 = vmatprep.subr.mxu0 0.0
    %2693 = vmatpush1.msra.mxu0 0.0
    %2694 = vmatprep.subr.mxu0 0.0
    %2695 = vmatpush1.msra.mxu0 0.0
    %2696 = vmatprep.subr.mxu0 0.0
    %2697 = vmatpush1.msra.mxu0 0.0
    %2698 = vmatprep.subr.mxu0 0.0
    %2699 = vmatpush1.msra.mxu0 0.0
    %2700 = vmatprep.subr.mxu0 0.0
    %2701 = vmatpush1.msra.mxu0 0.0
    %2702 = vmatprep.subr.mxu0 0.0
    %2703 = vmatpush1.msra.mxu0 0.0
    %2704 = vmatprep.subr.mxu0 0.0
    %2705 = vmatpush1.msra.mxu0 0.0
    %2706 = vmatprep.subr.mxu0 0.0
    %2707 = vmatpush1.msra.mxu0 0.0
    %2708 = vmatprep.subr.mxu0 0.0
    %2709 = vmatpush1.msra.mxu0 0.0
    %2710 = vmatprep.mubr.f32.mxu0 0.0
    %2711 = vmatmul.mubr.f32.gmra.mrb[0].mxu0 %v110
    %v2712 = vpop.f32.mrb[0].mxu0
    %v2713 = vadd.f32 0.0, %v2712
    %v2714 = vpop.f32.mrb[0].mxu0
    %2715 = vmatprep.mubr.f32.mxu0 0.0
    %2716 = vmatmul.mubr.f32.gmra.mrb[0].mxu0 %v113
    %v2717 = vpop.f32.mrb[0].mxu0
    %v2718 = vadd.f32 0.0, %v2717
    %v2719 = vpop.f32.mrb[0].mxu0
    %2720 = vmatprep.mubr.f32.mxu0 0.0
    %2721 = vmatmul.mubr.f32.gmra.mrb[0].mxu0 %v116
    %v2722 = vpop.f32.mrb[0].mxu0
    %v2723 = vadd.f32 0.0, %v2722
    %v2724 = vpop.f32.mrb[0].mxu0
    %2725 = vmatprep.mubr.f32.mxu0 0.0
    %2726 = vmatmul.mubr.f32.gmra.mrb[0].mxu0 %v119
    %v2727 = vpop.f32.mrb[0].mxu0
    %v2728 = vadd.f32 0.0, %v2727
    %v2729 = vpop.f32.mrb[0].mxu0
    %2730 = vdwg.mxu0
    %v2731 = vmul.f32 %v92, %v2713
    %v2732 = vmul.f32 %v93, %v2718
    %v2733 = vmul.f32 %v94, %v2723
    %v2734 = vmul.f32 %v95, %v2728
    %v2735 = vmul.f32 %v96, %v2723
    %v2736 = vmul.f32 %v97, %v2723
    %v2737 = vmul.f32 %v98, %v2723
    %v2738 = vmul.f32 %v99, %v2723
    %v2739 = vadd.f32 %v2735, %v100
    %v2740 = vadd.f32 %v2736, %v101
    %v2741 = vadd.f32 %v2737, %v102
    %v2742 = vadd.f32 %v2738, %v103
    %v2743 = vadd.f32 %v2731, %v2739
    %v2744 = vadd.f32 %v2732, %v2740
    %v2745 = vadd.f32 %v2733, %v2741
    %v2746 = vadd.f32 %v2734, %v2742
    %2747 = vmatprep.subr.mxu0 0.0
    %2748 = vmatpush1.msra.mxu0 %v2743
    %2749 = vmatprep.subr.mxu0 0.0
    %2750 = vmatpush1.msra.mxu0 %v2744
    %2751 = vmatprep.subr.mxu0 0.0
    %2752 = vmatpush1.msra.mxu0 %v2745
    %2753 = vmatprep.subr.mxu0 0.0
    %2754 = vmatpush1.msra.mxu0 %v2746
    %2755 = vmatprep.subr.mxu0 0.0
    %2756 = vmatpush1.msra.mxu0 0.0
    %2757 = vmatprep.subr.mxu0 0.0
    %2758 = vmatpush1.msra.mxu0 0.0
    %2759 = vmatprep.subr.mxu0 0.0
    %2760 = vmatpush1.msra.mxu0 0.0
    %2761 = vmatprep.subr.mxu0 0.0
    %2762 = vmatpush1.msra.mxu0 0.0
    %2763 = vmatprep.subr.mxu0 0.0
    %2764 = vmatpush1.msra.mxu0 0.0
    %2765 = vmatprep.subr.mxu0 0.0
    %2766 = vmatpush1.msra.mxu0 0.0
    %2767 = vmatprep.subr.mxu0 0.0
    %2768 = vmatpush1.msra.mxu0 0.0
    %2769 = vmatprep.subr.mxu0 0.0
    %2770 = vmatpush1.msra.mxu0 0.0
    %2771 = vmatprep.subr.mxu0 0.0
    %2772 = vmatpush1.msra.mxu0 0.0
    %2773 = vmatprep.subr.mxu0 0.0
    %2774 = vmatpush1.msra.mxu0 0.0
    %2775 = vmatprep.subr.mxu0 0.0
    %2776 = vmatpush1.msra.mxu0 0.0
    %2777 = vmatprep.subr.mxu0 0.0
    %2778 = vmatpush1.msra.mxu0 0.0
    %2779 = vmatprep.subr.mxu0 0.0
    %2780 = vmatpush1.msra.mxu0 0.0
    %2781 = vmatprep.subr.mxu0 0.0
    %2782 = vmatpush1.msra.mxu0 0.0
    %2783 = vmatprep.subr.mxu0 0.0
    %2784 = vmatpush1.msra.mxu0 0.0
    %2785 = vmatprep.subr.mxu0 0.0
    %2786 = vmatpush1.msra.mxu0 0.0
    %2787 = vmatprep.subr.mxu0 0.0
    %2788 = vmatpush1.msra.mxu0 0.0
    %2789 = vmatprep.subr.mxu0 0.0
    %2790 = vmatpush1.msra.mxu0 0.0
    %2791 = vmatprep.subr.mxu0 0.0
    %2792 = vmatpush1.msra.mxu0 0.0
    %2793 = vmatprep.subr.mxu0 0.0
    %2794 = vmatpush1.msra.mxu0 0.0
    %2795 = vmatprep.subr.mxu0 0.0
    %2796 = vmatpush1.msra.mxu0 0.0
    %2797 = vmatprep.subr.mxu0 0.0
    %2798 = vmatpush1.msra.mxu0 0.0
    %2799 = vmatprep.subr.mxu0 0.0
    %2800 = vmatpush1.msra.mxu0 0.0
    %2801 = vmatprep.subr.mxu0 0.0
    %2802 = vmatpush1.msra.mxu0 0.0
    %2803 = vmatprep.subr.mxu0 0.0
    %2804 = vmatpush1.msra.mxu0 0.0
    %2805 = vmatprep.subr.mxu0 0.0
    %2806 = vmatpush1.msra.mxu0 0.0
    %2807 = vmatprep.subr.mxu0 0.0
    %2808 = vmatpush1.msra.mxu0 0.0
    %2809 = vmatprep.subr.mxu0 0.0
    %2810 = vmatpush1.msra.mxu0 0.0
    %2811 = vmatprep.mubr.f32.mxu0 0.0
    %2812 = vmatmul.mubr.f32.gmra.mrb[0].mxu0 %v110
    %v2813 = vpop.f32.mrb[0].mxu0
    %v2814 = vadd.f32 0.0, %v2813
    %v2815 = vpop.f32.mrb[0].mxu0
    %2816 = vmatprep.mubr.f32.mxu0 0.0
    %2817 = vmatmul.mubr.f32.gmra.mrb[0].mxu0 %v113
    %v2818 = vpop.f32.mrb[0].mxu0
    %v2819 = vadd.f32 0.0, %v2818
    %v2820 = vpop.f32.mrb[0].mxu0
    %2821 = vmatprep.mubr.f32.mxu0 0.0
    %2822 = vmatmul.mubr.f32.gmra.mrb[0].mxu0 %v116
    %v2823 = vpop.f32.mrb[0].mxu0
    %v2824 = vadd.f32 0.0, %v2823
    %v2825 = vpop.f32.mrb[0].mxu0
    %2826 = vmatprep.mubr.f32.mxu0 0.0
    %2827 = vmatmul.mubr.f32.gmra.mrb[0].mxu0 %v119
    %v2828 = vpop.f32.mrb[0].mxu0
    %v2829 = vadd.f32 0.0, %v2828
    %v2830 = vpop.f32.mrb[0].mxu0
    %2831 = vdwg.mxu0
    %v2832 = vmul.f32 %v92, %v2814
    %v2833 = vmul.f32 %v93, %v2819
    %v2834 = vmul.f32 %v94, %v2824
    %v2835 = vmul.f32 %v95, %v2829
    %v2836 = vmul.f32 %v96, %v2824
    %v2837 = vmul.f32 %v97, %v2824
    %v2838 = vmul.f32 %v98, %v2824
    %v2839 = vmul.f32 %v99, %v2824
    %v2840 = vadd.f32 %v2836, %v100
    %v2841 = vadd.f32 %v2837, %v101
    %v2842 = vadd.f32 %v2838, %v102
    %v2843 = vadd.f32 %v2839, %v103
    %v2844 = vadd.f32 %v2832, %v2840
    %v2845 = vadd.f32 %v2833, %v2841
    %v2846 = vadd.f32 %v2834, %v2842
    %v2847 = vadd.f32 %v2835, %v2843
    %2848 = vmatprep.subr.mxu0 0.0
    %2849 = vmatpush1.msra.mxu0 %v2844
    %2850 = vmatprep.subr.mxu0 0.0
    %2851 = vmatpush1.msra.mxu0 %v2845
    %2852 = vmatprep.subr.mxu0 0.0
    %2853 = vmatpush1.msra.mxu0 %v2846
    %2854 = vmatprep.subr.mxu0 0.0
    %2855 = vmatpush1.msra.mxu0 %v2847
    %2856 = vmatprep.subr.mxu0 0.0
    %2857 = vmatpush1.msra.mxu0 0.0
    %2858 = vmatprep.subr.mxu0 0.0
    %2859 = vmatpush1.msra.mxu0 0.0
    %2860 = vmatprep.subr.mxu0 0.0
    %2861 = vmatpush1.msra.mxu0 0.0
    %2862 = vmatprep.subr.mxu0 0.0
    %2863 = vmatpush1.msra.mxu0 0.0
    %2864 = vmatprep.subr.mxu0 0.0
    %2865 = vmatpush1.msra.mxu0 0.0
    %2866 = vmatprep.subr.mxu0 0.0
    %2867 = vmatpush1.msra.mxu0 0.0
    %2868 = vmatprep.subr.mxu0 0.0
    %2869 = vmatpush1.msra.mxu0 0.0
    %2870 = vmatprep.subr.mxu0 0.0
    %2871 = vmatpush1.msra.mxu0 0.0
    %2872 = vmatprep.subr.mxu0 0.0
    %2873 = vmatpush1.msra.mxu0 0.0
    %2874 = vmatprep.subr.mxu0 0.0
    %2875 = vmatpush1.msra.mxu0 0.0
    %2876 = vmatprep.subr.mxu0 0.0
    %2877 = vmatpush1.msra.mxu0 0.0
    %2878 = vmatprep.subr.mxu0 0.0
    %2879 = vmatpush1.msra.mxu0 0.0
    %2880 = vmatprep.subr.mxu0 0.0
    %2881 = vmatpush1.msra.mxu0 0.0
    %2882 = vmatprep.subr.mxu0 0.0
    %2883 = vmatpush1.msra.mxu0 0.0
    %2884 = vmatprep.subr.mxu0 0.0
    %2885 = vmatpush1.msra.mxu0 0.0
    %2886 = vmatprep.subr.mxu0 0.0
    %2887 = vmatpush1.msra.mxu0 0.0
    %2888 = vmatprep.subr.mxu0 0.0
    %2889 = vmatpush1.msra.mxu0 0.0
    %2890 = vmatprep.subr.mxu0 0.0
    %2891 = vmatpush1.msra.mxu0 0.0
    %2892 = vmatprep.subr.mxu0 0.0
    %2893 = vmatpush1.msra.mxu0 0.0
    %2894 = vmatprep.subr.mxu0 0.0
    %2895 = vmatpush1.msra.mxu0 0.0
    %2896 = vmatprep.subr.mxu0 0.0
    %2897 = vmatpush1.msra.mxu0 0.0
    %2898 = vmatprep.subr.mxu0 0.0
    %2899 = vmatpush1.msra.mxu0 0.0
    %2900 = vmatprep.subr.mxu0 0.0
    %2901 = vmatpush1.msra.mxu0 0.0
    %2902 = vmatprep.subr.mxu0 0.0
    %2903 = vmatpush1.msra.mxu0 0.0
    %2904 = vmatprep.subr.mxu0 0.0
    %2905 = vmatpush1.msra.mxu0 0.0
    %2906 = vmatprep.subr.mxu0 0.0
    %2907 = vmatpush1.msra.mxu0 0.0
    %2908 = vmatprep.subr.mxu0 0.0
    %2909 = vmatpush1.msra.mxu0 0.0
    %2910 = vmatprep.subr.mxu0 0.0
    %2911 = vmatpush1.msra.mxu0 0.0
    %2912 = vmatprep.mubr.f32.mxu0 0.0
    %2913 = vmatmul.mubr.f32.gmra.mrb[0].mxu0 %v110
    %v2914 = vpop.f32.mrb[0].mxu0
    %v2915 = vadd.f32 0.0, %v2914
    %v2916 = vpop.f32.mrb[0].mxu0
    %2917 = vmatprep.mubr.f32.mxu0 0.0
    %2918 = vmatmul.mubr.f32.gmra.mrb[0].mxu0 %v113
    %v2919 = vpop.f32.mrb[0].mxu0
    %v2920 = vadd.f32 0.0, %v2919
    %v2921 = vpop.f32.mrb[0].mxu0
    %2922 = vmatprep.mubr.f32.mxu0 0.0
    %2923 = vmatmul.mubr.f32.gmra.mrb[0].mxu0 %v116
    %v2924 = vpop.f32.mrb[0].mxu0
    %v2925 = vadd.f32 0.0, %v2924
    %v2926 = vpop.f32.mrb[0].mxu0
    %2927 = vmatprep.mubr.f32.mxu0 0.0
    %2928 = vmatmul.mubr.f32.gmra.mrb[0].mxu0 %v119
    %v2929 = vpop.f32.mrb[0].mxu0
    %v2930 = vadd.f32 0.0, %v2929
    %v2931 = vpop.f32.mrb[0].mxu0
    %2932 = vdwg.mxu0
    %v2933 = vmul.f32 %v92, %v2915
    %v2934 = vmul.f32 %v93, %v2920
    %v2935 = vmul.f32 %v94, %v2925
    %v2936 = vmul.f32 %v95, %v2930
    %v2937 = vmul.f32 %v96, %v2925
    %v2938 = vmul.f32 %v97, %v2925
    %v2939 = vmul.f32 %v98, %v2925
    %v2940 = vmul.f32 %v99, %v2925
    %v2941 = vadd.f32 %v2937, %v100
    %v2942 = vadd.f32 %v2938, %v101
    %v2943 = vadd.f32 %v2939, %v102
    %v2944 = vadd.f32 %v2940, %v103
    %v2945 = vadd.f32 %v2933, %v2941
    %v2946 = vadd.f32 %v2934, %v2942
    %v2947 = vadd.f32 %v2935, %v2943
    %v2948 = vadd.f32 %v2936, %v2944
    %2949 = vmatprep.subr.mxu0 0.0
    %2950 = vmatpush1.msra.mxu0 %v2945
    %2951 = vmatprep.subr.mxu0 0.0
    %2952 = vmatpush1.msra.mxu0 %v2946
    %2953 = vmatprep.subr.mxu0 0.0
    %2954 = vmatpush1.msra.mxu0 %v2947
    %2955 = vmatprep.subr.mxu0 0.0
    %2956 = vmatpush1.msra.mxu0 %v2948
    %2957 = vmatprep.subr.mxu0 0.0
    %2958 = vmatpush1.msra.mxu0 0.0
    %2959 = vmatprep.subr.mxu0 0.0
    %2960 = vmatpush1.msra.mxu0 0.0
    %2961 = vmatprep.subr.mxu0 0.0
    %2962 = vmatpush1.msra.mxu0 0.0
    %2963 = vmatprep.subr.mxu0 0.0
    %2964 = vmatpush1.msra.mxu0 0.0
    %2965 = vmatprep.subr.mxu0 0.0
    %2966 = vmatpush1.msra.mxu0 0.0
    %2967 = vmatprep.subr.mxu0 0.0
    %2968 = vmatpush1.msra.mxu0 0.0
    %2969 = vmatprep.subr.mxu0 0.0
    %2970 = vmatpush1.msra.mxu0 0.0
    %2971 = vmatprep.subr.mxu0 0.0
    %2972 = vmatpush1.msra.mxu0 0.0
    %2973 = vmatprep.subr.mxu0 0.0
    %2974 = vmatpush1.msra.mxu0 0.0
    %2975 = vmatprep.subr.mxu0 0.0
    %2976 = vmatpush1.msra.mxu0 0.0
    %2977 = vmatprep.subr.mxu0 0.0
    %2978 = vmatpush1.msra.mxu0 0.0
    %2979 = vmatprep.subr.mxu0 0.0
    %2980 = vmatpush1.msra.mxu0 0.0
    %2981 = vmatprep.subr.mxu0 0.0
    %2982 = vmatpush1.msra.mxu0 0.0
    %2983 = vmatprep.subr.mxu0 0.0
    %2984 = vmatpush1.msra.mxu0 0.0
    %2985 = vmatprep.subr.mxu0 0.0
    %2986 = vmatpush1.msra.mxu0 0.0
    %2987 = vmatprep.subr.mxu0 0.0
    %2988 = vmatpush1.msra.mxu0 0.0
    %2989 = vmatprep.subr.mxu0 0.0
    %2990 = vmatpush1.msra.mxu0 0.0
    %2991 = vmatprep.subr.mxu0 0.0
    %2992 = vmatpush1.msra.mxu0 0.0
    %2993 = vmatprep.subr.mxu0 0.0
    %2994 = vmatpush1.msra.mxu0 0.0
    %2995 = vmatprep.subr.mxu0 0.0
    %2996 = vmatpush1.msra.mxu0 0.0
    %2997 = vmatprep.subr.mxu0 0.0
    %2998 = vmatpush1.msra.mxu0 0.0
    %2999 = vmatprep.subr.mxu0 0.0
    %3000 = vmatpush1.msra.mxu0 0.0
    %3001 = vmatprep.subr.mxu0 0.0
    %3002 = vmatpush1.msra.mxu0 0.0
    %3003 = vmatprep.subr.mxu0 0.0
    %3004 = vmatpush1.msra.mxu0 0.0
    %3005 = vmatprep.subr.mxu0 0.0
    %3006 = vmatpush1.msra.mxu0 0.0
    %3007 = vmatprep.subr.mxu0 0.0
    %3008 = vmatpush1.msra.mxu0 0.0
    %3009 = vmatprep.subr.mxu0 0.0
    %3010 = vmatpush1.msra.mxu0 0.0
    %3011 = vmatprep.subr.mxu0 0.0
    %3012 = vmatpush1.msra.mxu0 0.0
    %3013 = vmatprep.mubr.f32.mxu0 0.0
    %3014 = vmatmul.mubr.f32.gmra.mrb[0].mxu0 %v110
    %v3015 = vpop.f32.mrb[0].mxu0
    %v3016 = vadd.f32 0.0, %v3015
    %v3017 = vpop.f32.mrb[0].mxu0
    %3018 = vmatprep.mubr.f32.mxu0 0.0
    %3019 = vmatmul.mubr.f32.gmra.mrb[0].mxu0 %v113
    %v3020 = vpop.f32.mrb[0].mxu0
    %v3021 = vadd.f32 0.0, %v3020
    %v3022 = vpop.f32.mrb[0].mxu0
    %3023 = vmatprep.mubr.f32.mxu0 0.0
    %3024 = vmatmul.mubr.f32.gmra.mrb[0].mxu0 %v116
    %v3025 = vpop.f32.mrb[0].mxu0
    %v3026 = vadd.f32 0.0, %v3025
    %v3027 = vpop.f32.mrb[0].mxu0
    %3028 = vmatprep.mubr.f32.mxu0 0.0
    %3029 = vmatmul.mubr.f32.gmra.mrb[0].mxu0 %v119
    %v3030 = vpop.f32.mrb[0].mxu0
    %v3031 = vadd.f32 0.0, %v3030
    %v3032 = vpop.f32.mrb[0].mxu0
    %3033 = vdwg.mxu0
    %v3034 = vmul.f32 %v92, %v3016
    %v3035 = vmul.f32 %v93, %v3021
    %v3036 = vmul.f32 %v94, %v3026
    %v3037 = vmul.f32 %v95, %v3031
    %v3038 = vmul.f32 %v96, %v3026
    %v3039 = vmul.f32 %v97, %v3026
    %v3040 = vmul.f32 %v98, %v3026
    %v3041 = vmul.f32 %v99, %v3026
    %v3042 = vadd.f32 %v3038, %v100
    %v3043 = vadd.f32 %v3039, %v101
    %v3044 = vadd.f32 %v3040, %v102
    %v3045 = vadd.f32 %v3041, %v103
    %v3046 = vadd.f32 %v3034, %v3042
    %v3047 = vadd.f32 %v3035, %v3043
    %v3048 = vadd.f32 %v3036, %v3044
    %v3049 = vadd.f32 %v3037, %v3045
    %3050 = vmatprep.subr.mxu0 0.0
    %3051 = vmatpush1.msra.mxu0 %v3046
    %3052 = vmatprep.subr.mxu0 0.0
    %3053 = vmatpush1.msra.mxu0 %v3047
    %3054 = vmatprep.subr.mxu0 0.0
    %3055 = vmatpush1.msra.mxu0 %v3048
    %3056 = vmatprep.subr.mxu0 0.0
    %3057 = vmatpush1.msra.mxu0 %v3049
    %3058 = vmatprep.subr.mxu0 0.0
    %3059 = vmatpush1.msra.mxu0 0.0
    %3060 = vmatprep.subr.mxu0 0.0
    %3061 = vmatpush1.msra.mxu0 0.0
    %3062 = vmatprep.subr.mxu0 0.0
    %3063 = vmatpush1.msra.mxu0 0.0
    %3064 = vmatprep.subr.mxu0 0.0
    %3065 = vmatpush1.msra.mxu0 0.0
    %3066 = vmatprep.subr.mxu0 0.0
    %3067 = vmatpush1.msra.mxu0 0.0
    %3068 = vmatprep.subr.mxu0 0.0
    %3069 = vmatpush1.msra.mxu0 0.0
    %3070 = vmatprep.subr.mxu0 0.0
    %3071 = vmatpush1.msra.mxu0 0.0
    %3072 = vmatprep.subr.mxu0 0.0
    %3073 = vmatpush1.msra.mxu0 0.0
    %3074 = vmatprep.subr.mxu0 0.0
    %3075 = vmatpush1.msra.mxu0 0.0
    %3076 = vmatprep.subr.mxu0 0.0
    %3077 = vmatpush1.msra.mxu0 0.0
    %3078 = vmatprep.subr.mxu0 0.0
    %3079 = vmatpush1.msra.mxu0 0.0
    %3080 = vmatprep.subr.mxu0 0.0
    %3081 = vmatpush1.msra.mxu0 0.0
    %3082 = vmatprep.subr.mxu0 0.0
    %3083 = vmatpush1.msra.mxu0 0.0
    %3084 = vmatprep.subr.mxu0 0.0
    %3085 = vmatpush1.msra.mxu0 0.0
    %3086 = vmatprep.subr.mxu0 0.0
    %3087 = vmatpush1.msra.mxu0 0.0
    %3088 = vmatprep.subr.mxu0 0.0
    %3089 = vmatpush1.msra.mxu0 0.0
    %3090 = vmatprep.subr.mxu0 0.0
    %3091 = vmatpush1.msra.mxu0 0.0
    %3092 = vmatprep.subr.mxu0 0.0
    %3093 = vmatpush1.msra.mxu0 0.0
    %3094 = vmatprep.subr.mxu0 0.0
    %3095 = vmatpush1.msra.mxu0 0.0
    %3096 = vmatprep.subr.mxu0 0.0
    %3097 = vmatpush1.msra.mxu0 0.0
    %3098 = vmatprep.subr.mxu0 0.0
    %3099 = vmatpush1.msra.mxu0 0.0
    %3100 = vmatprep.subr.mxu0 0.0
    %3101 = vmatpush1.msra.mxu0 0.0
    %3102 = vmatprep.subr.mxu0 0.0
    %3103 = vmatpush1.msra.mxu0 0.0
    %3104 = vmatprep.subr.mxu0 0.0
    %3105 = vmatpush1.msra.mxu0 0.0
    %3106 = vmatprep.subr.mxu0 0.0
    %3107 = vmatpush1.msra.mxu0 0.0
    %3108 = vmatprep.subr.mxu0 0.0
    %3109 = vmatpush1.msra.mxu0 0.0
    %3110 = vmatprep.subr.mxu0 0.0
    %3111 = vmatpush1.msra.mxu0 0.0
    %3112 = vmatprep.subr.mxu0 0.0
    %3113 = vmatpush1.msra.mxu0 0.0
    %3114 = vmatprep.mubr.f32.mxu0 0.0
    %3115 = vmatmul.mubr.f32.gmra.mrb[0].mxu0 %v110
    %v3116 = vpop.f32.mrb[0].mxu0
    %v3117 = vadd.f32 0.0, %v3116
    %v3118 = vpop.f32.mrb[0].mxu0
    %3119 = vmatprep.mubr.f32.mxu0 0.0
    %3120 = vmatmul.mubr.f32.gmra.mrb[0].mxu0 %v113
    %v3121 = vpop.f32.mrb[0].mxu0
    %v3122 = vadd.f32 0.0, %v3121
    %v3123 = vpop.f32.mrb[0].mxu0
    %3124 = vmatprep.mubr.f32.mxu0 0.0
    %3125 = vmatmul.mubr.f32.gmra.mrb[0].mxu0 %v116
    %v3126 = vpop.f32.mrb[0].mxu0
    %v3127 = vadd.f32 0.0, %v3126
    %v3128 = vpop.f32.mrb[0].mxu0
    %3129 = vmatprep.mubr.f32.mxu0 0.0
    %3130 = vmatmul.mubr.f32.gmra.mrb[0].mxu0 %v119
    %v3131 = vpop.f32.mrb[0].mxu0
    %v3132 = vadd.f32 0.0, %v3131
    %v3133 = vpop.f32.mrb[0].mxu0
    %3134 = vdwg.mxu0
    %v3135 = vmul.f32 %v92, %v3117
    %v3136 = vmul.f32 %v93, %v3122
    %v3137 = vmul.f32 %v94, %v3127
    %v3138 = vmul.f32 %v95, %v3132
    %v3139 = vmul.f32 %v96, %v3127
    %v3140 = vmul.f32 %v97, %v3127
    %v3141 = vmul.f32 %v98, %v3127
    %v3142 = vmul.f32 %v99, %v3127
    %v3143 = vadd.f32 %v3139, %v100
    %v3144 = vadd.f32 %v3140, %v101
    %v3145 = vadd.f32 %v3141, %v102
    %v3146 = vadd.f32 %v3142, %v103
    %v3147 = vadd.f32 %v3135, %v3143
    %v3148 = vadd.f32 %v3136, %v3144
    %v3149 = vadd.f32 %v3137, %v3145
    %v3150 = vadd.f32 %v3138, %v3146
    %3151 = vst [vmem:[#allocation11] sm:$0xff] %v3147
    %3152 = vst [vmem:[#allocation11 + $0x8] sm:$0xff] %v3148
    %3153 = vst [vmem:[#allocation11 + $0x10] sm:$0xff] %v3149
    %3154 = vst [vmem:[#allocation11 + $0x18] sm:$0xff] %v3150
    // Predicated region
    $region39: #{tpu_custom_call.1} parent=1 // pred_check
      _
    $region40: #{tpu_custom_call.1} parent=1 // pred_check_branch
      %3156 = sbr.rel (0) target = $region42
    $region41: #{tpu_custom_call.1} parent=1 // pred_region
      %s3158 = ssub.s32 512, 512
      %3159 = vsyncadd [#allocation5], %s3158
      %s3160 = sshll.u32 [#allocation11], 4
      %s3161 = int_to_ptr.vmem [resolvable:$true] %s3160
      %3166 = dma.vmem_to_hbm [thread:$0]  %s3161, 512, %s5, [#allocation5], 128, 128, 8
    $region42: #{tpu_custom_call.1} parent=1 // pred_fallthru
      _
    // Predicated region
    $region43: #{tpu_custom_call.1} parent=1 // pred_check
      _
    $region44: #{tpu_custom_call.1} parent=1 // pred_check_branch
      %3168 = sbr.rel (0) target = $region46
    $region45: #{tpu_custom_call.1} parent=1 // pred_region
      %3169 = dma.done [#allocation5], 512
    $region46: #{tpu_custom_call.1} parent=1 // pred_fallthru
      _
    %3170 = vsyncpa [#allocation4], 1
    %3171 = vsyncpa [#allocation7], 1
    %3172 = vsyncpa [#allocation10], 1
    %3173 = vsyncpa [#allocation5], 1

</llo_original>
